<compile_context>
chip_gen: v7x
topology: tpu7x:2x2x1
jax: 0.10.0
libtpu: 0.0.40
codegen_flags: <defaults>
</compile_context>

<pallas_src>
import jax
import jax.numpy as jnp
from jax.experimental import pallas as pl
from jax.experimental.pallas import tpu as pltpu


_PI = 3.14159265358979323846


# ---------------------------------------------------------------------------
# In-kernel math helpers (only +,-,*,/, sqrt, floor, abs, min/max, where).
# ---------------------------------------------------------------------------
def _atan_poly(z):
    # odd minimax polynomial for atan on [0, 1]  (|err| ~ 1e-6 rad)
    z2 = z * z
    p = jnp.float32(-0.0117212)
    p = p * z2 + jnp.float32(0.05265332)
    p = p * z2 + jnp.float32(-0.11643287)
    p = p * z2 + jnp.float32(0.19354346)
    p = p * z2 + jnp.float32(-0.33262347)
    p = p * z2 + jnp.float32(0.99997726)
    return p * z


def _arctan2(y, x):
    # torch.angle semantics: range (-pi, pi], atan2(0, 0) = 0.
    ax, ay = jnp.abs(x), jnp.abs(y)
    mx = jnp.maximum(ax, ay)
    mn = jnp.minimum(ax, ay)
    z = mn / jnp.where(mx == 0.0, 1.0, mx)
    r = _atan_poly(z)
    r = jnp.where(ay > ax, jnp.float32(0.5 * _PI) - r, r)
    r = jnp.where(x < 0.0, jnp.float32(_PI) - r, r)
    return jnp.where(y < 0.0, -r, r)


def _sincos(x):
    # range-reduce to [-pi, pi], reflect to [-pi/2, pi/2] (sin invariant),
    # degree-11 sin polynomial, cos = sign * sqrt(1 - sin^2).
    x = x - jnp.floor(x / (2.0 * _PI) + 0.5) * (2.0 * _PI)
    big = jnp.abs(x) > (0.5 * _PI)
    xr = jnp.where(x > 0.5 * _PI, _PI - x,
                   jnp.where(x < -0.5 * _PI, -_PI - x, x))
    z = xr * xr
    p = jnp.float32(-2.5052108e-08)
    p = p * z + jnp.float32(2.7557319e-06)
    p = p * z + jnp.float32(-1.9841270e-04)
    p = p * z + jnp.float32(8.3333333e-03)
    p = p * z + jnp.float32(-1.6666667e-01)
    s = xr + xr * z * p
    c = jnp.sqrt(jnp.maximum(1.0 - s * s, 0.0))
    c = jnp.where(big, -c, c)
    return s, c


def _tree_sum(xs):
    while len(xs) > 1:
        nxt = [xs[i] + xs[i + 1] for i in range(0, len(xs) - 1, 2)]
        if len(xs) % 2:
            nxt.append(xs[-1])
        xs = nxt
    return xs[0]


# ---------------------------------------------------------------------------
# The fused kernel.  Activation layout: rows = (channel, batch), lanes = H*W.
# ---------------------------------------------------------------------------
def _make_ssdg_kernel(Wd, L, R, RB, slope=0.01):
    # lane shifts for the 9 conv taps, k = (dh+1)*3 + (dw+1)
    SHIFTS = [(-(dh * Wd + dw)) % L for dh in (-1, 0, 1) for dw in (-1, 0, 1)]

    def dot32(a, b):
        # Default TPU precision (bf16 multiply, f32 accumulate) accepted
        # deliberately; all products feed |.| / BatchNorm.
        return jnp.dot(a, b, preferred_element_type=jnp.float32)

    def kernel(x_ref, wred_ref, wspanT_ref, w11_ref, conv_ref, mix_ref,
               ncos_ref, nsin_ref, gamma_ref, beta_ref, genw_ref, genb_ref,
               wa0_ref, f1_ref, g1_ref, f2_ref, g2_ref, mask_ref, bc_ref,
               out_ref, act_sc):
        b = pl.program_id(1)
        last = pl.num_programs(1) - 1

        @pl.when(b == 0)
        def _init():
            act_sc[...] = x_ref[...]

        masks = mask_ref[...]                       # (9, L) f32 boundary masks

        def shifts_of(X):
            # 9 zero-padded 3x3 taps of X, built from lane rolls + masks
            outs = []
            for k, s in enumerate(SHIFTS):
                v = X if s == 0 else pltpu.roll(X, shift=s, axis=1)
                outs.append(v * masks[k:k + 1, :])
            return outs

        A = act_sc[...]                             # (R, L) block input

        # --------- spectral branch: involution -> 1x1 conv -> FFT phase-noise
        # TODO(synk): involution module definition not provided; standard
        # reduce->ReLU->span->per-pixel-3x3-sum (groups=1) assumed.
        SA = shifts_of(A)
        t = jnp.maximum(dot32(wred_ref[0, 0], A), 0.0)          # (CR, L)
        kernT = dot32(wspanT_ref[0, 0], t)                      # (9R, L)
        agg = _tree_sum([kernT[k * R:(k + 1) * R, :] * SA[k] for k in range(9)])
        xh = dot32(w11_ref[0, 0], agg)                          # (R, L)

        fh = dot32(xh, f1_ref[...])                             # (R, 2L) = [Re|Im]
        hr, hi = fh[:, :L], fh[:, L:]
        cn, sn = ncos_ref[0, 0], nsin_ref[0, 0]                 # cos/sin of noise
        mr = hr * cn - hi * sn                                  # f * exp(i*noise)
        mi = hr * sn + hi * cn
        rs = dot32(jnp.concatenate([mr, mi], axis=0), g1_ref[...])   # (2R, 2L)
        rr = rs[:R, :L] - rs[R:, L:]
        ri = rs[:R, L:] + rs[R:, :L]
        spec = jnp.sqrt(rr * rr + ri * ri)

        # --------- spatial branch: 2D FFT -> perm-mixed |.|/angle -> |iFFT| -> conv
        ff = dot32(A, f2_ref[...])                              # (R, 2L)
        fr, fi = ff[:, :L], ff[:, L:]
        abs_f = jnp.sqrt(fr * fr + fi * fi)
        ang_f = _arctan2(fi, fr)
        mixed = dot32(mix_ref[0, 0],
                      jnp.concatenate([abs_f, ang_f], axis=1))  # (R, 2L)
        m_abs, m_ang = mixed[:, :L], mixed[:, L:]
        s_a, c_a = _sincos(m_ang)
        mr2 = m_abs * c_a
        mi2 = m_abs * s_a
        rs2 = dot32(jnp.concatenate([mr2, mi2], axis=0), g2_ref[...])
        rr2 = rs2[:R, :L] - rs2[R:, L:]
        ri2 = rs2[:R, L:] + rs2[R:, :L]
        mag = jnp.sqrt(rr2 * rr2 + ri2 * ri2)
        spat = dot32(conv_ref[0, 0], jnp.concatenate(shifts_of(mag), axis=0))

        # --------- add + BatchNorm (training-mode batch stats) + LeakyReLU
        xsum = spec + spat
        m = jnp.sum(dot32(bc_ref[...], xsum), axis=-1, keepdims=True)
        e2 = jnp.sum(dot32(bc_ref[...], xsum * xsum), axis=-1, keepdims=True)
        var = jnp.maximum(e2 - m * m, 0.0)
        y = (xsum - m) * jax.lax.rsqrt(var + 1e-5) * gamma_ref[0] + beta_ref[0]
        act_new = jnp.where(y >= 0.0, y, slope * y)
        act_sc[...] = act_new

        # --------- last block: generate 3x3 conv (+bias, pre-scaled by wa1)
        #           fused with the softmax residual mix.
        @pl.when(b == last)
        def _finish():
            pg = jnp.concatenate(shifts_of(act_new), axis=0)    # (9R, L)
            gen = dot32(genw_ref[0], pg) + genb_ref[0]          # (RB, L)
            out_ref[0] = wa0_ref[0] * x_ref[:RB, :] + gen

    return kernel


# ---------------------------------------------------------------------------
# DFT matrices (FFT realised as matmuls on the MXU).
# ---------------------------------------------------------------------------
def dft_mats_1d(Lr):
    k = jnp.arange(Lr, dtype=jnp.float32)
    ang = -2.0 * jnp.pi * jnp.outer(k, k) / Lr
    Fr, Fi = jnp.cos(ang), jnp.sin(ang)
    Gr, Gi = jnp.cos(ang) / Lr, -jnp.sin(ang) / Lr
    return Fr, Fi, Gr, Gi


def dft_mats_2d(H, Wd):
    FrH, FiH, GrH, GiH = dft_mats_1d(H)
    FrW, FiW, GrW, GiW = dft_mats_1d(Wd)
    F2r = jnp.kron(FrH, FrW) - jnp.kron(FiH, FiW)
    F2i = jnp.kron(FrH, FiW) + jnp.kron(FiH, FrW)
    G2r = jnp.kron(GrH, GrW) - jnp.kron(GiH, GiW)
    G2i = jnp.kron(GrH, GiW) + jnp.kron(GiH, GrW)
    return F2r, F2i, G2r, G2i


# ---------------------------------------------------------------------------
# Jitted forward: XLA glue is only x layout, mix-matrix build and out reshape.
# ---------------------------------------------------------------------------
@jax.jit
def ssdgnet_forward(x, prepped, perms, ncos, nsin):
    N, nb, H, Wd = x.shape
    L = H * Wd
    R = prepped["w11"].shape[2]
    Cu = R // N
    CR = prepped["w_red"].shape[2]
    RB = prepped["gen_w"].shape[1]

    # channels-first, pad channels to Cu, rows ordered (channel, batch)
    x_cf = x.transpose(1, 0, 2, 3)
    x_pad = jnp.pad(x_cf, ((0, Cu - nb), (0, 0), (0, 0), (0, 0)))
    x_rows = x_pad.reshape(R, L)

    # per-(net, block) alpha + batch-permutation mix matrices (R, R)
    a = prepped["alpha_spat"]
    I_N = jnp.eye(N, dtype=jnp.float32)
    I_C = jnp.eye(Cu, dtype=jnp.float32)
    mix = jnp.stack([
        jnp.stack([jnp.kron(I_C,
                            a[j, i] * I_N + (1.0 - a[j, i]) * I_N[perms[j, i]])
                   for i in range(3)])
        for j in range(2)])                                    # (2, 3, R, R)

    kernel = _make_ssdg_kernel(Wd, L, R, RB)
    grid_spec = pltpu.PrefetchScalarGridSpec(
        num_scalar_prefetch=0,
        grid=(2, 3),
        in_specs=[
            pl.BlockSpec((R, L), lambda n, b: (0, 0)),               # x (shared)
            pl.BlockSpec((1, 1, CR, R), lambda n, b: (n, b, 0, 0)),  # inv reduce
            pl.BlockSpec((1, 1, 9 * R, CR), lambda n, b: (n, b, 0, 0)),  # inv span
            pl.BlockSpec((1, 1, R, R), lambda n, b: (n, b, 0, 0)),   # 1x1 conv
            pl.BlockSpec((1, 1, R, 9 * R), lambda n, b: (n, b, 0, 0)),   # 3x3 conv
            pl.BlockSpec((1, 1, R, R), lambda n, b: (n, b, 0, 0)),   # mix matrix
            pl.BlockSpec((1, 1, R, L), lambda n, b: (n, b, 0, 0)),   # cos(noise)
            pl.BlockSpec((1, 1, R, L), lambda n, b: (n, b, 0, 0)),   # sin(noise)
            pl.BlockSpec((1, R, 1), lambda n, b: (n, 0, 0)),         # BN gamma
            pl.BlockSpec((1, R, 1), lambda n, b: (n, 0, 0)),         # BN beta
            pl.BlockSpec((1, RB, 9 * R), lambda n, b: (n, 0, 0)),    # gen conv
            pl.BlockSpec((1, RB, 1), lambda n, b: (n, 0, 0)),        # gen bias
            pl.BlockSpec((1, 1, 1), lambda n, b: (n, 0, 0)),         # wa0
            pl.BlockSpec((L, 2 * L), lambda n, b: (0, 0)),           # F1 [Re|Im]
            pl.BlockSpec((L, 2 * L), lambda n, b: (0, 0)),           # iF1
            pl.BlockSpec((L, 2 * L), lambda n, b: (0, 0)),           # F2
            pl.BlockSpec((L, 2 * L), lambda n, b: (0, 0)),           # iF2
            pl.BlockSpec((9, L), lambda n, b: (0, 0)),               # tap masks
            pl.BlockSpec((R, R), lambda n, b: (0, 0)),               # channel-mean
        ],
        out_specs=pl.BlockSpec((1, RB, L), lambda n, b: (n, 0, 0)),
        scratch_shapes=[pltpu.VMEM((R, L), jnp.float32)],
    )
    out = pl.pallas_call(
        kernel,
        out_shape=jax.ShapeDtypeStruct((2, RB, L), jnp.float32),
        grid_spec=grid_spec,
        compiler_params=pltpu.CompilerParams(
            dimension_semantics=("parallel", "arbitrary")),
    )(x_rows, prepped["w_red"], prepped["w_spanT"], prepped["w11"],
      prepped["conv_w"], mix, ncos, nsin, prepped["bn_gamma"],
      prepped["bn_beta"], prepped["gen_w"], prepped["gen_b"], prepped["wa0"],
      prepped["f1c"], prepped["g1c"], prepped["f2c"], prepped["g2c"],
      prepped["mask"], prepped["bc"])

    out = out.reshape(2, nb, N, H, Wd).transpose(0, 2, 1, 3, 4)
    return out[0], out[1]


# ---------------------------------------------------------------------------
# Parameter construction / one-time prep (outside the jit).
# ---------------------------------------------------------------------------
def init_params(key, n_bands, ch):
    keys = iter(jax.random.split(key, 64))

    def normal(shape):
        return jax.random.normal(next(keys), shape, jnp.float32)

    def make_block(cin, cout):
        cr = max(cin // 4, 1)
        return {
            "spectral": {
                "inv": {"w_reduce": normal((cr, cin)), "w_span": normal((9, cr))},
                "w11": normal((cout, cin)),             # 1x1 conv, bias=False
                "alpha": jnp.float32(0.5),              # dead in recon (as in ref)
                "noise_scale": jnp.float32(0.01),
                "privacy_budget": jnp.float32(1.0),
            },
            "spatial": {"conv_w": normal((cout, cin, 3, 3)),   # bias=False
                        "alpha": jnp.float32(0.5)},
        }

    def make_net():
        return {
            "blocks": [make_block(n_bands, ch), make_block(ch, ch),
                       make_block(ch, ch)],
            "gen_w": normal((n_bands, ch, 3, 3)),
            "gen_b": jnp.zeros((n_bands,), jnp.float32),
            "bn_gamma": jnp.ones((ch,), jnp.float32),
            "bn_beta": jnp.zeros((ch,), jnp.float32),
            "weight_alpha": jnp.full((2,), 0.5, jnp.float32),
        }

    return {"net1": make_net(), "net2": make_net()}


def prepare_params(params, n_bands, ch, N, H, Wd):
    """Pad channels to a uniform multiple of 8, kron every per-channel weight
    with I_N (rows = (channel, batch)), fold softmax residual weights into the
    generate conv, and build the constant DFT / mask / channel-mean tables."""
    L = H * Wd
    Cu = max(8, -(-max(n_bands, ch) // 8) * 8)
    crp = 8
    I_N = jnp.eye(N, dtype=jnp.float32)
    kronI = lambda m: jnp.kron(m, I_N)

    def prep_block(b, cin):
        wr = b["spectral"]["inv"]["w_reduce"]
        cr = wr.shape[0]
        wr_p = jnp.zeros((crp, Cu), jnp.float32).at[:cr, :cin].set(wr)
        ws = b["spectral"]["inv"]["w_span"]
        ws_p = jnp.zeros((9, crp), jnp.float32).at[:, :cr].set(ws)
        span_t = jnp.broadcast_to(ws_p[:, None, :], (9, Cu, crp)).reshape(9 * Cu, crp)
        w11 = jnp.zeros((Cu, Cu), jnp.float32).at[:ch, :cin].set(b["spectral"]["w11"])
        cw = jnp.zeros((Cu, Cu, 3, 3), jnp.float32).at[:ch, :cin].set(
            b["spatial"]["conv_w"])
        cw2 = cw.transpose(0, 2, 3, 1).reshape(Cu, 9 * Cu)      # (k, c) ordering
        return (kronI(wr_p), kronI(span_t), kronI(w11), kronI(cw2),
                b["spatial"]["alpha"])

    w_red, w_spanT, w11, conv_w, alpha_spat = [], [], [], [], []
    for name in ("net1", "net2"):
        br, bs, b1, bcv, ba = [], [], [], [], []
        for i in range(3):
            cin = n_bands if i == 0 else ch
            r = prep_block(params[name]["blocks"][i], cin)
            br.append(r[0]); bs.append(r[1]); b1.append(r[2])
            bcv.append(r[3]); ba.append(r[4])
        w_red.append(jnp.stack(br)); w_spanT.append(jnp.stack(bs))
        w11.append(jnp.stack(b1)); conv_w.append(jnp.stack(bcv))
        alpha_spat.append(jnp.stack(ba))

    def prep_net(net):
        wa = jax.nn.softmax(net["weight_alpha"])
        gw = jnp.zeros((n_bands, Cu, 3, 3), jnp.float32).at[:, :ch].set(net["gen_w"])
        gw2 = gw.transpose(0, 2, 3, 1).reshape(n_bands, 9 * Cu)
        gen_w = kronI(gw2) * wa[1]
        gen_b = jnp.repeat(net["gen_b"], N)[:, None] * wa[1]
        gamma = jnp.repeat(jnp.ones((Cu,), jnp.float32).at[:ch].set(
            net["bn_gamma"]), N)[:, None]
        beta = jnp.repeat(jnp.zeros((Cu,), jnp.float32).at[:ch].set(
            net["bn_beta"]), N)[:, None]
        return gen_w, gen_b, gamma, beta, wa[0].reshape(1, 1)

    nets = [prep_net(params[n]) for n in ("net1", "net2")]

    F1r, F1i, G1r, G1i = dft_mats_1d(L)          # 1-D FFT (spectral branch)
    F2r, F2i, G2r, G2i = dft_mats_2d(H, Wd)      # 2-D FFT (spatial branch)
    hh = jnp.arange(L) // Wd
    ww = jnp.arange(L) % Wd
    mask = jnp.stack([((hh + dh >= 0) & (hh + dh < H) &
                       (ww + dw >= 0) & (ww + dw < Wd)).astype(jnp.float32)
                      for dh in (-1, 0, 1) for dw in (-1, 0, 1)])
    bc = jnp.kron(jnp.eye(Cu, dtype=jnp.float32),
                  jnp.ones((N, N), jnp.float32)) / float(N * L)

    return {
        "w_red": jnp.stack(w_red), "w_spanT": jnp.stack(w_spanT),
        "w11": jnp.stack(w11), "conv_w": jnp.stack(conv_w),
        "alpha_spat": jnp.stack(alpha_spat),
        "gen_w": jnp.stack([nets[0][0], nets[1][0]]),
        "gen_b": jnp.stack([nets[0][1], nets[1][1]]),
        "bn_gamma": jnp.stack([nets[0][2], nets[1][2]]),
        "bn_beta": jnp.stack([nets[0][3], nets[1][3]]),
        "wa0": jnp.stack([nets[0][4], nets[1][4]]),
        "f1c": jnp.concatenate([F1r, F1i], axis=1),
        "g1c": jnp.concatenate([G1r, G1i], axis=1),
        "f2c": jnp.concatenate([F2r, F2i], axis=1),
        "g2c": jnp.concatenate([G2r, G2i], axis=1),
        "mask": mask, "bc": bc,
    }


def make_noise_trig(key, params, n_bands, ch, N, L, Cu):
    """Laplace phase noise per (net, block); cos/sin precomputed so the kernel
    only rotates complex values (exact identity with the reference)."""
    R = Cu * N
    ncos, nsin = [], []
    for j, name in enumerate(("net1", "net2")):
        cj, sj = [], []
        for i in range(3):
            blk = params[name]["blocks"][i]["spectral"]
            scale = 1.0 / jnp.maximum(jnp.abs(blk["privacy_budget"]), 1e-10)
            lap = jax.random.laplace(jax.random.fold_in(key, 2 * i + j),
                                     (ch, N, L), jnp.float32)
            nz = lap * scale * blk["noise_scale"]
            nz = jnp.zeros((Cu, N, L), jnp.float32).at[:ch].set(nz).reshape(R, L)
            cj.append(jnp.cos(nz)); sj.append(jnp.sin(nz))
        ncos.append(jnp.stack(cj)); nsin.append(jnp.stack(sj))
    return jnp.stack(ncos), jnp.stack(nsin)


if __name__ == "__main__":
    N, n_bands, ch, H, W = 2, 4, 8, 16, 16
    key = jax.random.PRNGKey(0)
    kx, kp, kperm, kn = jax.random.split(key, 4)

    x = jax.random.normal(kx, (N, n_bands, H, W), jnp.float32)
    params = init_params(kp, n_bands, ch)
    prepped = prepare_params(params, n_bands, ch, N, H, W)

    # one fresh batch permutation per (net, block), mirroring the reset() calls
    perms = jnp.stack([
        jnp.stack([jax.random.permutation(jax.random.fold_in(kperm, 10 * j + i), N)
                   for i in range(3)])
        for j in range(2)])                                      # (2, 3, N)

    Cu = prepped["bc"].shape[0] // N
    ncos, nsin = make_noise_trig(kn, params, n_bands, ch, N, H * W, Cu)

    out1, out2 = ssdgnet_forward(x, prepped, perms, ncos, nsin)
    jax.block_until_ready((out1, out2))
    assert out1.shape == (N, n_bands, H, W) and out2.shape == (N, n_bands, H, W)
    assert bool(jnp.all(jnp.isfinite(out1))) and bool(jnp.all(jnp.isfinite(out2)))
    print("KERNEL_OK")
</pallas_src>

<mosaic_0001>
module attributes {stable_mosaic.version = 11 : i64} {
  func.func @kernel(%arg0: i32, %arg1: i32, %arg2: memref<16x256xf32, #tpu.memory_space<vmem>>, %arg3: memref<1x1x16x16xf32, #tpu.memory_space<vmem>>, %arg4: memref<1x1x144x16xf32, #tpu.memory_space<vmem>>, %arg5: memref<1x1x16x16xf32, #tpu.memory_space<vmem>>, %arg6: memref<1x1x16x144xf32, #tpu.memory_space<vmem>>, %arg7: memref<1x1x16x16xf32, #tpu.memory_space<vmem>>, %arg8: memref<1x1x16x256xf32, #tpu.memory_space<vmem>>, %arg9: memref<1x1x16x256xf32, #tpu.memory_space<vmem>>, %arg10: memref<1x16x1xf32, #tpu.memory_space<vmem>>, %arg11: memref<1x16x1xf32, #tpu.memory_space<vmem>>, %arg12: memref<1x8x144xf32, #tpu.memory_space<vmem>>, %arg13: memref<1x8x1xf32, #tpu.memory_space<vmem>>, %arg14: memref<1x1x1xf32, #tpu.memory_space<vmem>>, %arg15: memref<256x512xf32, #tpu.memory_space<vmem>>, %arg16: memref<256x512xf32, #tpu.memory_space<vmem>>, %arg17: memref<256x512xf32, #tpu.memory_space<vmem>>, %arg18: memref<256x512xf32, #tpu.memory_space<vmem>>, %arg19: memref<9x256xf32, #tpu.memory_space<vmem>>, %arg20: memref<16x16xf32, #tpu.memory_space<vmem>>, %arg21: memref<1x8x256xf32, #tpu.memory_space<vmem>>, %arg22: memref<16x256xf32, #tpu.memory_space<vmem>>) attributes {dimension_semantics = [#tpu.dimension_semantics<parallel>, #tpu.dimension_semantics<arbitrary>], iteration_bounds = array<i64: 2, 3>, scalar_prefetch = 0 : i64, scratch_operands = 1 : i64, tpu.core_type = #tpu.core_type<tc>, window_params = [{pipeline_mode = #tpu.pipeline_mode<synchronous>, transform_indices = @transform_0, window_bounds = array<i64: 16, 256>}, {transform_indices = @transform_1, window_bounds = array<i64: 1, 1, 16, 16>}, {transform_indices = @transform_2, window_bounds = array<i64: 1, 1, 144, 16>}, {transform_indices = @transform_3, window_bounds = array<i64: 1, 1, 16, 16>}, {transform_indices = @transform_4, window_bounds = array<i64: 1, 1, 16, 144>}, {transform_indices = @transform_5, window_bounds = array<i64: 1, 1, 16, 16>}, {transform_indices = @transform_6, window_bounds = array<i64: 1, 1, 16, 256>}, {transform_indices = @transform_7, window_bounds = array<i64: 1, 1, 16, 256>}, {transform_indices = @transform_8, window_bounds = array<i64: 1, 16, 1>}, {transform_indices = @transform_9, window_bounds = array<i64: 1, 16, 1>}, {transform_indices = @transform_10, window_bounds = array<i64: 1, 8, 144>}, {transform_indices = @transform_11, window_bounds = array<i64: 1, 8, 1>}, {transform_indices = @transform_12, window_bounds = array<i64: 1, 1, 1>}, {pipeline_mode = #tpu.pipeline_mode<synchronous>, transform_indices = @transform_13, window_bounds = array<i64: 256, 512>}, {pipeline_mode = #tpu.pipeline_mode<synchronous>, transform_indices = @transform_14, window_bounds = array<i64: 256, 512>}, {pipeline_mode = #tpu.pipeline_mode<synchronous>, transform_indices = @transform_15, window_bounds = array<i64: 256, 512>}, {pipeline_mode = #tpu.pipeline_mode<synchronous>, transform_indices = @transform_16, window_bounds = array<i64: 256, 512>}, {pipeline_mode = #tpu.pipeline_mode<synchronous>, transform_indices = @transform_17, window_bounds = array<i64: 9, 256>}, {pipeline_mode = #tpu.pipeline_mode<synchronous>, transform_indices = @transform_18, window_bounds = array<i64: 16, 16>}, {transform_indices = @transform_19, window_bounds = array<i64: 1, 8, 256>}]} {
    %c0_i32 = arith.constant 0 : i32
    %0 = arith.cmpi eq, %arg1, %c0_i32 : i32
    %1 = arith.extui %0 : i1 to i32
    %c0_i32_0 = arith.constant 0 : i32
    %2 = arith.cmpi ne, %1, %c0_i32_0 : i32
    scf.if %2 {
      %c0_107 = arith.constant 0 : index
      %c0_108 = arith.constant 0 : index
      %298 = vector.load %arg2[%c0_107, %c0_108] : memref<16x256xf32, #tpu.memory_space<vmem>>, vector<16x256xf32>
      %c0_109 = arith.constant 0 : index
      %c0_110 = arith.constant 0 : index
      %299 = vector.load %arg22[%c0_109, %c0_110] : memref<16x256xf32, #tpu.memory_space<vmem>>, vector<16x256xf32>
      tpu.vector_store %arg22[%c0_109, %c0_110], %298 {strides = array<i32>} : memref<16x256xf32, #tpu.memory_space<vmem>>, vector<16x256xf32>,
    } else {
    }
    %c0 = arith.constant 0 : index
    %c0_1 = arith.constant 0 : index
    %3 = vector.load %arg19[%c0, %c0_1] : memref<9x256xf32, #tpu.memory_space<vmem>>, vector<9x256xf32>
    %c0_2 = arith.constant 0 : index
    %c0_3 = arith.constant 0 : index
    %4 = vector.load %arg22[%c0_2, %c0_3] : memref<16x256xf32, #tpu.memory_space<vmem>>, vector<16x256xf32>
    %c17_i32 = arith.constant 17 : i32
    %5 = tpu.dynamic_rotate %4 by %c17_i32 dim 1 : vector<16x256xf32>, i32 -> vector<16x256xf32>
    %6 = vector.extract_strided_slice %3 {offsets = [0, 0], sizes = [1, 256], strides = [1, 1]} : vector<9x256xf32> to vector<1x256xf32>
    %7 = vector.broadcast %6 : vector<1x256xf32> to vector<16x256xf32>
    %8 = arith.mulf %5, %7 : vector<16x256xf32>
    %c16_i32 = arith.constant 16 : i32
    %9 = tpu.dynamic_rotate %4 by %c16_i32 dim 1 : vector<16x256xf32>, i32 -> vector<16x256xf32>
    %10 = vector.extract_strided_slice %3 {offsets = [1, 0], sizes = [1, 256], strides = [1, 1]} : vector<9x256xf32> to vector<1x256xf32>
    %11 = vector.broadcast %10 : vector<1x256xf32> to vector<16x256xf32>
    %12 = arith.mulf %9, %11 : vector<16x256xf32>
    %c15_i32 = arith.constant 15 : i32
    %13 = tpu.dynamic_rotate %4 by %c15_i32 dim 1 : vector<16x256xf32>, i32 -> vector<16x256xf32>
    %14 = vector.extract_strided_slice %3 {offsets = [2, 0], sizes = [1, 256], strides = [1, 1]} : vector<9x256xf32> to vector<1x256xf32>
    %15 = vector.broadcast %14 : vector<1x256xf32> to vector<16x256xf32>
    %16 = arith.mulf %13, %15 : vector<16x256xf32>
    %c1_i32 = arith.constant 1 : i32
    %17 = tpu.dynamic_rotate %4 by %c1_i32 dim 1 : vector<16x256xf32>, i32 -> vector<16x256xf32>
    %18 = vector.extract_strided_slice %3 {offsets = [3, 0], sizes = [1, 256], strides = [1, 1]} : vector<9x256xf32> to vector<1x256xf32>
    %19 = vector.broadcast %18 : vector<1x256xf32> to vector<16x256xf32>
    %20 = arith.mulf %17, %19 : vector<16x256xf32>
    %21 = vector.extract_strided_slice %3 {offsets = [4, 0], sizes = [1, 256], strides = [1, 1]} : vector<9x256xf32> to vector<1x256xf32>
    %22 = vector.broadcast %21 : vector<1x256xf32> to vector<16x256xf32>
    %23 = arith.mulf %4, %22 : vector<16x256xf32>
    %c255_i32 = arith.constant 255 : i32
    %24 = tpu.dynamic_rotate %4 by %c255_i32 dim 1 : vector<16x256xf32>, i32 -> vector<16x256xf32>
    %25 = vector.extract_strided_slice %3 {offsets = [5, 0], sizes = [1, 256], strides = [1, 1]} : vector<9x256xf32> to vector<1x256xf32>
    %26 = vector.broadcast %25 : vector<1x256xf32> to vector<16x256xf32>
    %27 = arith.mulf %24, %26 : vector<16x256xf32>
    %c241_i32 = arith.constant 241 : i32
    %28 = tpu.dynamic_rotate %4 by %c241_i32 dim 1 : vector<16x256xf32>, i32 -> vector<16x256xf32>
    %29 = vector.extract_strided_slice %3 {offsets = [6, 0], sizes = [1, 256], strides = [1, 1]} : vector<9x256xf32> to vector<1x256xf32>
    %30 = vector.broadcast %29 : vector<1x256xf32> to vector<16x256xf32>
    %31 = arith.mulf %28, %30 : vector<16x256xf32>
    %c240_i32 = arith.constant 240 : i32
    %32 = tpu.dynamic_rotate %4 by %c240_i32 dim 1 : vector<16x256xf32>, i32 -> vector<16x256xf32>
    %33 = vector.extract_strided_slice %3 {offsets = [7, 0], sizes = [1, 256], strides = [1, 1]} : vector<9x256xf32> to vector<1x256xf32>
    %34 = vector.broadcast %33 : vector<1x256xf32> to vector<16x256xf32>
    %35 = arith.mulf %32, %34 : vector<16x256xf32>
    %c239_i32 = arith.constant 239 : i32
    %36 = tpu.dynamic_rotate %4 by %c239_i32 dim 1 : vector<16x256xf32>, i32 -> vector<16x256xf32>
    %37 = vector.extract_strided_slice %3 {offsets = [8, 0], sizes = [1, 256], strides = [1, 1]} : vector<9x256xf32> to vector<1x256xf32>
    %38 = vector.broadcast %37 : vector<1x256xf32> to vector<16x256xf32>
    %39 = arith.mulf %36, %38 : vector<16x256xf32>
    %c0_4 = arith.constant 0 : index
    %c0_5 = arith.constant 0 : index
    %c0_6 = arith.constant 0 : index
    %c0_7 = arith.constant 0 : index
    %40 = vector.load %arg3[%c0_4, %c0_5, %c0_6, %c0_7] : memref<1x1x16x16xf32, #tpu.memory_space<vmem>>, vector<1x1x16x16xf32>
    %41 = vector.shape_cast %40 : vector<1x1x16x16xf32> to vector<16x16xf32>
    %cst = arith.constant dense<0.000000e+00> : vector<16x256xf32>
    %42 = tpu.matmul %41, %4, %cst {dimension_numbers = #tpu.dot_dimension_numbers<[1], [0], [0], [1], [0, 0, 1, 1], [], []>} : vector<16x16xf32>, vector<16x256xf32>, vector<16x256xf32> -> vector<16x256xf32>
    %cst_8 = arith.constant 0.000000e+00 : f32
    %43 = vector.broadcast %cst_8 : f32 to vector<16x256xf32>
    %44 = arith.maximumf %42, %43 : vector<16x256xf32>
    %c0_9 = arith.constant 0 : index
    %c0_10 = arith.constant 0 : index
    %c0_11 = arith.constant 0 : index
    %c0_12 = arith.constant 0 : index
    %45 = vector.load %arg4[%c0_9, %c0_10, %c0_11, %c0_12] : memref<1x1x144x16xf32, #tpu.memory_space<vmem>>, vector<1x1x144x16xf32>
    %46 = vector.shape_cast %45 : vector<1x1x144x16xf32> to vector<144x16xf32>
    %cst_13 = arith.constant dense<0.000000e+00> : vector<144x256xf32>
    %47 = tpu.matmul %46, %44, %cst_13 {dimension_numbers = #tpu.dot_dimension_numbers<[1], [0], [0], [1], [0, 0, 1, 1], [], []>} : vector<144x16xf32>, vector<16x256xf32>, vector<144x256xf32> -> vector<144x256xf32>
    %48 = vector.extract_strided_slice %47 {offsets = [0, 0], sizes = [16, 256], strides = [1, 1]} : vector<144x256xf32> to vector<16x256xf32>
    %49 = arith.mulf %48, %8 : vector<16x256xf32>
    %50 = vector.extract_strided_slice %47 {offsets = [16, 0], sizes = [16, 256], strides = [1, 1]} : vector<144x256xf32> to vector<16x256xf32>
    %51 = arith.mulf %50, %12 : vector<16x256xf32>
    %52 = vector.extract_strided_slice %47 {offsets = [32, 0], sizes = [16, 256], strides = [1, 1]} : vector<144x256xf32> to vector<16x256xf32>
    %53 = arith.mulf %52, %16 : vector<16x256xf32>
    %54 = vector.extract_strided_slice %47 {offsets = [48, 0], sizes = [16, 256], strides = [1, 1]} : vector<144x256xf32> to vector<16x256xf32>
    %55 = arith.mulf %54, %20 : vector<16x256xf32>
    %56 = vector.extract_strided_slice %47 {offsets = [64, 0], sizes = [16, 256], strides = [1, 1]} : vector<144x256xf32> to vector<16x256xf32>
    %57 = arith.mulf %56, %23 : vector<16x256xf32>
    %58 = vector.extract_strided_slice %47 {offsets = [80, 0], sizes = [16, 256], strides = [1, 1]} : vector<144x256xf32> to vector<16x256xf32>
    %59 = arith.mulf %58, %27 : vector<16x256xf32>
    %60 = vector.extract_strided_slice %47 {offsets = [96, 0], sizes = [16, 256], strides = [1, 1]} : vector<144x256xf32> to vector<16x256xf32>
    %61 = arith.mulf %60, %31 : vector<16x256xf32>
    %62 = vector.extract_strided_slice %47 {offsets = [112, 0], sizes = [16, 256], strides = [1, 1]} : vector<144x256xf32> to vector<16x256xf32>
    %63 = arith.mulf %62, %35 : vector<16x256xf32>
    %64 = vector.extract_strided_slice %47 {offsets = [128, 0], sizes = [16, 256], strides = [1, 1]} : vector<144x256xf32> to vector<16x256xf32>
    %65 = arith.mulf %64, %39 : vector<16x256xf32>
    %66 = arith.addf %49, %51 : vector<16x256xf32>
    %67 = arith.addf %53, %55 : vector<16x256xf32>
    %68 = arith.addf %57, %59 : vector<16x256xf32>
    %69 = arith.addf %61, %63 : vector<16x256xf32>
    %70 = arith.addf %66, %67 : vector<16x256xf32>
    %71 = arith.addf %68, %69 : vector<16x256xf32>
    %72 = arith.addf %70, %71 : vector<16x256xf32>
    %73 = arith.addf %72, %65 : vector<16x256xf32>
    %c0_14 = arith.constant 0 : index
    %c0_15 = arith.constant 0 : index
    %c0_16 = arith.constant 0 : index
    %c0_17 = arith.constant 0 : index
    %74 = vector.load %arg5[%c0_14, %c0_15, %c0_16, %c0_17] : memref<1x1x16x16xf32, #tpu.memory_space<vmem>>, vector<1x1x16x16xf32>
    %75 = vector.shape_cast %74 : vector<1x1x16x16xf32> to vector<16x16xf32>
    %cst_18 = arith.constant dense<0.000000e+00> : vector<16x256xf32>
    %76 = tpu.matmul %75, %73, %cst_18 {dimension_numbers = #tpu.dot_dimension_numbers<[1], [0], [0], [1], [0, 0, 1, 1], [], []>} : vector<16x16xf32>, vector<16x256xf32>, vector<16x256xf32> -> vector<16x256xf32>
    %c0_19 = arith.constant 0 : index
    %c0_20 = arith.constant 0 : index
    %77 = vector.load %arg15[%c0_19, %c0_20] : memref<256x512xf32, #tpu.memory_space<vmem>>, vector<256x512xf32>
    %cst_21 = arith.constant dense<0.000000e+00> : vector<16x512xf32>
    %78 = tpu.matmul %76, %77, %cst_21 {dimension_numbers = #tpu.dot_dimension_numbers<[1], [0], [0], [1], [0, 0, 1, 1], [], []>} : vector<16x256xf32>, vector<256x512xf32>, vector<16x512xf32> -> vector<16x512xf32>
    %79 = vector.extract_strided_slice %78 {offsets = [0, 0], sizes = [16, 256], strides = [1, 1]} : vector<16x512xf32> to vector<16x256xf32>
    %80 = vector.extract_strided_slice %78 {offsets = [0, 256], sizes = [16, 256], strides = [1, 1]} : vector<16x512xf32> to vector<16x256xf32>
    %c0_22 = arith.constant 0 : index
    %c0_23 = arith.constant 0 : index
    %c0_24 = arith.constant 0 : index
    %c0_25 = arith.constant 0 : index
    %81 = vector.load %arg8[%c0_22, %c0_23, %c0_24, %c0_25] : memref<1x1x16x256xf32, #tpu.memory_space<vmem>>, vector<1x1x16x256xf32>
    %82 = vector.shape_cast %81 : vector<1x1x16x256xf32> to vector<16x256xf32>
    %c0_26 = arith.constant 0 : index
    %c0_27 = arith.constant 0 : index
    %c0_28 = arith.constant 0 : index
    %c0_29 = arith.constant 0 : index
    %83 = vector.load %arg9[%c0_26, %c0_27, %c0_28, %c0_29] : memref<1x1x16x256xf32, #tpu.memory_space<vmem>>, vector<1x1x16x256xf32>
    %84 = vector.shape_cast %83 : vector<1x1x16x256xf32> to vector<16x256xf32>
    %85 = arith.mulf %79, %82 : vector<16x256xf32>
    %86 = arith.mulf %80, %84 : vector<16x256xf32>
    %87 = arith.subf %85, %86 : vector<16x256xf32>
    %88 = arith.mulf %79, %84 : vector<16x256xf32>
    %89 = arith.mulf %80, %82 : vector<16x256xf32>
    %90 = arith.addf %88, %89 : vector<16x256xf32>
    %91 = tpu.concatenate %87, %90 in 0 : vector<16x256xf32>, vector<16x256xf32> -> vector<32x256xf32>
    %c0_30 = arith.constant 0 : index
    %c0_31 = arith.constant 0 : index
    %92 = vector.load %arg16[%c0_30, %c0_31] : memref<256x512xf32, #tpu.memory_space<vmem>>, vector<256x512xf32>
    %cst_32 = arith.constant dense<0.000000e+00> : vector<32x512xf32>
    %93 = tpu.matmul %91, %92, %cst_32 {dimension_numbers = #tpu.dot_dimension_numbers<[1], [0], [0], [1], [0, 0, 1, 1], [], []>} : vector<32x256xf32>, vector<256x512xf32>, vector<32x512xf32> -> vector<32x512xf32>
    %94 = vector.extract_strided_slice %93 {offsets = [0, 0], sizes = [16, 256], strides = [1, 1]} : vector<32x512xf32> to vector<16x256xf32>
    %95 = vector.extract_strided_slice %93 {offsets = [16, 256], sizes = [16, 256], strides = [1, 1]} : vector<32x512xf32> to vector<16x256xf32>
    %96 = arith.subf %94, %95 : vector<16x256xf32>
    %97 = vector.extract_strided_slice %93 {offsets = [0, 256], sizes = [16, 256], strides = [1, 1]} : vector<32x512xf32> to vector<16x256xf32>
    %98 = vector.extract_strided_slice %93 {offsets = [16, 0], sizes = [16, 256], strides = [1, 1]} : vector<32x512xf32> to vector<16x256xf32>
    %99 = arith.addf %97, %98 : vector<16x256xf32>
    %100 = arith.mulf %96, %96 : vector<16x256xf32>
    %101 = arith.mulf %99, %99 : vector<16x256xf32>
    %102 = arith.addf %100, %101 : vector<16x256xf32>
    %103 = math.sqrt %102 : vector<16x256xf32>
    %c0_33 = arith.constant 0 : index
    %c0_34 = arith.constant 0 : index
    %104 = vector.load %arg17[%c0_33, %c0_34] : memref<256x512xf32, #tpu.memory_space<vmem>>, vector<256x512xf32>
    %cst_35 = arith.constant dense<0.000000e+00> : vector<16x512xf32>
    %105 = tpu.matmul %4, %104, %cst_35 {dimension_numbers = #tpu.dot_dimension_numbers<[1], [0], [0], [1], [0, 0, 1, 1], [], []>} : vector<16x256xf32>, vector<256x512xf32>, vector<16x512xf32> -> vector<16x512xf32>
    %106 = vector.extract_strided_slice %105 {offsets = [0, 0], sizes = [16, 256], strides = [1, 1]} : vector<16x512xf32> to vector<16x256xf32>
    %107 = vector.extract_strided_slice %105 {offsets = [0, 256], sizes = [16, 256], strides = [1, 1]} : vector<16x512xf32> to vector<16x256xf32>
    %108 = arith.mulf %106, %106 : vector<16x256xf32>
    %109 = arith.mulf %107, %107 : vector<16x256xf32>
    %110 = arith.addf %108, %109 : vector<16x256xf32>
    %111 = math.sqrt %110 : vector<16x256xf32>
    %112 = math.absf %106 : vector<16x256xf32>
    %113 = math.absf %107 : vector<16x256xf32>
    %114 = arith.maximumf %112, %113 : vector<16x256xf32>
    %115 = arith.minimumf %112, %113 : vector<16x256xf32>
    %cst_36 = arith.constant 0.000000e+00 : f32
    %116 = vector.broadcast %cst_36 : f32 to vector<16x256xf32>
    %117 = arith.cmpf oeq, %114, %116 : vector<16x256xf32>
    %cst_37 = arith.constant 1.000000e+00 : f32
    %118 = vector.broadcast %cst_37 : f32 to vector<16x256xf32>
    %119 = arith.select %117, %118, %114 : vector<16x256xi1>, vector<16x256xf32>
    %120 = arith.divf %115, %119 : vector<16x256xf32>
    %121 = arith.mulf %120, %120 : vector<16x256xf32>
    %cst_38 = arith.constant -1.172120e-02 : f32
    %122 = vector.broadcast %cst_38 : f32 to vector<16x256xf32>
    %123 = arith.mulf %122, %121 : vector<16x256xf32>
    %cst_39 = arith.constant 0.0526533201 : f32
    %124 = vector.broadcast %cst_39 : f32 to vector<16x256xf32>
    %125 = arith.addf %123, %124 : vector<16x256xf32>
    %126 = arith.mulf %125, %121 : vector<16x256xf32>
    %cst_40 = arith.constant -0.116432868 : f32
    %127 = vector.broadcast %cst_40 : f32 to vector<16x256xf32>
    %128 = arith.addf %126, %127 : vector<16x256xf32>
    %129 = arith.mulf %128, %121 : vector<16x256xf32>
    %cst_41 = arith.constant 0.193543464 : f32
    %130 = vector.broadcast %cst_41 : f32 to vector<16x256xf32>
    %131 = arith.addf %129, %130 : vector<16x256xf32>
    %132 = arith.mulf %131, %121 : vector<16x256xf32>
    %cst_42 = arith.constant -0.332623482 : f32
    %133 = vector.broadcast %cst_42 : f32 to vector<16x256xf32>
    %134 = arith.addf %132, %133 : vector<16x256xf32>
    %135 = arith.mulf %134, %121 : vector<16x256xf32>
    %cst_43 = arith.constant 0.999977231 : f32
    %136 = vector.broadcast %cst_43 : f32 to vector<16x256xf32>
    %137 = arith.addf %135, %136 : vector<16x256xf32>
    %138 = arith.mulf %137, %120 : vector<16x256xf32>
    %139 = arith.cmpf ogt, %113, %112 : vector<16x256xf32>
    %cst_44 = arith.constant 1.57079637 : f32
    %140 = vector.broadcast %cst_44 : f32 to vector<16x256xf32>
    %141 = arith.subf %140, %138 : vector<16x256xf32>
    %142 = arith.select %139, %141, %138 : vector<16x256xi1>, vector<16x256xf32>
    %cst_45 = arith.constant 0.000000e+00 : f32
    %143 = vector.broadcast %cst_45 : f32 to vector<16x256xf32>
    %144 = arith.cmpf olt, %106, %143 : vector<16x256xf32>
    %cst_46 = arith.constant 3.14159274 : f32
    %145 = vector.broadcast %cst_46 : f32 to vector<16x256xf32>
    %146 = arith.subf %145, %142 : vector<16x256xf32>
    %147 = arith.select %144, %146, %142 : vector<16x256xi1>, vector<16x256xf32>
    %cst_47 = arith.constant 0.000000e+00 : f32
    %148 = vector.broadcast %cst_47 : f32 to vector<16x256xf32>
    %149 = arith.cmpf olt, %107, %148 : vector<16x256xf32>
    %cst_48 = arith.constant 0.000000e+00 : f32
    %150 = vector.broadcast %cst_48 : f32 to vector<16x256xf32>
    %151 = arith.subf %150, %147 : vector<16x256xf32>
    %152 = arith.select %149, %151, %147 : vector<16x256xi1>, vector<16x256xf32>
    %c0_49 = arith.constant 0 : index
    %c0_50 = arith.constant 0 : index
    %c0_51 = arith.constant 0 : index
    %c0_52 = arith.constant 0 : index
    %153 = vector.load %arg7[%c0_49, %c0_50, %c0_51, %c0_52] : memref<1x1x16x16xf32, #tpu.memory_space<vmem>>, vector<1x1x16x16xf32>
    %154 = vector.shape_cast %153 : vector<1x1x16x16xf32> to vector<16x16xf32>
    %155 = tpu.concatenate %111, %152 in 1 : vector<16x256xf32>, vector<16x256xf32> -> vector<16x512xf32>
    %cst_53 = arith.constant dense<0.000000e+00> : vector<16x512xf32>
    %156 = tpu.matmul %154, %155, %cst_53 {dimension_numbers = #tpu.dot_dimension_numbers<[1], [0], [0], [1], [0, 0, 1, 1], [], []>} : vector<16x16xf32>, vector<16x512xf32>, vector<16x512xf32> -> vector<16x512xf32>
    %157 = vector.extract_strided_slice %156 {offsets = [0, 0], sizes = [16, 256], strides = [1, 1]} : vector<16x512xf32> to vector<16x256xf32>
    %158 = vector.extract_strided_slice %156 {offsets = [0, 256], sizes = [16, 256], strides = [1, 1]} : vector<16x512xf32> to vector<16x256xf32>
    %cst_54 = arith.constant 6.28318548 : f32
    %159 = vector.broadcast %cst_54 : f32 to vector<16x256xf32>
    %160 = arith.divf %158, %159 : vector<16x256xf32>
    %cst_55 = arith.constant 5.000000e-01 : f32
    %161 = vector.broadcast %cst_55 : f32 to vector<16x256xf32>
    %162 = arith.addf %160, %161 : vector<16x256xf32>
    %163 = math.floor %162 : vector<16x256xf32>
    %cst_56 = arith.constant 6.28318548 : f32
    %164 = vector.broadcast %cst_56 : f32 to vector<16x256xf32>
    %165 = arith.mulf %163, %164 : vector<16x256xf32>
    %166 = arith.subf %158, %165 : vector<16x256xf32>
    %167 = math.absf %166 : vector<16x256xf32>
    %cst_57 = arith.constant 1.57079637 : f32
    %168 = vector.broadcast %cst_57 : f32 to vector<16x256xf32>
    %169 = arith.cmpf ogt, %167, %168 : vector<16x256xf32>
    %cst_58 = arith.constant 1.57079637 : f32
    %170 = vector.broadcast %cst_58 : f32 to vector<16x256xf32>
    %171 = arith.cmpf ogt, %166, %170 : vector<16x256xf32>
    %cst_59 = arith.constant 3.14159274 : f32
    %172 = vector.broadcast %cst_59 : f32 to vector<16x256xf32>
    %173 = arith.subf %172, %166 : vector<16x256xf32>
    %cst_60 = arith.constant -1.57079637 : f32
    %174 = vector.broadcast %cst_60 : f32 to vector<16x256xf32>
    %175 = arith.cmpf olt, %166, %174 : vector<16x256xf32>
    %cst_61 = arith.constant -3.14159274 : f32
    %176 = vector.broadcast %cst_61 : f32 to vector<16x256xf32>
    %177 = arith.subf %176, %166 : vector<16x256xf32>
    %178 = arith.select %175, %177, %166 : vector<16x256xi1>, vector<16x256xf32>
    %179 = arith.select %171, %173, %178 : vector<16x256xi1>, vector<16x256xf32>
    %180 = arith.mulf %179, %179 : vector<16x256xf32>
    %cst_62 = arith.constant -2.50521079E-8 : f32
    %181 = vector.broadcast %cst_62 : f32 to vector<16x256xf32>
    %182 = arith.mulf %181, %180 : vector<16x256xf32>
    %cst_63 = arith.constant 2.75573188E-6 : f32
    %183 = vector.broadcast %cst_63 : f32 to vector<16x256xf32>
    %184 = arith.addf %182, %183 : vector<16x256xf32>
    %185 = arith.mulf %184, %180 : vector<16x256xf32>
    %cst_64 = arith.constant -1.98412701E-4 : f32
    %186 = vector.broadcast %cst_64 : f32 to vector<16x256xf32>
    %187 = arith.addf %185, %186 : vector<16x256xf32>
    %188 = arith.mulf %187, %180 : vector<16x256xf32>
    %cst_65 = arith.constant 0.00833333284 : f32
    %189 = vector.broadcast %cst_65 : f32 to vector<16x256xf32>
    %190 = arith.addf %188, %189 : vector<16x256xf32>
    %191 = arith.mulf %190, %180 : vector<16x256xf32>
    %cst_66 = arith.constant -0.166666672 : f32
    %192 = vector.broadcast %cst_66 : f32 to vector<16x256xf32>
    %193 = arith.addf %191, %192 : vector<16x256xf32>
    %194 = arith.mulf %179, %180 : vector<16x256xf32>
    %195 = arith.mulf %194, %193 : vector<16x256xf32>
    %196 = arith.addf %179, %195 : vector<16x256xf32>
    %197 = arith.mulf %196, %196 : vector<16x256xf32>
    %cst_67 = arith.constant 1.000000e+00 : f32
    %198 = vector.broadcast %cst_67 : f32 to vector<16x256xf32>
    %199 = arith.subf %198, %197 : vector<16x256xf32>
    %cst_68 = arith.constant 0.000000e+00 : f32
    %200 = vector.broadcast %cst_68 : f32 to vector<16x256xf32>
    %201 = arith.maximumf %199, %200 : vector<16x256xf32>
    %202 = math.sqrt %201 : vector<16x256xf32>
    %cst_69 = arith.constant 0.000000e+00 : f32
    %203 = vector.broadcast %cst_69 : f32 to vector<16x256xf32>
    %204 = arith.subf %203, %202 : vector<16x256xf32>
    %205 = arith.select %169, %204, %202 : vector<16x256xi1>, vector<16x256xf32>
    %206 = arith.mulf %157, %205 : vector<16x256xf32>
    %207 = arith.mulf %157, %196 : vector<16x256xf32>
    %208 = tpu.concatenate %206, %207 in 0 : vector<16x256xf32>, vector<16x256xf32> -> vector<32x256xf32>
    %c0_70 = arith.constant 0 : index
    %c0_71 = arith.constant 0 : index
    %209 = vector.load %arg18[%c0_70, %c0_71] : memref<256x512xf32, #tpu.memory_space<vmem>>, vector<256x512xf32>
    %cst_72 = arith.constant dense<0.000000e+00> : vector<32x512xf32>
    %210 = tpu.matmul %208, %209, %cst_72 {dimension_numbers = #tpu.dot_dimension_numbers<[1], [0], [0], [1], [0, 0, 1, 1], [], []>} : vector<32x256xf32>, vector<256x512xf32>, vector<32x512xf32> -> vector<32x512xf32>
    %211 = vector.extract_strided_slice %210 {offsets = [0, 0], sizes = [16, 256], strides = [1, 1]} : vector<32x512xf32> to vector<16x256xf32>
    %212 = vector.extract_strided_slice %210 {offsets = [16, 256], sizes = [16, 256], strides = [1, 1]} : vector<32x512xf32> to vector<16x256xf32>
    %213 = arith.subf %211, %212 : vector<16x256xf32>
    %214 = vector.extract_strided_slice %210 {offsets = [0, 256], sizes = [16, 256], strides = [1, 1]} : vector<32x512xf32> to vector<16x256xf32>
    %215 = vector.extract_strided_slice %210 {offsets = [16, 0], sizes = [16, 256], strides = [1, 1]} : vector<32x512xf32> to vector<16x256xf32>
    %216 = arith.addf %214, %215 : vector<16x256xf32>
    %217 = arith.mulf %213, %213 : vector<16x256xf32>
    %218 = arith.mulf %216, %216 : vector<16x256xf32>
    %219 = arith.addf %217, %218 : vector<16x256xf32>
    %220 = math.sqrt %219 : vector<16x256xf32>
    %c0_73 = arith.constant 0 : index
    %c0_74 = arith.constant 0 : index
    %c0_75 = arith.constant 0 : index
    %c0_76 = arith.constant 0 : index
    %221 = vector.load %arg6[%c0_73, %c0_74, %c0_75, %c0_76] : memref<1x1x16x144xf32, #tpu.memory_space<vmem>>, vector<1x1x16x144xf32>
    %222 = vector.shape_cast %221 : vector<1x1x16x144xf32> to vector<16x144xf32>
    %c17_i32_77 = arith.constant 17 : i32
    %223 = tpu.dynamic_rotate %220 by %c17_i32_77 dim 1 : vector<16x256xf32>, i32 -> vector<16x256xf32>
    %224 = vector.extract_strided_slice %3 {offsets = [0, 0], sizes = [1, 256], strides = [1, 1]} : vector<9x256xf32> to vector<1x256xf32>
    %225 = vector.broadcast %224 : vector<1x256xf32> to vector<16x256xf32>
    %226 = arith.mulf %223, %225 : vector<16x256xf32>
    %c16_i32_78 = arith.constant 16 : i32
    %227 = tpu.dynamic_rotate %220 by %c16_i32_78 dim 1 : vector<16x256xf32>, i32 -> vector<16x256xf32>
    %228 = vector.extract_strided_slice %3 {offsets = [1, 0], sizes = [1, 256], strides = [1, 1]} : vector<9x256xf32> to vector<1x256xf32>
    %229 = vector.broadcast %228 : vector<1x256xf32> to vector<16x256xf32>
    %230 = arith.mulf %227, %229 : vector<16x256xf32>
    %c15_i32_79 = arith.constant 15 : i32
    %231 = tpu.dynamic_rotate %220 by %c15_i32_79 dim 1 : vector<16x256xf32>, i32 -> vector<16x256xf32>
    %232 = vector.extract_strided_slice %3 {offsets = [2, 0], sizes = [1, 256], strides = [1, 1]} : vector<9x256xf32> to vector<1x256xf32>
    %233 = vector.broadcast %232 : vector<1x256xf32> to vector<16x256xf32>
    %234 = arith.mulf %231, %233 : vector<16x256xf32>
    %c1_i32_80 = arith.constant 1 : i32
    %235 = tpu.dynamic_rotate %220 by %c1_i32_80 dim 1 : vector<16x256xf32>, i32 -> vector<16x256xf32>
    %236 = vector.extract_strided_slice %3 {offsets = [3, 0], sizes = [1, 256], strides = [1, 1]} : vector<9x256xf32> to vector<1x256xf32>
    %237 = vector.broadcast %236 : vector<1x256xf32> to vector<16x256xf32>
    %238 = arith.mulf %235, %237 : vector<16x256xf32>
    %239 = vector.extract_strided_slice %3 {offsets = [4, 0], sizes = [1, 256], strides = [1, 1]} : vector<9x256xf32> to vector<1x256xf32>
    %240 = vector.broadcast %239 : vector<1x256xf32> to vector<16x256xf32>
    %241 = arith.mulf %220, %240 : vector<16x256xf32>
    %c255_i32_81 = arith.constant 255 : i32
    %242 = tpu.dynamic_rotate %220 by %c255_i32_81 dim 1 : vector<16x256xf32>, i32 -> vector<16x256xf32>
    %243 = vector.extract_strided_slice %3 {offsets = [5, 0], sizes = [1, 256], strides = [1, 1]} : vector<9x256xf32> to vector<1x256xf32>
    %244 = vector.broadcast %243 : vector<1x256xf32> to vector<16x256xf32>
    %245 = arith.mulf %242, %244 : vector<16x256xf32>
    %c241_i32_82 = arith.constant 241 : i32
    %246 = tpu.dynamic_rotate %220 by %c241_i32_82 dim 1 : vector<16x256xf32>, i32 -> vector<16x256xf32>
    %247 = vector.extract_strided_slice %3 {offsets = [6, 0], sizes = [1, 256], strides = [1, 1]} : vector<9x256xf32> to vector<1x256xf32>
    %248 = vector.broadcast %247 : vector<1x256xf32> to vector<16x256xf32>
    %249 = arith.mulf %246, %248 : vector<16x256xf32>
    %c240_i32_83 = arith.constant 240 : i32
    %250 = tpu.dynamic_rotate %220 by %c240_i32_83 dim 1 : vector<16x256xf32>, i32 -> vector<16x256xf32>
    %251 = vector.extract_strided_slice %3 {offsets = [7, 0], sizes = [1, 256], strides = [1, 1]} : vector<9x256xf32> to vector<1x256xf32>
    %252 = vector.broadcast %251 : vector<1x256xf32> to vector<16x256xf32>
    %253 = arith.mulf %250, %252 : vector<16x256xf32>
    %c239_i32_84 = arith.constant 239 : i32
    %254 = tpu.dynamic_rotate %220 by %c239_i32_84 dim 1 : vector<16x256xf32>, i32 -> vector<16x256xf32>
    %255 = vector.extract_strided_slice %3 {offsets = [8, 0], sizes = [1, 256], strides = [1, 1]} : vector<9x256xf32> to vector<1x256xf32>
    %256 = vector.broadcast %255 : vector<1x256xf32> to vector<16x256xf32>
    %257 = arith.mulf %254, %256 : vector<16x256xf32>
    %258 = tpu.concatenate %226, %230, %234, %238, %241, %245, %249, %253, %257 in 0 : vector<16x256xf32>, vector<16x256xf32>, vector<16x256xf32>, vector<16x256xf32>, vector<16x256xf32>, vector<16x256xf32>, vector<16x256xf32>, vector<16x256xf32>, vector<16x256xf32> -> vector<144x256xf32>
    %cst_85 = arith.constant dense<0.000000e+00> : vector<16x256xf32>
    %259 = tpu.matmul %222, %258, %cst_85 {dimension_numbers = #tpu.dot_dimension_numbers<[1], [0], [0], [1], [0, 0, 1, 1], [], []>} : vector<16x144xf32>, vector<144x256xf32>, vector<16x256xf32> -> vector<16x256xf32>
    %260 = arith.addf %103, %259 : vector<16x256xf32>
    %c0_86 = arith.constant 0 : index
    %c0_87 = arith.constant 0 : index
    %261 = vector.load %arg20[%c0_86, %c0_87] : memref<16x16xf32, #tpu.memory_space<vmem>>, vector<16x16xf32>
    %cst_88 = arith.constant dense<0.000000e+00> : vector<16x256xf32>
    %262 = tpu.matmul %261, %260, %cst_88 {dimension_numbers = #tpu.dot_dimension_numbers<[1], [0], [0], [1], [0, 0, 1, 1], [], []>} : vector<16x16xf32>, vector<16x256xf32>, vector<16x256xf32> -> vector<16x256xf32>
    %cst_89 = arith.constant dense<0.000000e+00> : vector<16xf32>
    %263 = vector.multi_reduction <add>, %262, %cst_89 [1] : vector<16x256xf32> to vector<16xf32>
    %264 = vector.shape_cast %263 : vector<16xf32> to vector<16x1xf32>
    %c0_90 = arith.constant 0 : index
    %c0_91 = arith.constant 0 : index
    %265 = vector.load %arg20[%c0_90, %c0_91] : memref<16x16xf32, #tpu.memory_space<vmem>>, vector<16x16xf32>
    %266 = arith.mulf %260, %260 : vector<16x256xf32>
    %cst_92 = arith.constant dense<0.000000e+00> : vector<16x256xf32>
    %267 = tpu.matmul %265, %266, %cst_92 {dimension_numbers = #tpu.dot_dimension_numbers<[1], [0], [0], [1], [0, 0, 1, 1], [], []>} : vector<16x16xf32>, vector<16x256xf32>, vector<16x256xf32> -> vector<16x256xf32>
    %cst_93 = arith.constant dense<0.000000e+00> : vector<16xf32>
    %268 = vector.multi_reduction <add>, %267, %cst_93 [1] : vector<16x256xf32> to vector<16xf32>
    %269 = vector.shape_cast %268 : vector<16xf32> to vector<16x1xf32>
    %270 = arith.mulf %264, %264 : vector<16x1xf32>
    %271 = arith.subf %269, %270 : vector<16x1xf32>
    %cst_94 = arith.constant 0.000000e+00 : f32
    %272 = vector.broadcast %cst_94 : f32 to vector<16x1xf32>
    %273 = arith.maximumf %271, %272 : vector<16x1xf32>
    %274 = vector.broadcast %264 : vector<16x1xf32> to vector<16x256xf32>
    %275 = arith.subf %260, %274 : vector<16x256xf32>
    %cst_95 = arith.constant 9.99999974E-6 : f32
    %276 = vector.broadcast %cst_95 : f32 to vector<16x1xf32>
    %277 = arith.addf %273, %276 : vector<16x1xf32>
    %278 = math.rsqrt %277 : vector<16x1xf32>
    %279 = vector.broadcast %278 : vector<16x1xf32> to vector<16x256xf32>
    %280 = arith.mulf %275, %279 : vector<16x256xf32>
    %c0_96 = arith.constant 0 : index
    %c0_97 = arith.constant 0 : index
    %c0_98 = arith.constant 0 : index
    %281 = vector.load %arg10[%c0_96, %c0_97, %c0_98] : memref<1x16x1xf32, #tpu.memory_space<vmem>>, vector<1x16x1xf32>
    %282 = vector.shape_cast %281 : vector<1x16x1xf32> to vector<16x1xf32>
    %283 = vector.broadcast %282 : vector<16x1xf32> to vector<16x256xf32>
    %284 = arith.mulf %280, %283 : vector<16x256xf32>
    %c0_99 = arith.constant 0 : index
    %c0_100 = arith.constant 0 : index
    %c0_101 = arith.constant 0 : index
    %285 = vector.load %arg11[%c0_99, %c0_100, %c0_101] : memref<1x16x1xf32, #tpu.memory_space<vmem>>, vector<1x16x1xf32>
    %286 = vector.shape_cast %285 : vector<1x16x1xf32> to vector<16x1xf32>
    %287 = vector.broadcast %286 : vector<16x1xf32> to vector<16x256xf32>
    %288 = arith.addf %284, %287 : vector<16x256xf32>
    %cst_102 = arith.constant 0.000000e+00 : f32
    %289 = vector.broadcast %cst_102 : f32 to vector<16x256xf32>
    %290 = arith.cmpf oge, %288, %289 : vector<16x256xf32>
    %cst_103 = arith.constant 0.00999999977 : f32
    %291 = vector.broadcast %cst_103 : f32 to vector<16x256xf32>
    %292 = arith.mulf %291, %288 : vector<16x256xf32>
    %293 = arith.select %290, %288, %292 : vector<16x256xi1>, vector<16x256xf32>
    %c0_104 = arith.constant 0 : index
    %c0_105 = arith.constant 0 : index
    %294 = vector.load %arg22[%c0_104, %c0_105] : memref<16x256xf32, #tpu.memory_space<vmem>>, vector<16x256xf32>
    tpu.vector_store %arg22[%c0_104, %c0_105], %293 {strides = array<i32>} : memref<16x256xf32, #tpu.memory_space<vmem>>, vector<16x256xf32>,
    %c2_i32 = arith.constant 2 : i32
    %295 = arith.cmpi eq, %arg1, %c2_i32 : i32
    %296 = arith.extui %295 : i1 to i32
    %c0_i32_106 = arith.constant 0 : i32
    %297 = arith.cmpi ne, %296, %c0_i32_106 : i32
    scf.if %297 {
      %c17_i32_107 = arith.constant 17 : i32
      %298 = tpu.dynamic_rotate %293 by %c17_i32_107 dim 1 : vector<16x256xf32>, i32 -> vector<16x256xf32>
      %299 = vector.extract_strided_slice %3 {offsets = [0, 0], sizes = [1, 256], strides = [1, 1]} : vector<9x256xf32> to vector<1x256xf32>
      %300 = vector.broadcast %299 : vector<1x256xf32> to vector<16x256xf32>
      %301 = arith.mulf %298, %300 : vector<16x256xf32>
      %c16_i32_108 = arith.constant 16 : i32
      %302 = tpu.dynamic_rotate %293 by %c16_i32_108 dim 1 : vector<16x256xf32>, i32 -> vector<16x256xf32>
      %303 = vector.extract_strided_slice %3 {offsets = [1, 0], sizes = [1, 256], strides = [1, 1]} : vector<9x256xf32> to vector<1x256xf32>
      %304 = vector.broadcast %303 : vector<1x256xf32> to vector<16x256xf32>
      %305 = arith.mulf %302, %304 : vector<16x256xf32>
      %c15_i32_109 = arith.constant 15 : i32
      %306 = tpu.dynamic_rotate %293 by %c15_i32_109 dim 1 : vector<16x256xf32>, i32 -> vector<16x256xf32>
      %307 = vector.extract_strided_slice %3 {offsets = [2, 0], sizes = [1, 256], strides = [1, 1]} : vector<9x256xf32> to vector<1x256xf32>
      %308 = vector.broadcast %307 : vector<1x256xf32> to vector<16x256xf32>
      %309 = arith.mulf %306, %308 : vector<16x256xf32>
      %c1_i32_110 = arith.constant 1 : i32
      %310 = tpu.dynamic_rotate %293 by %c1_i32_110 dim 1 : vector<16x256xf32>, i32 -> vector<16x256xf32>
      %311 = vector.extract_strided_slice %3 {offsets = [3, 0], sizes = [1, 256], strides = [1, 1]} : vector<9x256xf32> to vector<1x256xf32>
      %312 = vector.broadcast %311 : vector<1x256xf32> to vector<16x256xf32>
      %313 = arith.mulf %310, %312 : vector<16x256xf32>
      %314 = vector.extract_strided_slice %3 {offsets = [4, 0], sizes = [1, 256], strides = [1, 1]} : vector<9x256xf32> to vector<1x256xf32>
      %315 = vector.broadcast %314 : vector<1x256xf32> to vector<16x256xf32>
      %316 = arith.mulf %293, %315 : vector<16x256xf32>
      %c255_i32_111 = arith.constant 255 : i32
      %317 = tpu.dynamic_rotate %293 by %c255_i32_111 dim 1 : vector<16x256xf32>, i32 -> vector<16x256xf32>
      %318 = vector.extract_strided_slice %3 {offsets = [5, 0], sizes = [1, 256], strides = [1, 1]} : vector<9x256xf32> to vector<1x256xf32>
      %319 = vector.broadcast %318 : vector<1x256xf32> to vector<16x256xf32>
      %320 = arith.mulf %317, %319 : vector<16x256xf32>
      %c241_i32_112 = arith.constant 241 : i32
      %321 = tpu.dynamic_rotate %293 by %c241_i32_112 dim 1 : vector<16x256xf32>, i32 -> vector<16x256xf32>
      %322 = vector.extract_strided_slice %3 {offsets = [6, 0], sizes = [1, 256], strides = [1, 1]} : vector<9x256xf32> to vector<1x256xf32>
      %323 = vector.broadcast %322 : vector<1x256xf32> to vector<16x256xf32>
      %324 = arith.mulf %321, %323 : vector<16x256xf32>
      %c240_i32_113 = arith.constant 240 : i32
      %325 = tpu.dynamic_rotate %293 by %c240_i32_113 dim 1 : vector<16x256xf32>, i32 -> vector<16x256xf32>
      %326 = vector.extract_strided_slice %3 {offsets = [7, 0], sizes = [1, 256], strides = [1, 1]} : vector<9x256xf32> to vector<1x256xf32>
      %327 = vector.broadcast %326 : vector<1x256xf32> to vector<16x256xf32>
      %328 = arith.mulf %325, %327 : vector<16x256xf32>
      %c239_i32_114 = arith.constant 239 : i32
      %329 = tpu.dynamic_rotate %293 by %c239_i32_114 dim 1 : vector<16x256xf32>, i32 -> vector<16x256xf32>
      %330 = vector.extract_strided_slice %3 {offsets = [8, 0], sizes = [1, 256], strides = [1, 1]} : vector<9x256xf32> to vector<1x256xf32>
      %331 = vector.broadcast %330 : vector<1x256xf32> to vector<16x256xf32>
      %332 = arith.mulf %329, %331 : vector<16x256xf32>
      %333 = tpu.concatenate %301, %305, %309, %313, %316, %320, %324, %328, %332 in 0 : vector<16x256xf32>, vector<16x256xf32>, vector<16x256xf32>, vector<16x256xf32>, vector<16x256xf32>, vector<16x256xf32>, vector<16x256xf32>, vector<16x256xf32>, vector<16x256xf32> -> vector<144x256xf32>
      %c0_115 = arith.constant 0 : index
      %c0_116 = arith.constant 0 : index
      %c0_117 = arith.constant 0 : index
      %334 = vector.load %arg12[%c0_115, %c0_116, %c0_117] : memref<1x8x144xf32, #tpu.memory_space<vmem>>, vector<1x8x144xf32>
      %335 = vector.shape_cast %334 : vector<1x8x144xf32> to vector<8x144xf32>
      %cst_118 = arith.constant dense<0.000000e+00> : vector<8x256xf32>
      %336 = tpu.matmul %335, %333, %cst_118 {dimension_numbers = #tpu.dot_dimension_numbers<[1], [0], [0], [1], [0, 0, 1, 1], [], []>} : vector<8x144xf32>, vector<144x256xf32>, vector<8x256xf32> -> vector<8x256xf32>
      %c0_119 = arith.constant 0 : index
      %c0_120 = arith.constant 0 : index
      %c0_121 = arith.constant 0 : index
      %337 = vector.load %arg13[%c0_119, %c0_120, %c0_121] : memref<1x8x1xf32, #tpu.memory_space<vmem>>, vector<1x8x1xf32>
      %338 = vector.shape_cast %337 : vector<1x8x1xf32> to vector<8x1xf32>
      %339 = vector.broadcast %338 : vector<8x1xf32> to vector<8x256xf32>
      %340 = arith.addf %336, %339 : vector<8x256xf32>
      %c0_122 = arith.constant 0 : index
      %c0_123 = arith.constant 0 : index
      %c0_124 = arith.constant 0 : index
      %341 = vector.load %arg14[%c0_122, %c0_123, %c0_124] : memref<1x1x1xf32, #tpu.memory_space<vmem>>, vector<1x1x1xf32>
      %342 = vector.shape_cast %341 : vector<1x1x1xf32> to vector<1x1xf32>
      %c0_125 = arith.constant 0 : index
      %c0_126 = arith.constant 0 : index
      %343 = vector.load %arg2[%c0_125, %c0_126] : memref<16x256xf32, #tpu.memory_space<vmem>>, vector<8x256xf32>
      %344 = vector.broadcast %342 : vector<1x1xf32> to vector<8x256xf32>
      %345 = arith.mulf %344, %343 : vector<8x256xf32>
      %346 = arith.addf %345, %340 : vector<8x256xf32>
      %c0_127 = arith.constant 0 : index
      %c0_128 = arith.constant 0 : index
      %c0_129 = arith.constant 0 : index
      %347 = vector.load %arg21[%c0_127, %c0_128, %c0_129] : memref<1x8x256xf32, #tpu.memory_space<vmem>>, vector<1x8x256xf32>
      %348 = vector.shape_cast %347 : vector<1x8x256xf32> to vector<8x256xf32>
      %349 = vector.shape_cast %346 : vector<8x256xf32> to vector<1x8x256xf32>
      tpu.vector_store %arg21[%c0_127, %c0_128, %c0_129], %349 {strides = array<i32>} : memref<1x8x256xf32, #tpu.memory_space<vmem>>, vector<1x8x256xf32>,
    } else {
    }
    return
  }
  func.func @transform_0(%arg0: i32, %arg1: i32) -> (i32, i32) {
    %c0_i32 = arith.constant 0 : i32
    %c0_i32_0 = arith.constant 0 : i32
    %c0_i32_1 = arith.constant 0 : i32
    return %c0_i32, %c0_i32_0 : i32, i32
  }
  func.func @transform_1(%arg0: i32, %arg1: i32) -> (i32, i32, i32, i32) {
    %c0_i32 = arith.constant 0 : i32
    %c0_i32_0 = arith.constant 0 : i32
    %c0_i32_1 = arith.constant 0 : i32
    return %arg0, %arg1, %c0_i32, %c0_i32_0 : i32, i32, i32, i32
  }
  func.func @transform_2(%arg0: i32, %arg1: i32) -> (i32, i32, i32, i32) {
    %c0_i32 = arith.constant 0 : i32
    %c0_i32_0 = arith.constant 0 : i32
    %c0_i32_1 = arith.constant 0 : i32
    return %arg0, %arg1, %c0_i32, %c0_i32_0 : i32, i32, i32, i32
  }
  func.func @transform_3(%arg0: i32, %arg1: i32) -> (i32, i32, i32, i32) {
    %c0_i32 = arith.constant 0 : i32
    %c0_i32_0 = arith.constant 0 : i32
    %c0_i32_1 = arith.constant 0 : i32
    return %arg0, %arg1, %c0_i32, %c0_i32_0 : i32, i32, i32, i32
  }
  func.func @transform_4(%arg0: i32, %arg1: i32) -> (i32, i32, i32, i32) {
    %c0_i32 = arith.constant 0 : i32
    %c0_i32_0 = arith.constant 0 : i32
    %c0_i32_1 = arith.constant 0 : i32
    return %arg0, %arg1, %c0_i32, %c0_i32_0 : i32, i32, i32, i32
  }
  func.func @transform_5(%arg0: i32, %arg1: i32) -> (i32, i32, i32, i32) {
    %c0_i32 = arith.constant 0 : i32
    %c0_i32_0 = arith.constant 0 : i32
    %c0_i32_1 = arith.constant 0 : i32
    return %arg0, %arg1, %c0_i32, %c0_i32_0 : i32, i32, i32, i32
  }
  func.func @transform_6(%arg0: i32, %arg1: i32) -> (i32, i32, i32, i32) {
    %c0_i32 = arith.constant 0 : i32
    %c0_i32_0 = arith.constant 0 : i32
    %c0_i32_1 = arith.constant 0 : i32
    return %arg0, %arg1, %c0_i32, %c0_i32_0 : i32, i32, i32, i32
  }
  func.func @transform_7(%arg0: i32, %arg1: i32) -> (i32, i32, i32, i32) {
    %c0_i32 = arith.constant 0 : i32
    %c0_i32_0 = arith.constant 0 : i32
    %c0_i32_1 = arith.constant 0 : i32
    return %arg0, %arg1, %c0_i32, %c0_i32_0 : i32, i32, i32, i32
  }
  func.func @transform_8(%arg0: i32, %arg1: i32) -> (i32, i32, i32) {
    %c0_i32 = arith.constant 0 : i32
    %c0_i32_0 = arith.constant 0 : i32
    %c0_i32_1 = arith.constant 0 : i32
    return %arg0, %c0_i32, %c0_i32_0 : i32, i32, i32
  }
  func.func @transform_9(%arg0: i32, %arg1: i32) -> (i32, i32, i32) {
    %c0_i32 = arith.constant 0 : i32
    %c0_i32_0 = arith.constant 0 : i32
    %c0_i32_1 = arith.constant 0 : i32
    return %arg0, %c0_i32, %c0_i32_0 : i32, i32, i32
  }
  func.func @transform_10(%arg0: i32, %arg1: i32) -> (i32, i32, i32) {
    %c0_i32 = arith.constant 0 : i32
    %c0_i32_0 = arith.constant 0 : i32
    %c0_i32_1 = arith.constant 0 : i32
    return %arg0, %c0_i32, %c0_i32_0 : i32, i32, i32
  }
  func.func @transform_11(%arg0: i32, %arg1: i32) -> (i32, i32, i32) {
    %c0_i32 = arith.constant 0 : i32
    %c0_i32_0 = arith.constant 0 : i32
    %c0_i32_1 = arith.constant 0 : i32
    return %arg0, %c0_i32, %c0_i32_0 : i32, i32, i32
  }
  func.func @transform_12(%arg0: i32, %arg1: i32) -> (i32, i32, i32) {
    %c0_i32 = arith.constant 0 : i32
    %c0_i32_0 = arith.constant 0 : i32
    %c0_i32_1 = arith.constant 0 : i32
    return %arg0, %c0_i32, %c0_i32_0 : i32, i32, i32
  }
  func.func @transform_13(%arg0: i32, %arg1: i32) -> (i32, i32) {
    %c0_i32 = arith.constant 0 : i32
    %c0_i32_0 = arith.constant 0 : i32
    %c0_i32_1 = arith.constant 0 : i32
    return %c0_i32, %c0_i32_0 : i32, i32
  }
  func.func @transform_14(%arg0: i32, %arg1: i32) -> (i32, i32) {
    %c0_i32 = arith.constant 0 : i32
    %c0_i32_0 = arith.constant 0 : i32
    %c0_i32_1 = arith.constant 0 : i32
    return %c0_i32, %c0_i32_0 : i32, i32
  }
  func.func @transform_15(%arg0: i32, %arg1: i32) -> (i32, i32) {
    %c0_i32 = arith.constant 0 : i32
    %c0_i32_0 = arith.constant 0 : i32
    %c0_i32_1 = arith.constant 0 : i32
    return %c0_i32, %c0_i32_0 : i32, i32
  }
  func.func @transform_16(%arg0: i32, %arg1: i32) -> (i32, i32) {
    %c0_i32 = arith.constant 0 : i32
    %c0_i32_0 = arith.constant 0 : i32
    %c0_i32_1 = arith.constant 0 : i32
    return %c0_i32, %c0_i32_0 : i32, i32
  }
  func.func @transform_17(%arg0: i32, %arg1: i32) -> (i32, i32) {
    %c0_i32 = arith.constant 0 : i32
    %c0_i32_0 = arith.constant 0 : i32
    %c0_i32_1 = arith.constant 0 : i32
    return %c0_i32, %c0_i32_0 : i32, i32
  }
  func.func @transform_18(%arg0: i32, %arg1: i32) -> (i32, i32) {
    %c0_i32 = arith.constant 0 : i32
    %c0_i32_0 = arith.constant 0 : i32
    %c0_i32_1 = arith.constant 0 : i32
    return %c0_i32, %c0_i32_0 : i32, i32
  }
  func.func @transform_19(%arg0: i32, %arg1: i32) -> (i32, i32, i32) {
    %c0_i32 = arith.constant 0 : i32
    %c0_i32_0 = arith.constant 0 : i32
    %c0_i32_1 = arith.constant 0 : i32
    return %arg0, %c0_i32, %c0_i32_0 : i32, i32, i32
  }
}

</mosaic_0001>

<llo_original>
// kernel: ssdgnet_forward.1
$region0: #{ssdgnet_forward.1}
  #allocation0 [shape = 'u32[]', space=smem, size = 0x4, offset = 0x4, fixed_abs, tag = 'smem constant byte address 0x4 - core index']
  #allocation1 [shape = 'u32[144,128]{1,0:T(1,128)}', space=vmem, size = 0x12000, scoped, tag = 'internal scratch']
  #allocation2 [shape = 'f32[16,256]{1,0:T(8,128)}', space=vmem, size = 0x4000, scoped, tag = 'scratch operand']
  %s0 = inlined_call_operand.vmem [shape: f32[16,256], index: 0, kind: input, shape index: {}]
  %s1 = inlined_call_operand.hbm [shape: f32[2,3,16,16], index: 1, kind: input, shape index: {}]
  %s2 = inlined_call_operand.vmem [shape: f32[2,3,144,16], index: 2, kind: input, shape index: {}]
  %s3 = inlined_call_operand.hbm [shape: f32[2,3,16,16], index: 3, kind: input, shape index: {}]
  %s4 = inlined_call_operand.vmem [shape: f32[2,3,16,144], index: 4, kind: input, shape index: {}]
  %s5 = inlined_call_operand.vmem [shape: f32[2,3,16,16], index: 5, kind: input, shape index: {}]
  %s6 = inlined_call_operand.vmem [shape: f32[2,3,16,256], index: 6, kind: input, shape index: {}]
  %s7 = inlined_call_operand.hbm [shape: f32[2,3,16,256], index: 7, kind: input, shape index: {}]
  %s8 = inlined_call_operand.vmem [shape: f32[2,16,1], index: 8, kind: input, shape index: {}]
  %s9 = inlined_call_operand.vmem [shape: f32[2,16,1], index: 9, kind: input, shape index: {}]
  %s10 = inlined_call_operand.vmem [shape: f32[2,8,144], index: 10, kind: input, shape index: {}]
  %s11 = inlined_call_operand.vmem [shape: f32[2,8,1], index: 11, kind: input, shape index: {}]
  %s12 = inlined_call_operand.vmem [shape: f32[2,1,1], index: 12, kind: input, shape index: {}]
  %s13 = inlined_call_operand.vmem [shape: f32[256,512], index: 13, kind: input, shape index: {}]
  %s14 = inlined_call_operand.vmem [shape: f32[256,512], index: 14, kind: input, shape index: {}]
  %s15 = inlined_call_operand.vmem [shape: f32[256,512], index: 15, kind: input, shape index: {}]
  %s16 = inlined_call_operand.vmem [shape: f32[256,512], index: 16, kind: input, shape index: {}]
  %s17 = inlined_call_operand.hbm [shape: f32[9,256], index: 17, kind: input, shape index: {}]
  %s18 = inlined_call_operand.hbm [shape: f32[16,16], index: 18, kind: input, shape index: {}]
  %s19 = inlined_call_operand.vmem [shape: f32[2,8,256], index: 19, kind: output, shape index: {}]
  %s20 = sld [smem:[#allocation0]]
  $region137: #{ssdgnet_forward.1} parent=0
    _
  %s22 = ssub.s32 1, %s20
  %s23 = scalar_select 0, %s22, %s20
  $region1: #{ssdgnet_forward.1} parent=0
    #allocation3 [shape = 'u8[16384]{0}', space=vmem, size = 0x4000, scoped, tag = 'input window, operand 1']
    #allocation4 [shape = 's32[2]{0}', space=sflag, size = 0x8, scoped, tag = 'scoped memory for ssdgnet_forward.1']
    #allocation5 [shape = 'u8[16384]{0}', space=vmem, size = 0x4000, scoped, tag = 'input window, operand 3']
    #allocation6 [shape = 's32[2]{0}', space=sflag, size = 0x8, scoped, tag = 'scoped memory for ssdgnet_forward.1']
    #allocation7 [shape = 'u8[32768]{0}', space=vmem, size = 0x8000, scoped, tag = 'input window, operand 7']
    #allocation8 [shape = 'u8[16384]{0}', space=vmem, size = 0x4000, scoped, tag = 'input window, operand 17, single buffered']
    #allocation9 [shape = 's32[1]{0}', space=sflag, size = 0x4, scoped, tag = 'scoped memory for ssdgnet_forward.1']
    #allocation10 [shape = 'u8[8192]{0}', space=vmem, size = 0x2000, scoped, tag = 'input window, operand 18, single buffered']
    %24 = vsyncpa [#allocation4], 0
    %s25 = scalar_lea.sflag [#allocation4], 1
    %26 = vsyncpa %s25, 0
    %27 = vsyncpa [#allocation6], 0
    %s28 = scalar_lea.sflag [#allocation6], 1
    %29 = vsyncpa %s28, 0
    %30 = vsyncpa [#allocation9], 0
    loop: start=0, step=1, limit=8
    $region2: #{ssdgnet_forward.1} parent=1 // loop_pre_header
      _
    $region3: #{ssdgnet_forward.1} parent=1 // loop_header
      %s32 = sphi 0, %s36
      %p33 = scmp.ge.s32.totalorder %s32, 8
      %s39 = sphi 0, %s51
      %s40 = sphi 0, %s47
      %s41 = sphi 0, %s39
      %s42 = sphi 0, %s40
      %s43 = sphi 0, %s41
      %s44 = sphi 0, %s42
      %s52 = sphi 0, %s52
      %s54 = sphi 0, %s52
      %s55 = sphi 0, %s54
      %s69 = sphi 0, %s55
      %s77 = sphi 0, %s79
      %s80 = sphi 0, %s77
      %s81 = sphi 0, %s80
      %s97 = sphi 0, %s81
      %s105 = sphi 0, %s107
      %s108 = sphi 0, %s105
      %s109 = sphi 0, %s108
      %s125 = sphi 0, %s109
      %s133 = sphi 0, %s135
      %s136 = sphi 0, %s133
      %s137 = sphi 0, %s136
      %s153 = sphi 0, %s137
      %s161 = sphi 0, %s163
      %s164 = sphi 0, %s161
      %s165 = sphi 0, %s164
      %s181 = sphi 0, %s165
      %s189 = sphi 0, %s191
      %s192 = sphi 0, %s189
      %s193 = sphi 0, %s192
      %s209 = sphi 0, %s193
      %s217 = sphi 0, %s219
      %s220 = sphi 0, %s217
      %s221 = sphi 0, %s220
      %s237 = sphi 0, %s221
      %s245 = sphi 0, %s247
      %s248 = sphi 0, %s245
      %s249 = sphi 0, %s248
      %s265 = sphi 0, %s249
      %s271 = sphi 0, %s273
      %s274 = sphi 0, %s271
      %s275 = sphi 0, %s274
      %s291 = sphi 0, %s275
      %s297 = sphi 0, %s299
      %s300 = sphi 0, %s297
      %s301 = sphi 0, %s300
      %s317 = sphi 0, %s301
      %s323 = sphi 0, %s325
      %s326 = sphi 0, %s323
      %s327 = sphi 0, %s326
      %s343 = sphi 0, %s327
      %s349 = sphi 0, %s351
      %s352 = sphi 0, %s349
      %s353 = sphi 0, %s352
      %s369 = sphi 0, %s353
      %s375 = sphi 0, %s377
      %s378 = sphi 0, %s375
      %s379 = sphi 0, %s378
      %s395 = sphi 0, %s379
      %s399 = sphi 0, %s399
      %s401 = sphi 0, %s399
      %s402 = sphi 0, %s401
      %s416 = sphi 0, %s402
      %s420 = sphi 0, %s420
      %s422 = sphi 0, %s420
      %s423 = sphi 0, %s422
      %s437 = sphi 0, %s423
      %s441 = sphi 0, %s441
      %s443 = sphi 0, %s441
      %s444 = sphi 0, %s443
      %s458 = sphi 0, %s444
      %s462 = sphi 0, %s462
      %s464 = sphi 0, %s462
      %s465 = sphi 0, %s464
      %s479 = sphi 0, %s465
      %s483 = sphi 0, %s483
      %s485 = sphi 0, %s483
      %s486 = sphi 0, %s485
      %s500 = sphi 0, %s486
      %s504 = sphi 0, %s504
      %s506 = sphi 0, %s504
      %s507 = sphi 0, %s506
      %s521 = sphi 0, %s507
      %s527 = sphi 0, %s529
      %s530 = sphi 0, %s527
      %s531 = sphi 0, %s530
      %s547 = sphi 0, %s531
    $region4: #{ssdgnet_forward.1} parent=1 // loop_header_branch
      %35 = sbr.rel (%p33) target = $region8
    $region5: #{ssdgnet_forward.1} parent=1 // loop_body
      %s37 = ssub.s32 %s32, 1
      %s38 = ssub.s32 %s32, 2
      %s45 = sadd.s32 1, %s40
      %p46 = scmp.ge.s32.totalorder %s45, 3
      %s47 = scalar_select %p46, 0, %s45
      %s48 = sadd.s32 1, %s39
      %s49 = scalar_select %p46, %s48, %s39
      %p50 = scmp.ge.s32.totalorder %s49, 2
      %s51 = scalar_select %p50, 0, %s49
      %s53 = sadd.s32 %s52, 1
      %p56 = scmp.eq.s32.totalorder %s32, 5
      %p57 = scmp.ne.s32.totalorder %s52, %s54
      %p58 = scmp.eq.s32.totalorder %s32, 0
      %p59 = por %p57, %p58
      %p60 = scmp.ne.s32.totalorder %s52, %s54
      %p61 = scmp.eq.s32.totalorder %s37, 5
      %p62 = por %p60, %p61
      %p63 = scmp.ne.s32.totalorder %s54, %s55
      %p64 = scmp.eq.s32.totalorder %s37, 0
      %p65 = por %p63, %p64
      %p66 = scmp.ne.s32.totalorder %s54, %s55
      %p67 = scmp.eq.s32.totalorder %s38, 5
      %p68 = por %p66, %p67
      %p70 = scmp.ne.s32.totalorder %s55, %s69
      %p71 = scmp.eq.s32.totalorder %s38, 0
      %p72 = por %p70, %p71
      %s73 = ssub.s32 %s39, %s51
      %s74 = ssub.s32 %s40, %s47
      %s75 = sor.u32 %s73, %s74
      %p76 = scmp.eq.s32.totalorder %s75, 0
      %s78 = sadd.s32 %s77, 1
      %s79 = scalar_select %p76, %s77, %s78
      %p82 = pneg %p76
      %p83 = scmp.eq.s32.totalorder %s32, 5
      %p84 = por %p82, %p83
      %p85 = scmp.ne.s32.totalorder %s77, %s80
      %p86 = scmp.eq.s32.totalorder %s32, 0
      %p87 = por %p85, %p86
      %p88 = scmp.ne.s32.totalorder %s77, %s80
      %p89 = scmp.eq.s32.totalorder %s37, 5
      %p90 = por %p88, %p89
      %p91 = scmp.ne.s32.totalorder %s80, %s81
      %p92 = scmp.eq.s32.totalorder %s37, 0
      %p93 = por %p91, %p92
      %p94 = scmp.ne.s32.totalorder %s80, %s81
      %p95 = scmp.eq.s32.totalorder %s38, 5
      %p96 = por %p94, %p95
      %p98 = scmp.ne.s32.totalorder %s81, %s97
      %p99 = scmp.eq.s32.totalorder %s38, 0
      %p100 = por %p98, %p99
      %s101 = ssub.s32 %s39, %s51
      %s102 = ssub.s32 %s40, %s47
      %s103 = sor.u32 %s101, %s102
      %p104 = scmp.eq.s32.totalorder %s103, 0
      %s106 = sadd.s32 %s105, 1
      %s107 = scalar_select %p104, %s105, %s106
      %p110 = pneg %p104
      %p111 = scmp.eq.s32.totalorder %s32, 5
      %p112 = por %p110, %p111
      %p113 = scmp.ne.s32.totalorder %s105, %s108
      %p114 = scmp.eq.s32.totalorder %s32, 0
      %p115 = por %p113, %p114
      %p116 = scmp.ne.s32.totalorder %s105, %s108
      %p117 = scmp.eq.s32.totalorder %s37, 5
      %p118 = por %p116, %p117
      %p119 = scmp.ne.s32.totalorder %s108, %s109
      %p120 = scmp.eq.s32.totalorder %s37, 0
      %p121 = por %p119, %p120
      %p122 = scmp.ne.s32.totalorder %s108, %s109
      %p123 = scmp.eq.s32.totalorder %s38, 5
      %p124 = por %p122, %p123
      %p126 = scmp.ne.s32.totalorder %s109, %s125
      %p127 = scmp.eq.s32.totalorder %s38, 0
      %p128 = por %p126, %p127
      %s129 = ssub.s32 %s39, %s51
      %s130 = ssub.s32 %s40, %s47
      %s131 = sor.u32 %s129, %s130
      %p132 = scmp.eq.s32.totalorder %s131, 0
      %s134 = sadd.s32 %s133, 1
      %s135 = scalar_select %p132, %s133, %s134
      %p138 = pneg %p132
      %p139 = scmp.eq.s32.totalorder %s32, 5
      %p140 = por %p138, %p139
      %p141 = scmp.ne.s32.totalorder %s133, %s136
      %p142 = scmp.eq.s32.totalorder %s32, 0
      %p143 = por %p141, %p142
      %p144 = scmp.ne.s32.totalorder %s133, %s136
      %p145 = scmp.eq.s32.totalorder %s37, 5
      %p146 = por %p144, %p145
      %p147 = scmp.ne.s32.totalorder %s136, %s137
      %p148 = scmp.eq.s32.totalorder %s37, 0
      %p149 = por %p147, %p148
      %p150 = scmp.ne.s32.totalorder %s136, %s137
      %p151 = scmp.eq.s32.totalorder %s38, 5
      %p152 = por %p150, %p151
      %p154 = scmp.ne.s32.totalorder %s137, %s153
      %p155 = scmp.eq.s32.totalorder %s38, 0
      %p156 = por %p154, %p155
      %s157 = ssub.s32 %s39, %s51
      %s158 = ssub.s32 %s40, %s47
      %s159 = sor.u32 %s157, %s158
      %p160 = scmp.eq.s32.totalorder %s159, 0
      %s162 = sadd.s32 %s161, 1
      %s163 = scalar_select %p160, %s161, %s162
      %p166 = pneg %p160
      %p167 = scmp.eq.s32.totalorder %s32, 5
      %p168 = por %p166, %p167
      %p169 = scmp.ne.s32.totalorder %s161, %s164
      %p170 = scmp.eq.s32.totalorder %s32, 0
      %p171 = por %p169, %p170
      %p172 = scmp.ne.s32.totalorder %s161, %s164
      %p173 = scmp.eq.s32.totalorder %s37, 5
      %p174 = por %p172, %p173
      %p175 = scmp.ne.s32.totalorder %s164, %s165
      %p176 = scmp.eq.s32.totalorder %s37, 0
      %p177 = por %p175, %p176
      %p178 = scmp.ne.s32.totalorder %s164, %s165
      %p179 = scmp.eq.s32.totalorder %s38, 5
      %p180 = por %p178, %p179
      %p182 = scmp.ne.s32.totalorder %s165, %s181
      %p183 = scmp.eq.s32.totalorder %s38, 0
      %p184 = por %p182, %p183
      %s185 = ssub.s32 %s39, %s51
      %s186 = ssub.s32 %s40, %s47
      %s187 = sor.u32 %s185, %s186
      %p188 = scmp.eq.s32.totalorder %s187, 0
      %s190 = sadd.s32 %s189, 1
      %s191 = scalar_select %p188, %s189, %s190
      %p194 = pneg %p188
      %p195 = scmp.eq.s32.totalorder %s32, 5
      %p196 = por %p194, %p195
      %p197 = scmp.ne.s32.totalorder %s189, %s192
      %p198 = scmp.eq.s32.totalorder %s32, 0
      %p199 = por %p197, %p198
      %p200 = scmp.ne.s32.totalorder %s189, %s192
      %p201 = scmp.eq.s32.totalorder %s37, 5
      %p202 = por %p200, %p201
      %p203 = scmp.ne.s32.totalorder %s192, %s193
      %p204 = scmp.eq.s32.totalorder %s37, 0
      %p205 = por %p203, %p204
      %p206 = scmp.ne.s32.totalorder %s192, %s193
      %p207 = scmp.eq.s32.totalorder %s38, 5
      %p208 = por %p206, %p207
      %p210 = scmp.ne.s32.totalorder %s193, %s209
      %p211 = scmp.eq.s32.totalorder %s38, 0
      %p212 = por %p210, %p211
      %s213 = ssub.s32 %s39, %s51
      %s214 = ssub.s32 %s40, %s47
      %s215 = sor.u32 %s213, %s214
      %p216 = scmp.eq.s32.totalorder %s215, 0
      %s218 = sadd.s32 %s217, 1
      %s219 = scalar_select %p216, %s217, %s218
      %p222 = pneg %p216
      %p223 = scmp.eq.s32.totalorder %s32, 5
      %p224 = por %p222, %p223
      %p225 = scmp.ne.s32.totalorder %s217, %s220
      %p226 = scmp.eq.s32.totalorder %s32, 0
      %p227 = por %p225, %p226
      %p228 = scmp.ne.s32.totalorder %s217, %s220
      %p229 = scmp.eq.s32.totalorder %s37, 5
      %p230 = por %p228, %p229
      %p231 = scmp.ne.s32.totalorder %s220, %s221
      %p232 = scmp.eq.s32.totalorder %s37, 0
      %p233 = por %p231, %p232
      %p234 = scmp.ne.s32.totalorder %s220, %s221
      %p235 = scmp.eq.s32.totalorder %s38, 5
      %p236 = por %p234, %p235
      %p238 = scmp.ne.s32.totalorder %s221, %s237
      %p239 = scmp.eq.s32.totalorder %s38, 0
      %p240 = por %p238, %p239
      %s241 = ssub.s32 %s39, %s51
      %s242 = ssub.s32 %s40, %s47
      %s243 = sor.u32 %s241, %s242
      %p244 = scmp.eq.s32.totalorder %s243, 0
      %s246 = sadd.s32 %s245, 1
      %s247 = scalar_select %p244, %s245, %s246
      %p250 = pneg %p244
      %p251 = scmp.eq.s32.totalorder %s32, 5
      %p252 = por %p250, %p251
      %p253 = scmp.ne.s32.totalorder %s245, %s248
      %p254 = scmp.eq.s32.totalorder %s32, 0
      %p255 = por %p253, %p254
      %p256 = scmp.ne.s32.totalorder %s245, %s248
      %p257 = scmp.eq.s32.totalorder %s37, 5
      %p258 = por %p256, %p257
      %p259 = scmp.ne.s32.totalorder %s248, %s249
      %p260 = scmp.eq.s32.totalorder %s37, 0
      %p261 = por %p259, %p260
      %p262 = scmp.ne.s32.totalorder %s248, %s249
      %p263 = scmp.eq.s32.totalorder %s38, 5
      %p264 = por %p262, %p263
      %p266 = scmp.ne.s32.totalorder %s249, %s265
      %p267 = scmp.eq.s32.totalorder %s38, 0
      %p268 = por %p266, %p267
      %s269 = ssub.s32 %s39, %s51
      %p270 = scmp.eq.s32.totalorder %s269, 0
      %s272 = sadd.s32 %s271, 1
      %s273 = scalar_select %p270, %s271, %s272
      %p276 = pneg %p270
      %p277 = scmp.eq.s32.totalorder %s32, 5
      %p278 = por %p276, %p277
      %p279 = scmp.ne.s32.totalorder %s271, %s274
      %p280 = scmp.eq.s32.totalorder %s32, 0
      %p281 = por %p279, %p280
      %p282 = scmp.ne.s32.totalorder %s271, %s274
      %p283 = scmp.eq.s32.totalorder %s37, 5
      %p284 = por %p282, %p283
      %p285 = scmp.ne.s32.totalorder %s274, %s275
      %p286 = scmp.eq.s32.totalorder %s37, 0
      %p287 = por %p285, %p286
      %p288 = scmp.ne.s32.totalorder %s274, %s275
      %p289 = scmp.eq.s32.totalorder %s38, 5
      %p290 = por %p288, %p289
      %p292 = scmp.ne.s32.totalorder %s275, %s291
      %p293 = scmp.eq.s32.totalorder %s38, 0
      %p294 = por %p292, %p293
      %s295 = ssub.s32 %s39, %s51
      %p296 = scmp.eq.s32.totalorder %s295, 0
      %s298 = sadd.s32 %s297, 1
      %s299 = scalar_select %p296, %s297, %s298
      %p302 = pneg %p296
      %p303 = scmp.eq.s32.totalorder %s32, 5
      %p304 = por %p302, %p303
      %p305 = scmp.ne.s32.totalorder %s297, %s300
      %p306 = scmp.eq.s32.totalorder %s32, 0
      %p307 = por %p305, %p306
      %p308 = scmp.ne.s32.totalorder %s297, %s300
      %p309 = scmp.eq.s32.totalorder %s37, 5
      %p310 = por %p308, %p309
      %p311 = scmp.ne.s32.totalorder %s300, %s301
      %p312 = scmp.eq.s32.totalorder %s37, 0
      %p313 = por %p311, %p312
      %p314 = scmp.ne.s32.totalorder %s300, %s301
      %p315 = scmp.eq.s32.totalorder %s38, 5
      %p316 = por %p314, %p315
      %p318 = scmp.ne.s32.totalorder %s301, %s317
      %p319 = scmp.eq.s32.totalorder %s38, 0
      %p320 = por %p318, %p319
      %s321 = ssub.s32 %s39, %s51
      %p322 = scmp.eq.s32.totalorder %s321, 0
      %s324 = sadd.s32 %s323, 1
      %s325 = scalar_select %p322, %s323, %s324
      %p328 = pneg %p322
      %p329 = scmp.eq.s32.totalorder %s32, 5
      %p330 = por %p328, %p329
      %p331 = scmp.ne.s32.totalorder %s323, %s326
      %p332 = scmp.eq.s32.totalorder %s32, 0
      %p333 = por %p331, %p332
      %p334 = scmp.ne.s32.totalorder %s323, %s326
      %p335 = scmp.eq.s32.totalorder %s37, 5
      %p336 = por %p334, %p335
      %p337 = scmp.ne.s32.totalorder %s326, %s327
      %p338 = scmp.eq.s32.totalorder %s37, 0
      %p339 = por %p337, %p338
      %p340 = scmp.ne.s32.totalorder %s326, %s327
      %p341 = scmp.eq.s32.totalorder %s38, 5
      %p342 = por %p340, %p341
      %p344 = scmp.ne.s32.totalorder %s327, %s343
      %p345 = scmp.eq.s32.totalorder %s38, 0
      %p346 = por %p344, %p345
      %s347 = ssub.s32 %s39, %s51
      %p348 = scmp.eq.s32.totalorder %s347, 0
      %s350 = sadd.s32 %s349, 1
      %s351 = scalar_select %p348, %s349, %s350
      %p354 = pneg %p348
      %p355 = scmp.eq.s32.totalorder %s32, 5
      %p356 = por %p354, %p355
      %p357 = scmp.ne.s32.totalorder %s349, %s352
      %p358 = scmp.eq.s32.totalorder %s32, 0
      %p359 = por %p357, %p358
      %p360 = scmp.ne.s32.totalorder %s349, %s352
      %p361 = scmp.eq.s32.totalorder %s37, 5
      %p362 = por %p360, %p361
      %p363 = scmp.ne.s32.totalorder %s352, %s353
      %p364 = scmp.eq.s32.totalorder %s37, 0
      %p365 = por %p363, %p364
      %p366 = scmp.ne.s32.totalorder %s352, %s353
      %p367 = scmp.eq.s32.totalorder %s38, 5
      %p368 = por %p366, %p367
      %p370 = scmp.ne.s32.totalorder %s353, %s369
      %p371 = scmp.eq.s32.totalorder %s38, 0
      %p372 = por %p370, %p371
      %s373 = ssub.s32 %s39, %s51
      %p374 = scmp.eq.s32.totalorder %s373, 0
      %s376 = sadd.s32 %s375, 1
      %s377 = scalar_select %p374, %s375, %s376
      %p380 = pneg %p374
      %p381 = scmp.eq.s32.totalorder %s32, 5
      %p382 = por %p380, %p381
      %p383 = scmp.ne.s32.totalorder %s375, %s378
      %p384 = scmp.eq.s32.totalorder %s32, 0
      %p385 = por %p383, %p384
      %p386 = scmp.ne.s32.totalorder %s375, %s378
      %p387 = scmp.eq.s32.totalorder %s37, 5
      %p388 = por %p386, %p387
      %p389 = scmp.ne.s32.totalorder %s378, %s379
      %p390 = scmp.eq.s32.totalorder %s37, 0
      %p391 = por %p389, %p390
      %p392 = scmp.ne.s32.totalorder %s378, %s379
      %p393 = scmp.eq.s32.totalorder %s38, 5
      %p394 = por %p392, %p393
      %p396 = scmp.ne.s32.totalorder %s379, %s395
      %p397 = scmp.eq.s32.totalorder %s38, 0
      %p398 = por %p396, %p397
      %s400 = sadd.s32 %s399, 1
      %p403 = scmp.eq.s32.totalorder %s32, 5
      %p404 = scmp.ne.s32.totalorder %s399, %s401
      %p405 = scmp.eq.s32.totalorder %s32, 0
      %p406 = por %p404, %p405
      %p407 = scmp.ne.s32.totalorder %s399, %s401
      %p408 = scmp.eq.s32.totalorder %s37, 5
      %p409 = por %p407, %p408
      %p410 = scmp.ne.s32.totalorder %s401, %s402
      %p411 = scmp.eq.s32.totalorder %s37, 0
      %p412 = por %p410, %p411
      %p413 = scmp.ne.s32.totalorder %s401, %s402
      %p414 = scmp.eq.s32.totalorder %s38, 5
      %p415 = por %p413, %p414
      %p417 = scmp.ne.s32.totalorder %s402, %s416
      %p418 = scmp.eq.s32.totalorder %s38, 0
      %p419 = por %p417, %p418
      %s421 = sadd.s32 %s420, 1
      %p424 = scmp.eq.s32.totalorder %s32, 5
      %p425 = scmp.ne.s32.totalorder %s420, %s422
      %p426 = scmp.eq.s32.totalorder %s32, 0
      %p427 = por %p425, %p426
      %p428 = scmp.ne.s32.totalorder %s420, %s422
      %p429 = scmp.eq.s32.totalorder %s37, 5
      %p430 = por %p428, %p429
      %p431 = scmp.ne.s32.totalorder %s422, %s423
      %p432 = scmp.eq.s32.totalorder %s37, 0
      %p433 = por %p431, %p432
      %p434 = scmp.ne.s32.totalorder %s422, %s423
      %p435 = scmp.eq.s32.totalorder %s38, 5
      %p436 = por %p434, %p435
      %p438 = scmp.ne.s32.totalorder %s423, %s437
      %p439 = scmp.eq.s32.totalorder %s38, 0
      %p440 = por %p438, %p439
      %s442 = sadd.s32 %s441, 1
      %p445 = scmp.eq.s32.totalorder %s32, 5
      %p446 = scmp.ne.s32.totalorder %s441, %s443
      %p447 = scmp.eq.s32.totalorder %s32, 0
      %p448 = por %p446, %p447
      %p449 = scmp.ne.s32.totalorder %s441, %s443
      %p450 = scmp.eq.s32.totalorder %s37, 5
      %p451 = por %p449, %p450
      %p452 = scmp.ne.s32.totalorder %s443, %s444
      %p453 = scmp.eq.s32.totalorder %s37, 0
      %p454 = por %p452, %p453
      %p455 = scmp.ne.s32.totalorder %s443, %s444
      %p456 = scmp.eq.s32.totalorder %s38, 5
      %p457 = por %p455, %p456
      %p459 = scmp.ne.s32.totalorder %s444, %s458
      %p460 = scmp.eq.s32.totalorder %s38, 0
      %p461 = por %p459, %p460
      %s463 = sadd.s32 %s462, 1
      %p466 = scmp.eq.s32.totalorder %s32, 5
      %p467 = scmp.ne.s32.totalorder %s462, %s464
      %p468 = scmp.eq.s32.totalorder %s32, 0
      %p469 = por %p467, %p468
      %p470 = scmp.ne.s32.totalorder %s462, %s464
      %p471 = scmp.eq.s32.totalorder %s37, 5
      %p472 = por %p470, %p471
      %p473 = scmp.ne.s32.totalorder %s464, %s465
      %p474 = scmp.eq.s32.totalorder %s37, 0
      %p475 = por %p473, %p474
      %p476 = scmp.ne.s32.totalorder %s464, %s465
      %p477 = scmp.eq.s32.totalorder %s38, 5
      %p478 = por %p476, %p477
      %p480 = scmp.ne.s32.totalorder %s465, %s479
      %p481 = scmp.eq.s32.totalorder %s38, 0
      %p482 = por %p480, %p481
      %s484 = sadd.s32 %s483, 1
      %p487 = scmp.eq.s32.totalorder %s32, 5
      %p488 = scmp.ne.s32.totalorder %s483, %s485
      %p489 = scmp.eq.s32.totalorder %s32, 0
      %p490 = por %p488, %p489
      %p491 = scmp.ne.s32.totalorder %s483, %s485
      %p492 = scmp.eq.s32.totalorder %s37, 5
      %p493 = por %p491, %p492
      %p494 = scmp.ne.s32.totalorder %s485, %s486
      %p495 = scmp.eq.s32.totalorder %s37, 0
      %p496 = por %p494, %p495
      %p497 = scmp.ne.s32.totalorder %s485, %s486
      %p498 = scmp.eq.s32.totalorder %s38, 5
      %p499 = por %p497, %p498
      %p501 = scmp.ne.s32.totalorder %s486, %s500
      %p502 = scmp.eq.s32.totalorder %s38, 0
      %p503 = por %p501, %p502
      %s505 = sadd.s32 %s504, 1
      %p508 = scmp.eq.s32.totalorder %s32, 5
      %p509 = scmp.ne.s32.totalorder %s504, %s506
      %p510 = scmp.eq.s32.totalorder %s32, 0
      %p511 = por %p509, %p510
      %p512 = scmp.ne.s32.totalorder %s504, %s506
      %p513 = scmp.eq.s32.totalorder %s37, 5
      %p514 = por %p512, %p513
      %p515 = scmp.ne.s32.totalorder %s506, %s507
      %p516 = scmp.eq.s32.totalorder %s37, 0
      %p517 = por %p515, %p516
      %p518 = scmp.ne.s32.totalorder %s506, %s507
      %p519 = scmp.eq.s32.totalorder %s38, 5
      %p520 = por %p518, %p519
      %p522 = scmp.ne.s32.totalorder %s507, %s521
      %p523 = scmp.eq.s32.totalorder %s38, 0
      %p524 = por %p522, %p523
      %s525 = ssub.s32 %s39, %s51
      %p526 = scmp.eq.s32.totalorder %s525, 0
      %s528 = sadd.s32 %s527, 1
      %s529 = scalar_select %p526, %s527, %s528
      %p532 = pneg %p526
      %p533 = scmp.eq.s32.totalorder %s32, 5
      %p534 = por %p532, %p533
      %p535 = scmp.ne.s32.totalorder %s527, %s530
      %p536 = scmp.eq.s32.totalorder %s32, 0
      %p537 = por %p535, %p536
      %p538 = scmp.ne.s32.totalorder %s527, %s530
      %p539 = scmp.eq.s32.totalorder %s37, 5
      %p540 = por %p538, %p539
      %p541 = scmp.ne.s32.totalorder %s530, %s531
      %p542 = scmp.eq.s32.totalorder %s37, 0
      %p543 = por %p541, %p542
      %p544 = scmp.ne.s32.totalorder %s530, %s531
      %p545 = scmp.eq.s32.totalorder %s38, 5
      %p546 = por %p544, %p545
      %p548 = scmp.ne.s32.totalorder %s531, %s547
      %p549 = scmp.eq.s32.totalorder %s38, 0
      %p550 = por %p548, %p549
      %p551 = scmp.le.s32.totalorder 1, %s32
      %p552 = scmp.lt.s32.totalorder %s32, 7
      %p553 = pnand %p551, %p552
      %p554 = pneg %p553
      // Predicated region
      $region9: #{ssdgnet_forward.1} parent=5 // pred_check
        _
      $region10: #{ssdgnet_forward.1} parent=5 // pred_check_branch
        %556 = sbr.rel (%p553) target = $region12
      $region11: #{ssdgnet_forward.1} parent=5 // pred_region
        %s557 = ssub.s32 %s32, 1
        // Predicated region
        $region13: #{ssdgnet_forward.1} parent=11 // pred_check
          %p558 = pneg %p65
        $region14: #{ssdgnet_forward.1} parent=11 // pred_check_branch
          %560 = sbr.rel (%p558) target = $region16
        $region15: #{ssdgnet_forward.1} parent=11 // pred_region
          _
        $region16: #{ssdgnet_forward.1} parent=11 // pred_fallthru
          _
        // Predicated region
        $region17: #{ssdgnet_forward.1} parent=11 // pred_check
          %p561 = pneg %p412
        $region18: #{ssdgnet_forward.1} parent=11 // pred_check_branch
          %563 = sbr.rel (%p561) target = $region20
        $region19: #{ssdgnet_forward.1} parent=11 // pred_region
          _
        $region20: #{ssdgnet_forward.1} parent=11 // pred_fallthru
          _
        // Predicated region
        $region21: #{ssdgnet_forward.1} parent=11 // pred_check
          %p564 = pneg %p433
        $region22: #{ssdgnet_forward.1} parent=11 // pred_check_branch
          %566 = sbr.rel (%p564) target = $region24
        $region23: #{ssdgnet_forward.1} parent=11 // pred_region
          _
        $region24: #{ssdgnet_forward.1} parent=11 // pred_fallthru
          _
        // Predicated region
        $region25: #{ssdgnet_forward.1} parent=11 // pred_check
          %p567 = pneg %p454
        $region26: #{ssdgnet_forward.1} parent=11 // pred_check_branch
          %569 = sbr.rel (%p567) target = $region28
        $region27: #{ssdgnet_forward.1} parent=11 // pred_region
          _
        $region28: #{ssdgnet_forward.1} parent=11 // pred_fallthru
          _
        // Predicated region
        $region29: #{ssdgnet_forward.1} parent=11 // pred_check
          %p570 = pneg %p475
        $region30: #{ssdgnet_forward.1} parent=11 // pred_check_branch
          %572 = sbr.rel (%p570) target = $region32
        $region31: #{ssdgnet_forward.1} parent=11 // pred_region
          _
        $region32: #{ssdgnet_forward.1} parent=11 // pred_fallthru
          _
        // Predicated region
        $region33: #{ssdgnet_forward.1} parent=11 // pred_check
          %p573 = pneg %p496
        $region34: #{ssdgnet_forward.1} parent=11 // pred_check_branch
          %575 = sbr.rel (%p573) target = $region36
        $region35: #{ssdgnet_forward.1} parent=11 // pred_region
          %s577 = ssub.s32 512, 512
          %578 = vsyncadd [#allocation9], %s577
          %s579 = sshll.u32 [#allocation8], 4
          %s580 = int_to_ptr.vmem [resolvable:$true] %s579
          %585 = dma.hbm_to_vmem [thread:$0]  %s17, 512, %s580, [#allocation9], 256, 256, 16
        $region36: #{ssdgnet_forward.1} parent=11 // pred_fallthru
          _
        // Predicated region
        $region37: #{ssdgnet_forward.1} parent=11 // pred_check
          %p586 = pneg %p517
        $region38: #{ssdgnet_forward.1} parent=11 // pred_check_branch
          %588 = sbr.rel (%p586) target = $region40
        $region39: #{ssdgnet_forward.1} parent=11 // pred_region
          %s590 = ssub.s32 256, 256
          %591 = vsyncadd [#allocation9], %s590
          %s592 = sshll.u32 [#allocation10], 4
          %s593 = int_to_ptr.vmem [resolvable:$true] %s592
          %598 = dma.hbm_to_vmem [thread:$0]  %s18, 256, %s593, [#allocation9], 128, 128, 8
        $region40: #{ssdgnet_forward.1} parent=11 // pred_fallthru
          _
      $region12: #{ssdgnet_forward.1} parent=5 // pred_fallthru
        _
      %p599 = scmp.lt.s32.totalorder %s32, 6
      // Predicated region
      $region41: #{ssdgnet_forward.1} parent=5 // pred_check
        %p600 = pneg %p599
      $region42: #{ssdgnet_forward.1} parent=5 // pred_check_branch
        %602 = sbr.rel (%p600) target = $region44
      $region43: #{ssdgnet_forward.1} parent=5 // pred_region
        // Predicated region
        $region45: #{ssdgnet_forward.1} parent=43 // pred_check
          %p603 = pneg %p87
        $region46: #{ssdgnet_forward.1} parent=43 // pred_check_branch
          %605 = sbr.rel (%p603) target = $region48
        $region47: #{ssdgnet_forward.1} parent=43 // pred_region
          %s606 = sand.u32 %s77, 1
          %s607 = scalar_lea.sflag [#allocation4], %s606
          %s608 = sand.u32 %s77, 1
          %s609 = smul.addr %s608, 16
          %s610 = scalar_lea.vmem [#allocation3], %s609
          %s612 = ssub.s32 256, 256
          %613 = vsyncadd %s607, %s612
          %s614 = smul.addr %s40, 2
          %s615 = smul.addr %s39, 6
          %s616 = sadd.s32 %s614, %s615
          %s617 = smul.addr %s616, 128
          %s618 = scalar_lea.hbm %s1, %s617
          %s619 = sshll.u32 %s610, 4
          %s620 = int_to_ptr.vmem [resolvable:$true] %s619
          %625 = dma.hbm_to_vmem [thread:$0]  %s618, 256, %s620, %s607, 128, 128, 8
        $region48: #{ssdgnet_forward.1} parent=43 // pred_fallthru
          _
        // Predicated region
        $region49: #{ssdgnet_forward.1} parent=43 // pred_check
          %p626 = pneg %p115
        $region50: #{ssdgnet_forward.1} parent=43 // pred_check_branch
          %628 = sbr.rel (%p626) target = $region52
        $region51: #{ssdgnet_forward.1} parent=43 // pred_region
          %p629 = scmp.lt.s32.totalorder %s39, 1
          %s630 = scalar_select %p629, %s39, 1
          %p631 = scmp.lt.s32.totalorder %s40, 2
          %s632 = scalar_select %p631, %s40, 2
          %s633 = smul.addr %s632, 18
          %s634 = smul.addr %s630, 54
          %s635 = sadd.s32 %s633, %s634
          %s636 = smul.addr %s635, 8
          %s637 = scalar_lea.vmem %s2, %s636
        $region52: #{ssdgnet_forward.1} parent=43 // pred_fallthru
          _
        // Predicated region
        $region53: #{ssdgnet_forward.1} parent=43 // pred_check
          %p638 = pneg %p143
        $region54: #{ssdgnet_forward.1} parent=43 // pred_check_branch
          %640 = sbr.rel (%p638) target = $region56
        $region55: #{ssdgnet_forward.1} parent=43 // pred_region
          %s641 = sand.u32 %s32, 1
          %s642 = scalar_lea.sflag [#allocation6], %s641
          %s643 = sand.u32 %s133, 1
          %s644 = smul.addr %s643, 16
          %s645 = scalar_lea.vmem [#allocation5], %s644
          %s647 = ssub.s32 256, 256
          %648 = vsyncadd %s642, %s647
          %s649 = smul.addr %s40, 2
          %s650 = smul.addr %s39, 6
          %s651 = sadd.s32 %s649, %s650
          %s652 = smul.addr %s651, 128
          %s653 = scalar_lea.hbm %s3, %s652
          %s654 = sshll.u32 %s645, 4
          %s655 = int_to_ptr.vmem [resolvable:$true] %s654
          %660 = dma.hbm_to_vmem [thread:$0]  %s653, 256, %s655, %s642, 128, 128, 8
        $region56: #{ssdgnet_forward.1} parent=43 // pred_fallthru
          _
        // Predicated region
        $region57: #{ssdgnet_forward.1} parent=43 // pred_check
          %p661 = pneg %p171
        $region58: #{ssdgnet_forward.1} parent=43 // pred_check_branch
          %663 = sbr.rel (%p661) target = $region60
        $region59: #{ssdgnet_forward.1} parent=43 // pred_region
          %p664 = scmp.lt.s32.totalorder %s39, 1
          %s665 = scalar_select %p664, %s39, 1
          %p666 = scmp.lt.s32.totalorder %s40, 2
          %s667 = scalar_select %p666, %s40, 2
          %s668 = smul.addr %s667, 4
          %s669 = smul.addr %s665, 12
          %s670 = sadd.s32 %s668, %s669
          %s671 = smul.addr %s670, 8
          %s672 = scalar_lea.vmem %s4, %s671
        $region60: #{ssdgnet_forward.1} parent=43 // pred_fallthru
          _
        // Predicated region
        $region61: #{ssdgnet_forward.1} parent=43 // pred_check
          %p673 = pneg %p199
        $region62: #{ssdgnet_forward.1} parent=43 // pred_check_branch
          %675 = sbr.rel (%p673) target = $region64
        $region63: #{ssdgnet_forward.1} parent=43 // pred_region
          %p676 = scmp.lt.s32.totalorder %s39, 1
          %s677 = scalar_select %p676, %s39, 1
          %p678 = scmp.lt.s32.totalorder %s40, 2
          %s679 = scalar_select %p678, %s40, 2
          %s680 = smul.addr %s679, 2
          %s681 = smul.addr %s677, 6
          %s682 = sadd.s32 %s680, %s681
          %s683 = smul.addr %s682, 8
          %s684 = scalar_lea.vmem %s5, %s683
        $region64: #{ssdgnet_forward.1} parent=43 // pred_fallthru
          _
        // Predicated region
        $region65: #{ssdgnet_forward.1} parent=43 // pred_check
          %p685 = pneg %p227
        $region66: #{ssdgnet_forward.1} parent=43 // pred_check_branch
          %687 = sbr.rel (%p685) target = $region68
        $region67: #{ssdgnet_forward.1} parent=43 // pred_region
          %p688 = scmp.lt.s32.totalorder %s39, 1
          %s689 = scalar_select %p688, %s39, 1
          %p690 = scmp.lt.s32.totalorder %s40, 2
          %s691 = scalar_select %p690, %s40, 2
          %s692 = smul.addr %s691, 4
          %s693 = smul.addr %s689, 12
          %s694 = sadd.s32 %s692, %s693
          %s695 = smul.addr %s694, 8
          %s696 = scalar_lea.vmem %s6, %s695
        $region68: #{ssdgnet_forward.1} parent=43 // pred_fallthru
          _
        // Predicated region
        $region69: #{ssdgnet_forward.1} parent=43 // pred_check
          %p697 = pneg %p255
        $region70: #{ssdgnet_forward.1} parent=43 // pred_check_branch
          %699 = sbr.rel (%p697) target = $region72
        $region71: #{ssdgnet_forward.1} parent=43 // pred_region
          %s700 = sand.u32 %s32, 1
          %s701 = scalar_lea.sflag [#allocation6], %s700
          %s702 = sand.u32 %s245, 1
          %s703 = smul.addr %s702, 32
          %s704 = scalar_lea.vmem [#allocation7], %s703
          %s706 = ssub.s32 512, 512
          %707 = vsyncadd %s701, %s706
          %s708 = smul.addr %s40, 4
          %s709 = smul.addr %s39, 12
          %s710 = sadd.s32 %s708, %s709
          %s711 = smul.addr %s710, 128
          %s712 = scalar_lea.hbm %s7, %s711
          %s713 = sshll.u32 %s704, 4
          %s714 = int_to_ptr.vmem [resolvable:$true] %s713
          %719 = dma.hbm_to_vmem [thread:$0]  %s712, 512, %s714, %s701, 256, 256, 16
        $region72: #{ssdgnet_forward.1} parent=43 // pred_fallthru
          _
        // Predicated region
        $region73: #{ssdgnet_forward.1} parent=43 // pred_check
          %p720 = pneg %p281
        $region74: #{ssdgnet_forward.1} parent=43 // pred_check_branch
          %722 = sbr.rel (%p720) target = $region76
        $region75: #{ssdgnet_forward.1} parent=43 // pred_region
          %p723 = scmp.lt.s32.totalorder %s39, 1
          %s724 = scalar_select %p723, %s39, 1
          %s725 = smul.addr %s724, 2
          %s726 = smul.addr %s725, 8
          %s727 = scalar_lea.vmem %s8, %s726
        $region76: #{ssdgnet_forward.1} parent=43 // pred_fallthru
          _
        // Predicated region
        $region77: #{ssdgnet_forward.1} parent=43 // pred_check
          %p728 = pneg %p307
        $region78: #{ssdgnet_forward.1} parent=43 // pred_check_branch
          %730 = sbr.rel (%p728) target = $region80
        $region79: #{ssdgnet_forward.1} parent=43 // pred_region
          %p731 = scmp.lt.s32.totalorder %s39, 1
          %s732 = scalar_select %p731, %s39, 1
          %s733 = smul.addr %s732, 2
          %s734 = smul.addr %s733, 8
          %s735 = scalar_lea.vmem %s9, %s734
        $region80: #{ssdgnet_forward.1} parent=43 // pred_fallthru
          _
        // Predicated region
        $region81: #{ssdgnet_forward.1} parent=43 // pred_check
          %p736 = pneg %p333
        $region82: #{ssdgnet_forward.1} parent=43 // pred_check_branch
          %738 = sbr.rel (%p736) target = $region84
        $region83: #{ssdgnet_forward.1} parent=43 // pred_region
          %p739 = scmp.lt.s32.totalorder %s39, 1
          %s740 = scalar_select %p739, %s39, 1
          %s741 = smul.addr %s740, 2
          %s742 = smul.addr %s741, 8
          %s743 = scalar_lea.vmem %s10, %s742
        $region84: #{ssdgnet_forward.1} parent=43 // pred_fallthru
          _
        // Predicated region
        $region85: #{ssdgnet_forward.1} parent=43 // pred_check
          %p744 = pneg %p359
        $region86: #{ssdgnet_forward.1} parent=43 // pred_check_branch
          %746 = sbr.rel (%p744) target = $region88
        $region87: #{ssdgnet_forward.1} parent=43 // pred_region
          %p747 = scmp.lt.s32.totalorder %s39, 1
          %s748 = scalar_select %p747, %s39, 1
          %s749 = smul.addr %s748, 8
          %s750 = scalar_lea.vmem %s11, %s749
        $region88: #{ssdgnet_forward.1} parent=43 // pred_fallthru
          _
        // Predicated region
        $region89: #{ssdgnet_forward.1} parent=43 // pred_check
          %p751 = pneg %p385
        $region90: #{ssdgnet_forward.1} parent=43 // pred_check_branch
          %753 = sbr.rel (%p751) target = $region92
        $region91: #{ssdgnet_forward.1} parent=43 // pred_region
          %p754 = scmp.lt.s32.totalorder %s39, 1
          %s755 = scalar_select %p754, %s39, 1
          %s756 = scalar_lea.vmem %s12, %s755
        $region92: #{ssdgnet_forward.1} parent=43 // pred_fallthru
          _
      $region44: #{ssdgnet_forward.1} parent=5 // pred_fallthru
        _
      %p757 = scmp.le.s32.totalorder 1, %s32
      %p758 = scmp.lt.s32.totalorder %s32, 7
      %p759 = pnand %p757, %p758
      %p760 = pneg %p759
      // Predicated region
      $region93: #{ssdgnet_forward.1} parent=5 // pred_check
        _
      $region94: #{ssdgnet_forward.1} parent=5 // pred_check_branch
        %762 = sbr.rel (%p759) target = $region96
      $region95: #{ssdgnet_forward.1} parent=5 // pred_region
        %s763 = ssub.s32 %s32, 1
        %s764 = sand.u32 %s80, 1
        %s765 = scalar_lea.sflag [#allocation4], %s764
        %s766 = sand.u32 %s80, 1
        %s767 = smul.addr %s766, 16
        %s768 = scalar_lea.vmem [#allocation3], %s767
        // Predicated region
        $region97: #{ssdgnet_forward.1} parent=95 // pred_check
          %p769 = pneg %p93
        $region98: #{ssdgnet_forward.1} parent=95 // pred_check_branch
          %771 = sbr.rel (%p769) target = $region100
        $region99: #{ssdgnet_forward.1} parent=95 // pred_region
          %772 = dma.done %s765, 256
        $region100: #{ssdgnet_forward.1} parent=95 // pred_fallthru
          _
        %s773 = sand.u32 %s37, 1
        %s774 = scalar_lea.sflag [#allocation6], %s773
        %s775 = sand.u32 %s136, 1
        %s776 = smul.addr %s775, 16
        %s777 = scalar_lea.vmem [#allocation5], %s776
        // Predicated region
        $region101: #{ssdgnet_forward.1} parent=95 // pred_check
          %p778 = pneg %p149
        $region102: #{ssdgnet_forward.1} parent=95 // pred_check_branch
          %780 = sbr.rel (%p778) target = $region104
        $region103: #{ssdgnet_forward.1} parent=95 // pred_region
          %781 = dma.done %s774, 256
        $region104: #{ssdgnet_forward.1} parent=95 // pred_fallthru
          _
        %s782 = sand.u32 %s37, 1
        %s783 = scalar_lea.sflag [#allocation6], %s782
        %s784 = sand.u32 %s248, 1
        %s785 = smul.addr %s784, 32
        %s786 = scalar_lea.vmem [#allocation7], %s785
        // Predicated region
        $region105: #{ssdgnet_forward.1} parent=95 // pred_check
          %p787 = pneg %p261
        $region106: #{ssdgnet_forward.1} parent=95 // pred_check_branch
          %789 = sbr.rel (%p787) target = $region108
        $region107: #{ssdgnet_forward.1} parent=95 // pred_region
          %790 = dma.done %s783, 512
        $region108: #{ssdgnet_forward.1} parent=95 // pred_fallthru
          _
        // Predicated region
        $region109: #{ssdgnet_forward.1} parent=95 // pred_check
          %p791 = pneg %p496
        $region110: #{ssdgnet_forward.1} parent=95 // pred_check_branch
          %793 = sbr.rel (%p791) target = $region112
        $region111: #{ssdgnet_forward.1} parent=95 // pred_region
          %794 = dma.done [#allocation9], 512
        $region112: #{ssdgnet_forward.1} parent=95 // pred_fallthru
          _
        // Predicated region
        $region113: #{ssdgnet_forward.1} parent=95 // pred_check
          %p795 = pneg %p517
        $region114: #{ssdgnet_forward.1} parent=95 // pred_check_branch
          %797 = sbr.rel (%p795) target = $region116
        $region115: #{ssdgnet_forward.1} parent=95 // pred_region
          %798 = dma.done [#allocation9], 256
        $region116: #{ssdgnet_forward.1} parent=95 // pred_fallthru
          _
        %p799 = pneg %p65
        %p800 = pneg %p62
        %s801 = sand.u32 %s80, 1
        %s802 = scalar_lea.sflag [#allocation4], %s801
        %s803 = sand.u32 %s80, 1
        %s804 = smul.addr %s803, 16
        %s805 = scalar_lea.vmem [#allocation3], %s804
        %p806 = pneg %p93
        %p807 = pneg %p90
        %p808 = scmp.lt.s32.totalorder %s41, 1
        %s809 = scalar_select %p808, %s41, 1
        %p810 = scmp.lt.s32.totalorder %s42, 2
        %s811 = scalar_select %p810, %s42, 2
        %s812 = smul.addr %s811, 18
        %s813 = smul.addr %s809, 54
        %s814 = sadd.s32 %s812, %s813
        %s815 = smul.addr %s814, 8
        %s816 = scalar_lea.vmem %s2, %s815
        %p817 = pneg %p121
        %p818 = pneg %p118
        %s819 = sand.u32 %s37, 1
        %s820 = scalar_lea.sflag [#allocation6], %s819
        %s821 = sand.u32 %s136, 1
        %s822 = smul.addr %s821, 16
        %s823 = scalar_lea.vmem [#allocation5], %s822
        %p824 = pneg %p149
        %p825 = pneg %p146
        %p826 = scmp.lt.s32.totalorder %s41, 1
        %s827 = scalar_select %p826, %s41, 1
        %p828 = scmp.lt.s32.totalorder %s42, 2
        %s829 = scalar_select %p828, %s42, 2
        %s830 = smul.addr %s829, 4
        %s831 = smul.addr %s827, 12
        %s832 = sadd.s32 %s830, %s831
        %s833 = smul.addr %s832, 8
        %s834 = scalar_lea.vmem %s4, %s833
        %p835 = pneg %p177
        %p836 = pneg %p174
        %p837 = scmp.lt.s32.totalorder %s41, 1
        %s838 = scalar_select %p837, %s41, 1
        %p839 = scmp.lt.s32.totalorder %s42, 2
        %s840 = scalar_select %p839, %s42, 2
        %s841 = smul.addr %s840, 2
        %s842 = smul.addr %s838, 6
        %s843 = sadd.s32 %s841, %s842
        %s844 = smul.addr %s843, 8
        %s845 = scalar_lea.vmem %s5, %s844
        %p846 = pneg %p205
        %p847 = pneg %p202
        %p848 = scmp.lt.s32.totalorder %s41, 1
        %s849 = scalar_select %p848, %s41, 1
        %p850 = scmp.lt.s32.totalorder %s42, 2
        %s851 = scalar_select %p850, %s42, 2
        %s852 = smul.addr %s851, 4
        %s853 = smul.addr %s849, 12
        %s854 = sadd.s32 %s852, %s853
        %s855 = smul.addr %s854, 8
        %s856 = scalar_lea.vmem %s6, %s855
        %p857 = pneg %p233
        %p858 = pneg %p230
        %s859 = sand.u32 %s37, 1
        %s860 = scalar_lea.sflag [#allocation6], %s859
        %s861 = sand.u32 %s248, 1
        %s862 = smul.addr %s861, 32
        %s863 = scalar_lea.vmem [#allocation7], %s862
        %p864 = pneg %p261
        %p865 = pneg %p258
        %p866 = scmp.lt.s32.totalorder %s41, 1
        %s867 = scalar_select %p866, %s41, 1
        %s868 = smul.addr %s867, 2
        %s869 = smul.addr %s868, 8
        %s870 = scalar_lea.vmem %s8, %s869
        %p871 = pneg %p287
        %p872 = pneg %p284
        %p873 = scmp.lt.s32.totalorder %s41, 1
        %s874 = scalar_select %p873, %s41, 1
        %s875 = smul.addr %s874, 2
        %s876 = smul.addr %s875, 8
        %s877 = scalar_lea.vmem %s9, %s876
        %p878 = pneg %p313
        %p879 = pneg %p310
        %p880 = scmp.lt.s32.totalorder %s41, 1
        %s881 = scalar_select %p880, %s41, 1
        %s882 = smul.addr %s881, 2
        %s883 = smul.addr %s882, 8
        %s884 = scalar_lea.vmem %s10, %s883
        %p885 = pneg %p339
        %p886 = pneg %p336
        %p887 = scmp.lt.s32.totalorder %s41, 1
        %s888 = scalar_select %p887, %s41, 1
        %s889 = smul.addr %s888, 8
        %s890 = scalar_lea.vmem %s11, %s889
        %p891 = pneg %p365
        %p892 = pneg %p362
        %p893 = scmp.lt.s32.totalorder %s41, 1
        %s894 = scalar_select %p893, %s41, 1
        %s895 = scalar_lea.vmem %s12, %s894
        %p896 = pneg %p391
        %p897 = pneg %p388
        %p898 = pneg %p412
        %p899 = pneg %p409
        %p900 = pneg %p433
        %p901 = pneg %p430
        %p902 = pneg %p454
        %p903 = pneg %p451
        %p904 = pneg %p475
        %p905 = pneg %p472
        %p906 = pneg %p496
        %p907 = pneg %p493
        %p908 = pneg %p517
        %p909 = pneg %p514
        %p910 = pneg %p543
        %p911 = pneg %p540
        %p912 = scmp.lt.s32.totalorder %s41, 1
        %s913 = scalar_select %p912, %s41, 1
        %s914 = smul.addr %s913, 2
        %s915 = smul.addr %s914, 8
        %s916 = scalar_lea.vmem %s19, %s915
        %p917 = scmp.lt.s32.totalorder %s41, 1
        %s918 = scalar_select %p917, %s41, 1
        %p919 = scmp.lt.s32.totalorder %s42, 2
        %s920 = scalar_select %p919, %s42, 2
        %s921 = smul.addr %s920, 18
        %s922 = smul.addr %s918, 54
        %s923 = sadd.s32 %s921, %s922
        %s924 = smul.addr %s923, 8
        %s925 = scalar_lea.vmem %s2, %s924
        %p926 = scmp.lt.s32.totalorder %s41, 1
        %s927 = scalar_select %p926, %s41, 1
        %p928 = scmp.lt.s32.totalorder %s42, 2
        %s929 = scalar_select %p928, %s42, 2
        %s930 = smul.addr %s929, 4
        %s931 = smul.addr %s927, 12
        %s932 = sadd.s32 %s930, %s931
        %s933 = smul.addr %s932, 8
        %s934 = scalar_lea.vmem %s4, %s933
        %p935 = scmp.lt.s32.totalorder %s41, 1
        %s936 = scalar_select %p935, %s41, 1
        %p937 = scmp.lt.s32.totalorder %s42, 2
        %s938 = scalar_select %p937, %s42, 2
        %s939 = smul.addr %s938, 2
        %s940 = smul.addr %s936, 6
        %s941 = sadd.s32 %s939, %s940
        %s942 = smul.addr %s941, 8
        %s943 = scalar_lea.vmem %s5, %s942
        %p944 = scmp.lt.s32.totalorder %s41, 1
        %s945 = scalar_select %p944, %s41, 1
        %p946 = scmp.lt.s32.totalorder %s42, 2
        %s947 = scalar_select %p946, %s42, 2
        %s948 = smul.addr %s947, 4
        %s949 = smul.addr %s945, 12
        %s950 = sadd.s32 %s948, %s949
        %s951 = smul.addr %s950, 8
        %s952 = scalar_lea.vmem %s6, %s951
        %p953 = scmp.lt.s32.totalorder %s41, 1
        %s954 = scalar_select %p953, %s41, 1
        %s955 = smul.addr %s954, 2
        %s956 = smul.addr %s955, 8
        %s957 = scalar_lea.vmem %s8, %s956
        %p958 = scmp.lt.s32.totalorder %s41, 1
        %s959 = scalar_select %p958, %s41, 1
        %s960 = smul.addr %s959, 2
        %s961 = smul.addr %s960, 8
        %s962 = scalar_lea.vmem %s9, %s961
        %p963 = scmp.lt.s32.totalorder %s41, 1
        %s964 = scalar_select %p963, %s41, 1
        %s965 = smul.addr %s964, 2
        %s966 = smul.addr %s965, 8
        %s967 = scalar_lea.vmem %s10, %s966
        %p968 = scmp.lt.s32.totalorder %s41, 1
        %s969 = scalar_select %p968, %s41, 1
        %s970 = smul.addr %s969, 8
        %s971 = scalar_lea.vmem %s11, %s970
        %p972 = scmp.lt.s32.totalorder %s41, 1
        %s973 = scalar_select %p972, %s41, 1
        %s974 = scalar_lea.vmem %s12, %s973
        %p975 = scmp.lt.s32.totalorder %s41, 1
        %s976 = scalar_select %p975, %s41, 1
        %s977 = smul.addr %s976, 2
        %s978 = smul.addr %s977, 8
        %s979 = scalar_lea.vmem %s19, %s978
        %p980 = scmp.eq.s32.totalorder %s42, 0
        // Predicated region
        $region117: #{ssdgnet_forward.1} parent=95 // pred_check
          %p981 = pneg %p980
        $region118: #{ssdgnet_forward.1} parent=95 // pred_check_branch
          %983 = sbr.rel (%p981) target = $region120
        $region119: #{ssdgnet_forward.1} parent=95 // pred_region
          %v984 = vld [vmem:[%s0] sm:$0xff]
          %v985 = vld [vmem:[%s0 + $0x8] sm:$0xff]
          %v986 = vld [vmem:[%s0 + $0x10] sm:$0xff]
          %v987 = vld [vmem:[%s0 + $0x18] sm:$0xff]
          %988 = vst [vmem:[#allocation2] sm:$0xff] %v984
          %989 = vst [vmem:[#allocation2 + $0x8] sm:$0xff] %v985
          %990 = vst [vmem:[#allocation2 + $0x10] sm:$0xff] %v986
          %991 = vst [vmem:[#allocation2 + $0x18] sm:$0xff] %v987
        $region120: #{ssdgnet_forward.1} parent=95 // pred_fallthru
          _
        %v992 = vld [vmem:[#allocation8] sm:$0xff]
        %v993 = vld [vmem:[#allocation8 + $0x8] sm:$0xff]
        %v994 = vld [vmem:[#allocation8 + $0x10] sm:$0x1]
        %v995 = vld [vmem:[#allocation8 + $0x18] sm:$0x1]
        %v996 = vld [vmem:[#allocation2] sm:$0xff]
        %v997 = vld [vmem:[#allocation2 + $0x8] sm:$0xff]
        %v998 = vld [vmem:[#allocation2 + $0x10] sm:$0xff]
        %v999 = vld [vmem:[#allocation2 + $0x18] sm:$0xff]
        %1000 = vrot.lane.b32.xlu0 %v996, 17
        %v1001 = vpop.permute.xlu0 %1000
        %1002 = vrot.lane.b32.xlu0 %v998, 17
        %v1003 = vpop.permute.xlu0 %1002
        %1004 = vrot.lane.b32.xlu0 %v997, 17
        %v1005 = vpop.permute.xlu0 %1004
        %1006 = vrot.lane.b32.xlu0 %v999, 17
        %v1007 = vpop.permute.xlu0 %1006
        %v1008 = vlaneseq
        %v1009 = vand.u32 %v1008, 127
        %vm1010 = vcmp.lt.s32.totalorder %v1009, 17
        %v1011 = vsel %vm1010, %v1001, %v1005
        %v1012 = vsel %vm1010, %v1003, %v1007
        %v1013 = vsel %vm1010, %v1005, %v1001
        %v1014 = vsel %vm1010, %v1007, %v1003
        %v1015 = vlaneseq
        %v1016 = vshrl.u32 %v1015, 7
        %v1017 = vsub.s32 0, %v1016
        %v1018 = vrot.slane %v992, %v1017
        %v1019 = vlaneseq
        %v1020 = vshrl.u32 %v1019, 7
        %v1021 = vsub.s32 0, %v1020
        %v1022 = vrot.slane %v993, %v1021
        %v1023 = vmul.f32 %v1013, %v1018
        %v1024 = vmul.f32 %v1011, %v1022
        %v1025 = vmul.f32 %v1014, %v1018
        %v1026 = vmul.f32 %v1012, %v1022
        %1027 = vrot.lane.b32.xlu0 %v996, 16
        %v1028 = vpop.permute.xlu0 %1027
        %1029 = vrot.lane.b32.xlu0 %v998, 16
        %v1030 = vpop.permute.xlu0 %1029
        %1031 = vrot.lane.b32.xlu0 %v997, 16
        %v1032 = vpop.permute.xlu0 %1031
        %1033 = vrot.lane.b32.xlu0 %v999, 16
        %v1034 = vpop.permute.xlu0 %1033
        %vm1035 = vcmp.lt.s32.totalorder %v1009, 16
        %v1036 = vsel %vm1035, %v1028, %v1032
        %v1037 = vsel %vm1035, %v1030, %v1034
        %v1038 = vsel %vm1035, %v1032, %v1028
        %v1039 = vsel %vm1035, %v1034, %v1030
        %v1040 = vlaneseq
        %v1041 = vshrl.u32 %v1040, 7
        %v1042 = vsub.s32 1, %v1041
        %v1043 = vrot.slane %v992, %v1042
        %v1044 = vlaneseq
        %v1045 = vshrl.u32 %v1044, 7
        %v1046 = vsub.s32 1, %v1045
        %v1047 = vrot.slane %v993, %v1046
        %v1048 = vmul.f32 %v1038, %v1043
        %v1049 = vmul.f32 %v1036, %v1047
        %v1050 = vmul.f32 %v1039, %v1043
        %v1051 = vmul.f32 %v1037, %v1047
        %1052 = vrot.lane.b32.xlu0 %v996, 15
        %v1053 = vpop.permute.xlu0 %1052
        %1054 = vrot.lane.b32.xlu0 %v998, 15
        %v1055 = vpop.permute.xlu0 %1054
        %1056 = vrot.lane.b32.xlu0 %v997, 15
        %v1057 = vpop.permute.xlu0 %1056
        %1058 = vrot.lane.b32.xlu0 %v999, 15
        %v1059 = vpop.permute.xlu0 %1058
        %vm1060 = vcmp.lt.s32.totalorder %v1009, 15
        %v1061 = vsel %vm1060, %v1053, %v1057
        %v1062 = vsel %vm1060, %v1055, %v1059
        %v1063 = vsel %vm1060, %v1057, %v1053
        %v1064 = vsel %vm1060, %v1059, %v1055
        %v1065 = vlaneseq
        %v1066 = vshrl.u32 %v1065, 7
        %v1067 = vsub.s32 2, %v1066
        %v1068 = vrot.slane %v992, %v1067
        %v1069 = vlaneseq
        %v1070 = vshrl.u32 %v1069, 7
        %v1071 = vsub.s32 2, %v1070
        %v1072 = vrot.slane %v993, %v1071
        %v1073 = vmul.f32 %v1063, %v1068
        %v1074 = vmul.f32 %v1061, %v1072
        %v1075 = vmul.f32 %v1064, %v1068
        %v1076 = vmul.f32 %v1062, %v1072
        %1077 = vrot.lane.b32.xlu0 %v996, 1
        %v1078 = vpop.permute.xlu0 %1077
        %1079 = vrot.lane.b32.xlu0 %v998, 1
        %v1080 = vpop.permute.xlu0 %1079
        %1081 = vrot.lane.b32.xlu0 %v997, 1
        %v1082 = vpop.permute.xlu0 %1081
        %1083 = vrot.lane.b32.xlu0 %v999, 1
        %v1084 = vpop.permute.xlu0 %1083
        %vm1085 = vcmp.lt.s32.totalorder %v1009, 1
        %v1086 = vsel %vm1085, %v1078, %v1082
        %v1087 = vsel %vm1085, %v1080, %v1084
        %v1088 = vsel %vm1085, %v1082, %v1078
        %v1089 = vsel %vm1085, %v1084, %v1080
        %v1090 = vlaneseq
        %v1091 = vshrl.u32 %v1090, 7
        %v1092 = vsub.s32 3, %v1091
        %v1093 = vrot.slane %v992, %v1092
        %v1094 = vlaneseq
        %v1095 = vshrl.u32 %v1094, 7
        %v1096 = vsub.s32 3, %v1095
        %v1097 = vrot.slane %v993, %v1096
        %v1098 = vmul.f32 %v1088, %v1093
        %v1099 = vmul.f32 %v1086, %v1097
        %v1100 = vmul.f32 %v1089, %v1093
        %v1101 = vmul.f32 %v1087, %v1097
        %v1102 = vlaneseq
        %v1103 = vshrl.u32 %v1102, 7
        %v1104 = vsub.s32 4, %v1103
        %v1105 = vrot.slane %v992, %v1104
        %v1106 = vlaneseq
        %v1107 = vshrl.u32 %v1106, 7
        %v1108 = vsub.s32 4, %v1107
        %v1109 = vrot.slane %v993, %v1108
        %v1110 = vmul.f32 %v996, %v1105
        %v1111 = vmul.f32 %v997, %v1109
        %v1112 = vmul.f32 %v998, %v1105
        %v1113 = vmul.f32 %v999, %v1109
        %1114 = vrot.lane.b32.xlu0 %v996, 127
        %v1115 = vpop.permute.xlu0 %1114
        %1116 = vrot.lane.b32.xlu0 %v998, 127
        %v1117 = vpop.permute.xlu0 %1116
        %1118 = vrot.lane.b32.xlu0 %v997, 127
        %v1119 = vpop.permute.xlu0 %1118
        %1120 = vrot.lane.b32.xlu0 %v999, 127
        %v1121 = vpop.permute.xlu0 %1120
        %vm1122 = vcmp.lt.s32.totalorder %v1009, 127
        %v1123 = vsel %vm1122, %v1115, %v1119
        %v1124 = vsel %vm1122, %v1117, %v1121
        %v1125 = vsel %vm1122, %v1119, %v1115
        %v1126 = vsel %vm1122, %v1121, %v1117
        %v1127 = vlaneseq
        %v1128 = vshrl.u32 %v1127, 7
        %v1129 = vsub.s32 5, %v1128
        %v1130 = vrot.slane %v992, %v1129
        %v1131 = vlaneseq
        %v1132 = vshrl.u32 %v1131, 7
        %v1133 = vsub.s32 5, %v1132
        %v1134 = vrot.slane %v993, %v1133
        %v1135 = vmul.f32 %v1123, %v1130
        %v1136 = vmul.f32 %v1125, %v1134
        %v1137 = vmul.f32 %v1124, %v1130
        %v1138 = vmul.f32 %v1126, %v1134
        %1139 = vrot.lane.b32.xlu0 %v996, 113
        %v1140 = vpop.permute.xlu0 %1139
        %1141 = vrot.lane.b32.xlu0 %v998, 113
        %v1142 = vpop.permute.xlu0 %1141
        %1143 = vrot.lane.b32.xlu0 %v997, 113
        %v1144 = vpop.permute.xlu0 %1143
        %1145 = vrot.lane.b32.xlu0 %v999, 113
        %v1146 = vpop.permute.xlu0 %1145
        %vm1147 = vcmp.lt.s32.totalorder %v1009, 113
        %v1148 = vsel %vm1147, %v1140, %v1144
        %v1149 = vsel %vm1147, %v1142, %v1146
        %v1150 = vsel %vm1147, %v1144, %v1140
        %v1151 = vsel %vm1147, %v1146, %v1142
        %v1152 = vlaneseq
        %v1153 = vshrl.u32 %v1152, 7
        %v1154 = vsub.s32 6, %v1153
        %v1155 = vrot.slane %v992, %v1154
        %v1156 = vlaneseq
        %v1157 = vshrl.u32 %v1156, 7
        %v1158 = vsub.s32 6, %v1157
        %v1159 = vrot.slane %v993, %v1158
        %v1160 = vmul.f32 %v1148, %v1155
        %v1161 = vmul.f32 %v1150, %v1159
        %v1162 = vmul.f32 %v1149, %v1155
        %v1163 = vmul.f32 %v1151, %v1159
        %1164 = vrot.lane.b32.xlu0 %v996, 112
        %v1165 = vpop.permute.xlu0 %1164
        %1166 = vrot.lane.b32.xlu0 %v998, 112
        %v1167 = vpop.permute.xlu0 %1166
        %1168 = vrot.lane.b32.xlu0 %v997, 112
        %v1169 = vpop.permute.xlu0 %1168
        %1170 = vrot.lane.b32.xlu0 %v999, 112
        %v1171 = vpop.permute.xlu0 %1170
        %vm1172 = vcmp.lt.s32.totalorder %v1009, 112
        %v1173 = vsel %vm1172, %v1165, %v1169
        %v1174 = vsel %vm1172, %v1167, %v1171
        %v1175 = vsel %vm1172, %v1169, %v1165
        %v1176 = vsel %vm1172, %v1171, %v1167
        %v1177 = vlaneseq
        %v1178 = vshrl.u32 %v1177, 7
        %v1179 = vsub.s32 7, %v1178
        %v1180 = vrot.slane %v992, %v1179
        %v1181 = vlaneseq
        %v1182 = vshrl.u32 %v1181, 7
        %v1183 = vsub.s32 7, %v1182
        %v1184 = vrot.slane %v993, %v1183
        %v1185 = vmul.f32 %v1173, %v1180
        %v1186 = vmul.f32 %v1175, %v1184
        %v1187 = vmul.f32 %v1174, %v1180
        %v1188 = vmul.f32 %v1176, %v1184
        %1189 = vrot.lane.b32.xlu0 %v996, 111
        %v1190 = vpop.permute.xlu0 %1189
        %1191 = vrot.lane.b32.xlu0 %v998, 111
        %v1192 = vpop.permute.xlu0 %1191
        %1193 = vrot.lane.b32.xlu0 %v997, 111
        %v1194 = vpop.permute.xlu0 %1193
        %1195 = vrot.lane.b32.xlu0 %v999, 111
        %v1196 = vpop.permute.xlu0 %1195
        %vm1197 = vcmp.lt.s32.totalorder %v1009, 111
        %v1198 = vsel %vm1197, %v1190, %v1194
        %v1199 = vsel %vm1197, %v1192, %v1196
        %v1200 = vsel %vm1197, %v1194, %v1190
        %v1201 = vsel %vm1197, %v1196, %v1192
        %v1202 = vlaneseq
        %v1203 = vshrl.u32 %v1202, 7
        %v1204 = vsub.s32 0, %v1203
        %v1205 = vrot.slane %v994, %v1204
        %v1206 = vlaneseq
        %v1207 = vshrl.u32 %v1206, 7
        %v1208 = vsub.s32 0, %v1207
        %v1209 = vrot.slane %v995, %v1208
        %v1210 = vmul.f32 %v1198, %v1205
        %v1211 = vmul.f32 %v1200, %v1209
        %v1212 = vmul.f32 %v1199, %v1205
        %v1213 = vmul.f32 %v1201, %v1209
        %v1214 = vld [vmem:[%s768] sm:$0xff]
        %v1215 = vld [vmem:[%s768 + $0x8] sm:$0xff]
        %vm1216 = vcmask 130048
        %v1218 = vsel %vm1216, %v1214, 0
        %v1221 = vsel %vm1216, %v1215, 0
        %1223 = vmatprep.subr.mxu0 %v997
        %1224 = vmatpush1.msra.mxu0 %v996
        %1225 = vmatprep.subr.mxu0 %v999
        %1226 = vmatpush1.msra.mxu0 %v998
        %1227 = vmatprep.subr.mxu0 0.0
        %1228 = vmatpush1.msra.mxu0 0.0
        %1229 = vmatprep.subr.mxu0 0.0
        %1230 = vmatpush1.msra.mxu0 0.0
        %1231 = vmatprep.subr.mxu0 0.0
        %1232 = vmatpush1.msra.mxu0 0.0
        %1233 = vmatprep.subr.mxu0 0.0
        %1234 = vmatpush1.msra.mxu0 0.0
        %1235 = vmatprep.subr.mxu0 0.0
        %1236 = vmatpush1.msra.mxu0 0.0
        %1237 = vmatprep.subr.mxu0 0.0
        %1238 = vmatpush1.msra.mxu0 0.0
        %1239 = vmatprep.subr.mxu0 0.0
        %1240 = vmatpush1.msra.mxu0 0.0
        %1241 = vmatprep.subr.mxu0 0.0
        %1242 = vmatpush1.msra.mxu0 0.0
        %1243 = vmatprep.subr.mxu0 0.0
        %1244 = vmatpush1.msra.mxu0 0.0
        %1245 = vmatprep.subr.mxu0 0.0
        %1246 = vmatpush1.msra.mxu0 0.0
        %1247 = vmatprep.subr.mxu0 0.0
        %1248 = vmatpush1.msra.mxu0 0.0
        %1249 = vmatprep.subr.mxu0 0.0
        %1250 = vmatpush1.msra.mxu0 0.0
        %1251 = vmatprep.subr.mxu0 0.0
        %1252 = vmatpush1.msra.mxu0 0.0
        %1253 = vmatprep.subr.mxu0 0.0
        %1254 = vmatpush1.msra.mxu0 0.0
        %1255 = vmatprep.subr.mxu0 0.0
        %1256 = vmatpush1.msra.mxu0 0.0
        %1257 = vmatprep.subr.mxu0 0.0
        %1258 = vmatpush1.msra.mxu0 0.0
        %1259 = vmatprep.subr.mxu0 0.0
        %1260 = vmatpush1.msra.mxu0 0.0
        %1261 = vmatprep.subr.mxu0 0.0
        %1262 = vmatpush1.msra.mxu0 0.0
        %1263 = vmatprep.subr.mxu0 0.0
        %1264 = vmatpush1.msra.mxu0 0.0
        %1265 = vmatprep.subr.mxu0 0.0
        %1266 = vmatpush1.msra.mxu0 0.0
        %1267 = vmatprep.subr.mxu0 0.0
        %1268 = vmatpush1.msra.mxu0 0.0
        %1269 = vmatprep.subr.mxu0 0.0
        %1270 = vmatpush1.msra.mxu0 0.0
        %1271 = vmatprep.subr.mxu0 0.0
        %1272 = vmatpush1.msra.mxu0 0.0
        %1273 = vmatprep.subr.mxu0 0.0
        %1274 = vmatpush1.msra.mxu0 0.0
        %1275 = vmatprep.subr.mxu0 0.0
        %1276 = vmatpush1.msra.mxu0 0.0
        %1277 = vmatprep.subr.mxu0 0.0
        %1278 = vmatpush1.msra.mxu0 0.0
        %1279 = vmatprep.subr.mxu0 0.0
        %1280 = vmatpush1.msra.mxu0 0.0
        %1281 = vmatprep.subr.mxu0 0.0
        %1282 = vmatpush1.msra.mxu0 0.0
        %1283 = vmatprep.subr.mxu0 0.0
        %1284 = vmatpush1.msra.mxu0 0.0
        %1285 = vmatprep.subr.mxu0 0.0
        %1286 = vmatpush1.msra.mxu0 0.0
        %1287 = vmatprep.mubr.f32.mxu0 0.0
        %1288 = vmatmul.mubr.f32.gmra.mrb[0].mxu0 %v1218
        %v1289 = vpop.f32.mrb[0].mxu0
        %v1290 = vadd.f32 0.0, %v1289
        %v1291 = vpop.f32.mrb[0].mxu0
        %v1292 = vadd.f32 0.0, %v1291
        %1293 = vmatprep.mubr.f32.mxu0 0.0
        %1294 = vmatmul.mubr.f32.gmra.mrb[0].mxu0 %v1221
        %v1295 = vpop.f32.mrb[0].mxu0
        %v1296 = vadd.f32 0.0, %v1295
        %v1297 = vpop.f32.mrb[0].mxu0
        %v1298 = vadd.f32 0.0, %v1297
        %1299 = vdwg.mxu0
        %v1300 = vmax.f32 %v1290, 0.0
        %v1301 = vmax.f32 %v1292, 0.0
        %v1302 = vmax.f32 %v1296, 0.0
        %v1303 = vmax.f32 %v1298, 0.0
        %v1304 = vld [vmem:[%s925] sm:$0xff]
        %v1305 = vld [vmem:[%s925 + $0x8] sm:$0xff]
        %v1306 = vld [vmem:[%s925 + $0x10] sm:$0xff]
        %v1307 = vld [vmem:[%s925 + $0x18] sm:$0xff]
        %v1308 = vld [vmem:[%s925 + $0x20] sm:$0xff]
        %v1309 = vld [vmem:[%s925 + $0x28] sm:$0xff]
        %v1310 = vld [vmem:[%s925 + $0x30] sm:$0xff]
        %v1311 = vld [vmem:[%s925 + $0x38] sm:$0xff]
        %v1312 = vld [vmem:[%s925 + $0x40] sm:$0xff]
        %v1313 = vld [vmem:[%s925 + $0x48] sm:$0xff]
        %v1314 = vld [vmem:[%s925 + $0x50] sm:$0xff]
        %v1315 = vld [vmem:[%s925 + $0x58] sm:$0xff]
        %v1316 = vld [vmem:[%s925 + $0x60] sm:$0xff]
        %v1317 = vld [vmem:[%s925 + $0x68] sm:$0xff]
        %v1318 = vld [vmem:[%s925 + $0x70] sm:$0xff]
        %v1319 = vld [vmem:[%s925 + $0x78] sm:$0xff]
        %v1320 = vld [vmem:[%s925 + $0x80] sm:$0xff]
        %v1321 = vld [vmem:[%s925 + $0x88] sm:$0xff]
        %v1323 = vsel %vm1216, %v1304, 0
        %v1326 = vsel %vm1216, %v1305, 0
        %v1329 = vsel %vm1216, %v1306, 0
        %v1332 = vsel %vm1216, %v1307, 0
        %v1335 = vsel %vm1216, %v1308, 0
        %v1338 = vsel %vm1216, %v1309, 0
        %v1341 = vsel %vm1216, %v1310, 0
        %v1344 = vsel %vm1216, %v1311, 0
        %v1347 = vsel %vm1216, %v1312, 0
        %v1350 = vsel %vm1216, %v1313, 0
        %v1353 = vsel %vm1216, %v1314, 0
        %v1356 = vsel %vm1216, %v1315, 0
        %v1359 = vsel %vm1216, %v1316, 0
        %v1362 = vsel %vm1216, %v1317, 0
        %v1365 = vsel %vm1216, %v1318, 0
        %v1368 = vsel %vm1216, %v1319, 0
        %v1371 = vsel %vm1216, %v1320, 0
        %v1374 = vsel %vm1216, %v1321, 0
        %1376 = vmatprep.subr.mxu0 %v1301
        %1377 = vmatpush1.msra.mxu0 %v1300
        %1378 = vmatprep.subr.mxu0 %v1303
        %1379 = vmatpush1.msra.mxu0 %v1302
        %1380 = vmatprep.subr.mxu0 0.0
        %1381 = vmatpush1.msra.mxu0 0.0
        %1382 = vmatprep.subr.mxu0 0.0
        %1383 = vmatpush1.msra.mxu0 0.0
        %1384 = vmatprep.subr.mxu0 0.0
        %1385 = vmatpush1.msra.mxu0 0.0
        %1386 = vmatprep.subr.mxu0 0.0
        %1387 = vmatpush1.msra.mxu0 0.0
        %1388 = vmatprep.subr.mxu0 0.0
        %1389 = vmatpush1.msra.mxu0 0.0
        %1390 = vmatprep.subr.mxu0 0.0
        %1391 = vmatpush1.msra.mxu0 0.0
        %1392 = vmatprep.subr.mxu0 0.0
        %1393 = vmatpush1.msra.mxu0 0.0
        %1394 = vmatprep.subr.mxu0 0.0
        %1395 = vmatpush1.msra.mxu0 0.0
        %1396 = vmatprep.subr.mxu0 0.0
        %1397 = vmatpush1.msra.mxu0 0.0
        %1398 = vmatprep.subr.mxu0 0.0
        %1399 = vmatpush1.msra.mxu0 0.0
        %1400 = vmatprep.subr.mxu0 0.0
        %1401 = vmatpush1.msra.mxu0 0.0
        %1402 = vmatprep.subr.mxu0 0.0
        %1403 = vmatpush1.msra.mxu0 0.0
        %1404 = vmatprep.subr.mxu0 0.0
        %1405 = vmatpush1.msra.mxu0 0.0
        %1406 = vmatprep.subr.mxu0 0.0
        %1407 = vmatpush1.msra.mxu0 0.0
        %1408 = vmatprep.subr.mxu0 0.0
        %1409 = vmatpush1.msra.mxu0 0.0
        %1410 = vmatprep.subr.mxu0 0.0
        %1411 = vmatpush1.msra.mxu0 0.0
        %1412 = vmatprep.subr.mxu0 0.0
        %1413 = vmatpush1.msra.mxu0 0.0
        %1414 = vmatprep.subr.mxu0 0.0
        %1415 = vmatpush1.msra.mxu0 0.0
        %1416 = vmatprep.subr.mxu0 0.0
        %1417 = vmatpush1.msra.mxu0 0.0
        %1418 = vmatprep.subr.mxu0 0.0
        %1419 = vmatpush1.msra.mxu0 0.0
        %1420 = vmatprep.subr.mxu0 0.0
        %1421 = vmatpush1.msra.mxu0 0.0
        %1422 = vmatprep.subr.mxu0 0.0
        %1423 = vmatpush1.msra.mxu0 0.0
        %1424 = vmatprep.subr.mxu0 0.0
        %1425 = vmatpush1.msra.mxu0 0.0
        %1426 = vmatprep.subr.mxu0 0.0
        %1427 = vmatpush1.msra.mxu0 0.0
        %1428 = vmatprep.subr.mxu0 0.0
        %1429 = vmatpush1.msra.mxu0 0.0
        %1430 = vmatprep.subr.mxu0 0.0
        %1431 = vmatpush1.msra.mxu0 0.0
        %1432 = vmatprep.subr.mxu0 0.0
        %1433 = vmatpush1.msra.mxu0 0.0
        %1434 = vmatprep.subr.mxu0 0.0
        %1435 = vmatpush1.msra.mxu0 0.0
        %1436 = vmatprep.subr.mxu0 0.0
        %1437 = vmatpush1.msra.mxu0 0.0
        %1438 = vmatprep.subr.mxu0 0.0
        %1439 = vmatpush1.msra.mxu0 0.0
        %1440 = vmatprep.mubr.f32.mxu0 0.0
        %1441 = vmatmul.mubr.f32.gmra.mrb[0].mxu0 %v1323
        %v1442 = vpop.f32.mrb[0].mxu0
        %v1443 = vadd.f32 0.0, %v1442
        %v1444 = vpop.f32.mrb[0].mxu0
        %v1445 = vadd.f32 0.0, %v1444
        %1446 = vmatprep.mubr.f32.mxu0 0.0
        %1447 = vmatmul.mubr.f32.gmra.mrb[0].mxu0 %v1326
        %v1448 = vpop.f32.mrb[0].mxu0
        %v1449 = vadd.f32 0.0, %v1448
        %v1450 = vpop.f32.mrb[0].mxu0
        %v1451 = vadd.f32 0.0, %v1450
        %1452 = vmatprep.mubr.f32.mxu0 0.0
        %1453 = vmatmul.mubr.f32.gmra.mrb[0].mxu0 %v1329
        %v1454 = vpop.f32.mrb[0].mxu0
        %v1455 = vadd.f32 0.0, %v1454
        %v1456 = vpop.f32.mrb[0].mxu0
        %v1457 = vadd.f32 0.0, %v1456
        %1458 = vmatprep.mubr.f32.mxu0 0.0
        %1459 = vmatmul.mubr.f32.gmra.mrb[0].mxu0 %v1332
        %v1460 = vpop.f32.mrb[0].mxu0
        %v1461 = vadd.f32 0.0, %v1460
        %v1462 = vpop.f32.mrb[0].mxu0
        %v1463 = vadd.f32 0.0, %v1462
        %1464 = vmatprep.mubr.f32.mxu0 0.0
        %1465 = vmatmul.mubr.f32.gmra.mrb[0].mxu0 %v1335
        %v1466 = vpop.f32.mrb[0].mxu0
        %v1467 = vadd.f32 0.0, %v1466
        %v1468 = vpop.f32.mrb[0].mxu0
        %v1469 = vadd.f32 0.0, %v1468
        %1470 = vmatprep.mubr.f32.mxu0 0.0
        %1471 = vmatmul.mubr.f32.gmra.mrb[0].mxu0 %v1338
        %v1472 = vpop.f32.mrb[0].mxu0
        %v1473 = vadd.f32 0.0, %v1472
        %v1474 = vpop.f32.mrb[0].mxu0
        %v1475 = vadd.f32 0.0, %v1474
        %1476 = vmatprep.mubr.f32.mxu0 0.0
        %1477 = vmatmul.mubr.f32.gmra.mrb[0].mxu0 %v1341
        %v1478 = vpop.f32.mrb[0].mxu0
        %v1479 = vadd.f32 0.0, %v1478
        %v1480 = vpop.f32.mrb[0].mxu0
        %v1481 = vadd.f32 0.0, %v1480
        %1482 = vmatprep.mubr.f32.mxu0 0.0
        %1483 = vmatmul.mubr.f32.gmra.mrb[0].mxu0 %v1344
        %v1484 = vpop.f32.mrb[0].mxu0
        %v1485 = vadd.f32 0.0, %v1484
        %v1486 = vpop.f32.mrb[0].mxu0
        %v1487 = vadd.f32 0.0, %v1486
        %1488 = vmatprep.mubr.f32.mxu0 0.0
        %1489 = vmatmul.mubr.f32.gmra.mrb[0].mxu0 %v1347
        %v1490 = vpop.f32.mrb[0].mxu0
        %v1491 = vadd.f32 0.0, %v1490
        %v1492 = vpop.f32.mrb[0].mxu0
        %v1493 = vadd.f32 0.0, %v1492
        %1494 = vmatprep.mubr.f32.mxu0 0.0
        %1495 = vmatmul.mubr.f32.gmra.mrb[0].mxu0 %v1350
        %v1496 = vpop.f32.mrb[0].mxu0
        %v1497 = vadd.f32 0.0, %v1496
        %v1498 = vpop.f32.mrb[0].mxu0
        %v1499 = vadd.f32 0.0, %v1498
        %1500 = vmatprep.mubr.f32.mxu0 0.0
        %1501 = vmatmul.mubr.f32.gmra.mrb[0].mxu0 %v1353
        %v1502 = vpop.f32.mrb[0].mxu0
        %v1503 = vadd.f32 0.0, %v1502
        %v1504 = vpop.f32.mrb[0].mxu0
        %v1505 = vadd.f32 0.0, %v1504
        %1506 = vmatprep.mubr.f32.mxu0 0.0
        %1507 = vmatmul.mubr.f32.gmra.mrb[0].mxu0 %v1356
        %v1508 = vpop.f32.mrb[0].mxu0
        %v1509 = vadd.f32 0.0, %v1508
        %v1510 = vpop.f32.mrb[0].mxu0
        %v1511 = vadd.f32 0.0, %v1510
        %1512 = vmatprep.mubr.f32.mxu0 0.0
        %1513 = vmatmul.mubr.f32.gmra.mrb[0].mxu0 %v1359
        %v1514 = vpop.f32.mrb[0].mxu0
        %v1515 = vadd.f32 0.0, %v1514
        %v1516 = vpop.f32.mrb[0].mxu0
        %v1517 = vadd.f32 0.0, %v1516
        %1518 = vmatprep.mubr.f32.mxu0 0.0
        %1519 = vmatmul.mubr.f32.gmra.mrb[0].mxu0 %v1362
        %v1520 = vpop.f32.mrb[0].mxu0
        %v1521 = vadd.f32 0.0, %v1520
        %v1522 = vpop.f32.mrb[0].mxu0
        %v1523 = vadd.f32 0.0, %v1522
        %1524 = vmatprep.mubr.f32.mxu0 0.0
        %1525 = vmatmul.mubr.f32.gmra.mrb[0].mxu0 %v1365
        %v1526 = vpop.f32.mrb[0].mxu0
        %v1527 = vadd.f32 0.0, %v1526
        %v1528 = vpop.f32.mrb[0].mxu0
        %v1529 = vadd.f32 0.0, %v1528
        %1530 = vmatprep.mubr.f32.mxu0 0.0
        %1531 = vmatmul.mubr.f32.gmra.mrb[0].mxu0 %v1368
        %v1532 = vpop.f32.mrb[0].mxu0
        %v1533 = vadd.f32 0.0, %v1532
        %v1534 = vpop.f32.mrb[0].mxu0
        %v1535 = vadd.f32 0.0, %v1534
        %1536 = vmatprep.mubr.f32.mxu0 0.0
        %1537 = vmatmul.mubr.f32.gmra.mrb[0].mxu0 %v1371
        %v1538 = vpop.f32.mrb[0].mxu0
        %v1539 = vadd.f32 0.0, %v1538
        %v1540 = vpop.f32.mrb[0].mxu0
        %v1541 = vadd.f32 0.0, %v1540
        %1542 = vmatprep.mubr.f32.mxu0 0.0
        %1543 = vmatmul.mubr.f32.gmra.mrb[0].mxu0 %v1374
        %v1544 = vpop.f32.mrb[0].mxu0
        %v1545 = vadd.f32 0.0, %v1544
        %v1546 = vpop.f32.mrb[0].mxu0
        %v1547 = vadd.f32 0.0, %v1546
        %1548 = vdwg.mxu0
        %v1549 = vmul.f32 %v1443, %v1023
        %v1550 = vmul.f32 %v1445, %v1024
        %v1551 = vmul.f32 %v1449, %v1025
        %v1552 = vmul.f32 %v1451, %v1026
        %v1553 = vmul.f32 %v1455, %v1048
        %v1554 = vmul.f32 %v1457, %v1049
        %v1555 = vmul.f32 %v1461, %v1050
        %v1556 = vmul.f32 %v1463, %v1051
        %v1557 = vmul.f32 %v1467, %v1073
        %v1558 = vmul.f32 %v1469, %v1074
        %v1559 = vmul.f32 %v1473, %v1075
        %v1560 = vmul.f32 %v1475, %v1076
        %v1561 = vmul.f32 %v1479, %v1098
        %v1562 = vmul.f32 %v1481, %v1099
        %v1563 = vmul.f32 %v1485, %v1100
        %v1564 = vmul.f32 %v1487, %v1101
        %v1565 = vmul.f32 %v1491, %v1110
        %v1566 = vmul.f32 %v1493, %v1111
        %v1567 = vmul.f32 %v1497, %v1112
        %v1568 = vmul.f32 %v1499, %v1113
        %v1569 = vmul.f32 %v1503, %v1135
        %v1570 = vmul.f32 %v1505, %v1136
        %v1571 = vmul.f32 %v1509, %v1137
        %v1572 = vmul.f32 %v1511, %v1138
        %v1573 = vmul.f32 %v1515, %v1160
        %v1574 = vmul.f32 %v1517, %v1161
        %v1575 = vmul.f32 %v1521, %v1162
        %v1576 = vmul.f32 %v1523, %v1163
        %v1577 = vmul.f32 %v1527, %v1185
        %v1578 = vmul.f32 %v1529, %v1186
        %v1579 = vmul.f32 %v1533, %v1187
        %v1580 = vmul.f32 %v1535, %v1188
        %v1581 = vmul.f32 %v1539, %v1210
        %v1582 = vmul.f32 %v1541, %v1211
        %v1583 = vmul.f32 %v1545, %v1212
        %v1584 = vmul.f32 %v1547, %v1213
        %v1585 = vadd.f32 %v1549, %v1553
        %v1586 = vadd.f32 %v1550, %v1554
        %v1587 = vadd.f32 %v1551, %v1555
        %v1588 = vadd.f32 %v1552, %v1556
        %v1589 = vadd.f32 %v1557, %v1561
        %v1590 = vadd.f32 %v1558, %v1562
        %v1591 = vadd.f32 %v1559, %v1563
        %v1592 = vadd.f32 %v1560, %v1564
        %v1593 = vadd.f32 %v1565, %v1569
        %v1594 = vadd.f32 %v1566, %v1570
        %v1595 = vadd.f32 %v1567, %v1571
        %v1596 = vadd.f32 %v1568, %v1572
        %v1597 = vadd.f32 %v1573, %v1577
        %v1598 = vadd.f32 %v1574, %v1578
        %v1599 = vadd.f32 %v1575, %v1579
        %v1600 = vadd.f32 %v1576, %v1580
        %v1601 = vadd.f32 %v1585, %v1589
        %v1602 = vadd.f32 %v1586, %v1590
        %v1603 = vadd.f32 %v1587, %v1591
        %v1604 = vadd.f32 %v1588, %v1592
        %v1605 = vadd.f32 %v1593, %v1597
        %v1606 = vadd.f32 %v1594, %v1598
        %v1607 = vadd.f32 %v1595, %v1599
        %v1608 = vadd.f32 %v1596, %v1600
        %v1609 = vadd.f32 %v1601, %v1605
        %v1610 = vadd.f32 %v1602, %v1606
        %v1611 = vadd.f32 %v1603, %v1607
        %v1612 = vadd.f32 %v1604, %v1608
        %v1613 = vadd.f32 %v1609, %v1581
        %v1614 = vadd.f32 %v1610, %v1582
        %v1615 = vadd.f32 %v1611, %v1583
        %v1616 = vadd.f32 %v1612, %v1584
        %v1617 = vld [vmem:[%s777] sm:$0xff]
        %v1618 = vld [vmem:[%s777 + $0x8] sm:$0xff]
        %v1620 = vsel %vm1216, %v1617, 0
        %v1623 = vsel %vm1216, %v1618, 0
        %1625 = vmatprep.subr.mxu0 %v1614
        %1626 = vmatpush1.msra.mxu0 %v1613
        %1627 = vmatprep.subr.mxu0 %v1616
        %1628 = vmatpush1.msra.mxu0 %v1615
        %1629 = vmatprep.subr.mxu0 0.0
        %1630 = vmatpush1.msra.mxu0 0.0
        %1631 = vmatprep.subr.mxu0 0.0
        %1632 = vmatpush1.msra.mxu0 0.0
        %1633 = vmatprep.subr.mxu0 0.0
        %1634 = vmatpush1.msra.mxu0 0.0
        %1635 = vmatprep.subr.mxu0 0.0
        %1636 = vmatpush1.msra.mxu0 0.0
        %1637 = vmatprep.subr.mxu0 0.0
        %1638 = vmatpush1.msra.mxu0 0.0
        %1639 = vmatprep.subr.mxu0 0.0
        %1640 = vmatpush1.msra.mxu0 0.0
        %1641 = vmatprep.subr.mxu0 0.0
        %1642 = vmatpush1.msra.mxu0 0.0
        %1643 = vmatprep.subr.mxu0 0.0
        %1644 = vmatpush1.msra.mxu0 0.0
        %1645 = vmatprep.subr.mxu0 0.0
        %1646 = vmatpush1.msra.mxu0 0.0
        %1647 = vmatprep.subr.mxu0 0.0
        %1648 = vmatpush1.msra.mxu0 0.0
        %1649 = vmatprep.subr.mxu0 0.0
        %1650 = vmatpush1.msra.mxu0 0.0
        %1651 = vmatprep.subr.mxu0 0.0
        %1652 = vmatpush1.msra.mxu0 0.0
        %1653 = vmatprep.subr.mxu0 0.0
        %1654 = vmatpush1.msra.mxu0 0.0
        %1655 = vmatprep.subr.mxu0 0.0
        %1656 = vmatpush1.msra.mxu0 0.0
        %1657 = vmatprep.subr.mxu0 0.0
        %1658 = vmatpush1.msra.mxu0 0.0
        %1659 = vmatprep.subr.mxu0 0.0
        %1660 = vmatpush1.msra.mxu0 0.0
        %1661 = vmatprep.subr.mxu0 0.0
        %1662 = vmatpush1.msra.mxu0 0.0
        %1663 = vmatprep.subr.mxu0 0.0
        %1664 = vmatpush1.msra.mxu0 0.0
        %1665 = vmatprep.subr.mxu0 0.0
        %1666 = vmatpush1.msra.mxu0 0.0
        %1667 = vmatprep.subr.mxu0 0.0
        %1668 = vmatpush1.msra.mxu0 0.0
        %1669 = vmatprep.subr.mxu0 0.0
        %1670 = vmatpush1.msra.mxu0 0.0
        %1671 = vmatprep.subr.mxu0 0.0
        %1672 = vmatpush1.msra.mxu0 0.0
        %1673 = vmatprep.subr.mxu0 0.0
        %1674 = vmatpush1.msra.mxu0 0.0
        %1675 = vmatprep.subr.mxu0 0.0
        %1676 = vmatpush1.msra.mxu0 0.0
        %1677 = vmatprep.subr.mxu0 0.0
        %1678 = vmatpush1.msra.mxu0 0.0
        %1679 = vmatprep.subr.mxu0 0.0
        %1680 = vmatpush1.msra.mxu0 0.0
        %1681 = vmatprep.subr.mxu0 0.0
        %1682 = vmatpush1.msra.mxu0 0.0
        %1683 = vmatprep.subr.mxu0 0.0
        %1684 = vmatpush1.msra.mxu0 0.0
        %1685 = vmatprep.subr.mxu0 0.0
        %1686 = vmatpush1.msra.mxu0 0.0
        %1687 = vmatprep.subr.mxu0 0.0
        %1688 = vmatpush1.msra.mxu0 0.0
        %1689 = vmatprep.mubr.f32.mxu0 0.0
        %1690 = vmatmul.mubr.f32.gmra.mrb[0].mxu0 %v1620
        %v1691 = vpop.f32.mrb[0].mxu0
        %v1692 = vadd.f32 0.0, %v1691
        %v1693 = vpop.f32.mrb[0].mxu0
        %v1694 = vadd.f32 0.0, %v1693
        %1695 = vmatprep.mubr.f32.mxu0 0.0
        %1696 = vmatmul.mubr.f32.gmra.mrb[0].mxu0 %v1623
        %v1697 = vpop.f32.mrb[0].mxu0
        %v1698 = vadd.f32 0.0, %v1697
        %v1699 = vpop.f32.mrb[0].mxu0
        %v1700 = vadd.f32 0.0, %v1699
        %1701 = vdwg.mxu0
        %v1702 = vld [vmem:[%s13] sm:$0xff]
        %v1703 = vld [vmem:[%s13 + $0x8] sm:$0xff]
        %v1704 = vld [vmem:[%s13 + $0x10] sm:$0xff]
        %v1705 = vld [vmem:[%s13 + $0x18] sm:$0xff]
        %v1706 = vld [vmem:[%s13 + $0x20] sm:$0xff]
        %v1707 = vld [vmem:[%s13 + $0x28] sm:$0xff]
        %v1708 = vld [vmem:[%s13 + $0x30] sm:$0xff]
        %v1709 = vld [vmem:[%s13 + $0x38] sm:$0xff]
        %v1710 = vld [vmem:[%s13 + $0x40] sm:$0xff]
        %v1711 = vld [vmem:[%s13 + $0x48] sm:$0xff]
        %v1712 = vld [vmem:[%s13 + $0x50] sm:$0xff]
        %v1713 = vld [vmem:[%s13 + $0x58] sm:$0xff]
        %v1714 = vld [vmem:[%s13 + $0x60] sm:$0xff]
        %v1715 = vld [vmem:[%s13 + $0x68] sm:$0xff]
        %v1716 = vld [vmem:[%s13 + $0x70] sm:$0xff]
        %v1717 = vld [vmem:[%s13 + $0x78] sm:$0xff]
        %v1718 = vld [vmem:[%s13 + $0x80] sm:$0xff]
        %v1719 = vld [vmem:[%s13 + $0x88] sm:$0xff]
        %v1720 = vld [vmem:[%s13 + $0x90] sm:$0xff]
        %v1721 = vld [vmem:[%s13 + $0x98] sm:$0xff]
        %v1722 = vld [vmem:[%s13 + $0xa0] sm:$0xff]
        %v1723 = vld [vmem:[%s13 + $0xa8] sm:$0xff]
        %v1724 = vld [vmem:[%s13 + $0xb0] sm:$0xff]
        %v1725 = vld [vmem:[%s13 + $0xb8] sm:$0xff]
        %v1726 = vld [vmem:[%s13 + $0xc0] sm:$0xff]
        %v1727 = vld [vmem:[%s13 + $0xc8] sm:$0xff]
        %v1728 = vld [vmem:[%s13 + $0xd0] sm:$0xff]
        %v1729 = vld [vmem:[%s13 + $0xd8] sm:$0xff]
        %v1730 = vld [vmem:[%s13 + $0xe0] sm:$0xff]
        %v1731 = vld [vmem:[%s13 + $0xe8] sm:$0xff]
        %v1732 = vld [vmem:[%s13 + $0xf0] sm:$0xff]
        %v1733 = vld [vmem:[%s13 + $0xf8] sm:$0xff]
        %v1734 = vld [vmem:[%s13 + $0x100] sm:$0xff]
        %v1735 = vld [vmem:[%s13 + $0x108] sm:$0xff]
        %v1736 = vld [vmem:[%s13 + $0x110] sm:$0xff]
        %v1737 = vld [vmem:[%s13 + $0x118] sm:$0xff]
        %v1738 = vld [vmem:[%s13 + $0x120] sm:$0xff]
        %v1739 = vld [vmem:[%s13 + $0x128] sm:$0xff]
        %v1740 = vld [vmem:[%s13 + $0x130] sm:$0xff]
        %v1741 = vld [vmem:[%s13 + $0x138] sm:$0xff]
        %v1742 = vld [vmem:[%s13 + $0x140] sm:$0xff]
        %v1743 = vld [vmem:[%s13 + $0x148] sm:$0xff]
        %v1744 = vld [vmem:[%s13 + $0x150] sm:$0xff]
        %v1745 = vld [vmem:[%s13 + $0x158] sm:$0xff]
        %v1746 = vld [vmem:[%s13 + $0x160] sm:$0xff]
        %v1747 = vld [vmem:[%s13 + $0x168] sm:$0xff]
        %v1748 = vld [vmem:[%s13 + $0x170] sm:$0xff]
        %v1749 = vld [vmem:[%s13 + $0x178] sm:$0xff]
        %v1750 = vld [vmem:[%s13 + $0x180] sm:$0xff]
        %v1751 = vld [vmem:[%s13 + $0x188] sm:$0xff]
        %v1752 = vld [vmem:[%s13 + $0x190] sm:$0xff]
        %v1753 = vld [vmem:[%s13 + $0x198] sm:$0xff]
        %v1754 = vld [vmem:[%s13 + $0x1a0] sm:$0xff]
        %v1755 = vld [vmem:[%s13 + $0x1a8] sm:$0xff]
        %v1756 = vld [vmem:[%s13 + $0x1b0] sm:$0xff]
        %v1757 = vld [vmem:[%s13 + $0x1b8] sm:$0xff]
        %v1758 = vld [vmem:[%s13 + $0x1c0] sm:$0xff]
        %v1759 = vld [vmem:[%s13 + $0x1c8] sm:$0xff]
        %v1760 = vld [vmem:[%s13 + $0x1d0] sm:$0xff]
        %v1761 = vld [vmem:[%s13 + $0x1d8] sm:$0xff]
        %v1762 = vld [vmem:[%s13 + $0x1e0] sm:$0xff]
        %v1763 = vld [vmem:[%s13 + $0x1e8] sm:$0xff]
        %v1764 = vld [vmem:[%s13 + $0x1f0] sm:$0xff]
        %v1765 = vld [vmem:[%s13 + $0x1f8] sm:$0xff]
        %v1766 = vld [vmem:[%s13 + $0x200] sm:$0xff]
        %v1767 = vld [vmem:[%s13 + $0x208] sm:$0xff]
        %v1768 = vld [vmem:[%s13 + $0x210] sm:$0xff]
        %v1769 = vld [vmem:[%s13 + $0x218] sm:$0xff]
        %v1770 = vld [vmem:[%s13 + $0x220] sm:$0xff]
        %v1771 = vld [vmem:[%s13 + $0x228] sm:$0xff]
        %v1772 = vld [vmem:[%s13 + $0x230] sm:$0xff]
        %v1773 = vld [vmem:[%s13 + $0x238] sm:$0xff]
        %v1774 = vld [vmem:[%s13 + $0x240] sm:$0xff]
        %v1775 = vld [vmem:[%s13 + $0x248] sm:$0xff]
        %v1776 = vld [vmem:[%s13 + $0x250] sm:$0xff]
        %v1777 = vld [vmem:[%s13 + $0x258] sm:$0xff]
        %v1778 = vld [vmem:[%s13 + $0x260] sm:$0xff]
        %v1779 = vld [vmem:[%s13 + $0x268] sm:$0xff]
        %v1780 = vld [vmem:[%s13 + $0x270] sm:$0xff]
        %v1781 = vld [vmem:[%s13 + $0x278] sm:$0xff]
        %v1782 = vld [vmem:[%s13 + $0x280] sm:$0xff]
        %v1783 = vld [vmem:[%s13 + $0x288] sm:$0xff]
        %v1784 = vld [vmem:[%s13 + $0x290] sm:$0xff]
        %v1785 = vld [vmem:[%s13 + $0x298] sm:$0xff]
        %v1786 = vld [vmem:[%s13 + $0x2a0] sm:$0xff]
        %v1787 = vld [vmem:[%s13 + $0x2a8] sm:$0xff]
        %v1788 = vld [vmem:[%s13 + $0x2b0] sm:$0xff]
        %v1789 = vld [vmem:[%s13 + $0x2b8] sm:$0xff]
        %v1790 = vld [vmem:[%s13 + $0x2c0] sm:$0xff]
        %v1791 = vld [vmem:[%s13 + $0x2c8] sm:$0xff]
        %v1792 = vld [vmem:[%s13 + $0x2d0] sm:$0xff]
        %v1793 = vld [vmem:[%s13 + $0x2d8] sm:$0xff]
        %v1794 = vld [vmem:[%s13 + $0x2e0] sm:$0xff]
        %v1795 = vld [vmem:[%s13 + $0x2e8] sm:$0xff]
        %v1796 = vld [vmem:[%s13 + $0x2f0] sm:$0xff]
        %v1797 = vld [vmem:[%s13 + $0x2f8] sm:$0xff]
        %v1798 = vld [vmem:[%s13 + $0x300] sm:$0xff]
        %v1799 = vld [vmem:[%s13 + $0x308] sm:$0xff]
        %v1800 = vld [vmem:[%s13 + $0x310] sm:$0xff]
        %v1801 = vld [vmem:[%s13 + $0x318] sm:$0xff]
        %v1802 = vld [vmem:[%s13 + $0x320] sm:$0xff]
        %v1803 = vld [vmem:[%s13 + $0x328] sm:$0xff]
        %v1804 = vld [vmem:[%s13 + $0x330] sm:$0xff]
        %v1805 = vld [vmem:[%s13 + $0x338] sm:$0xff]
        %v1806 = vld [vmem:[%s13 + $0x340] sm:$0xff]
        %v1807 = vld [vmem:[%s13 + $0x348] sm:$0xff]
        %v1808 = vld [vmem:[%s13 + $0x350] sm:$0xff]
        %v1809 = vld [vmem:[%s13 + $0x358] sm:$0xff]
        %v1810 = vld [vmem:[%s13 + $0x360] sm:$0xff]
        %v1811 = vld [vmem:[%s13 + $0x368] sm:$0xff]
        %v1812 = vld [vmem:[%s13 + $0x370] sm:$0xff]
        %v1813 = vld [vmem:[%s13 + $0x378] sm:$0xff]
        %v1814 = vld [vmem:[%s13 + $0x380] sm:$0xff]
        %v1815 = vld [vmem:[%s13 + $0x388] sm:$0xff]
        %v1816 = vld [vmem:[%s13 + $0x390] sm:$0xff]
        %v1817 = vld [vmem:[%s13 + $0x398] sm:$0xff]
        %v1818 = vld [vmem:[%s13 + $0x3a0] sm:$0xff]
        %v1819 = vld [vmem:[%s13 + $0x3a8] sm:$0xff]
        %v1820 = vld [vmem:[%s13 + $0x3b0] sm:$0xff]
        %v1821 = vld [vmem:[%s13 + $0x3b8] sm:$0xff]
        %v1822 = vld [vmem:[%s13 + $0x3c0] sm:$0xff]
        %v1823 = vld [vmem:[%s13 + $0x3c8] sm:$0xff]
        %v1824 = vld [vmem:[%s13 + $0x3d0] sm:$0xff]
        %v1825 = vld [vmem:[%s13 + $0x3d8] sm:$0xff]
        %v1826 = vld [vmem:[%s13 + $0x3e0] sm:$0xff]
        %v1827 = vld [vmem:[%s13 + $0x3e8] sm:$0xff]
        %v1828 = vld [vmem:[%s13 + $0x3f0] sm:$0xff]
        %v1829 = vld [vmem:[%s13 + $0x3f8] sm:$0xff]
        %1830 = vmatprep.subr.mxu0 %v1703
        %1831 = vmatpush1.msra.mxu0 %v1702
        %1832 = vmatprep.subr.mxu0 %v1707
        %1833 = vmatpush1.msra.mxu0 %v1706
        %1834 = vmatprep.subr.mxu0 %v1711
        %1835 = vmatpush1.msra.mxu0 %v1710
        %1836 = vmatprep.subr.mxu0 %v1715
        %1837 = vmatpush1.msra.mxu0 %v1714
        %1838 = vmatprep.subr.mxu0 %v1719
        %1839 = vmatpush1.msra.mxu0 %v1718
        %1840 = vmatprep.subr.mxu0 %v1723
        %1841 = vmatpush1.msra.mxu0 %v1722
        %1842 = vmatprep.subr.mxu0 %v1727
        %1843 = vmatpush1.msra.mxu0 %v1726
        %1844 = vmatprep.subr.mxu0 %v1731
        %1845 = vmatpush1.msra.mxu0 %v1730
        %1846 = vmatprep.subr.mxu0 %v1735
        %1847 = vmatpush1.msra.mxu0 %v1734
        %1848 = vmatprep.subr.mxu0 %v1739
        %1849 = vmatpush1.msra.mxu0 %v1738
        %1850 = vmatprep.subr.mxu0 %v1743
        %1851 = vmatpush1.msra.mxu0 %v1742
        %1852 = vmatprep.subr.mxu0 %v1747
        %1853 = vmatpush1.msra.mxu0 %v1746
        %1854 = vmatprep.subr.mxu0 %v1751
        %1855 = vmatpush1.msra.mxu0 %v1750
        %1856 = vmatprep.subr.mxu0 %v1755
        %1857 = vmatpush1.msra.mxu0 %v1754
        %1858 = vmatprep.subr.mxu0 %v1759
        %1859 = vmatpush1.msra.mxu0 %v1758
        %1860 = vmatprep.subr.mxu0 %v1763
        %1861 = vmatpush1.msra.mxu0 %v1762
        %1862 = vmatprep.subr.mxu0 %v1767
        %1863 = vmatpush1.msra.mxu0 %v1766
        %1864 = vmatprep.subr.mxu0 %v1771
        %1865 = vmatpush1.msra.mxu0 %v1770
        %1866 = vmatprep.subr.mxu0 %v1775
        %1867 = vmatpush1.msra.mxu0 %v1774
        %1868 = vmatprep.subr.mxu0 %v1779
        %1869 = vmatpush1.msra.mxu0 %v1778
        %1870 = vmatprep.subr.mxu0 %v1783
        %1871 = vmatpush1.msra.mxu0 %v1782
        %1872 = vmatprep.subr.mxu0 %v1787
        %1873 = vmatpush1.msra.mxu0 %v1786
        %1874 = vmatprep.subr.mxu0 %v1791
        %1875 = vmatpush1.msra.mxu0 %v1790
        %1876 = vmatprep.subr.mxu0 %v1795
        %1877 = vmatpush1.msra.mxu0 %v1794
        %1878 = vmatprep.subr.mxu0 %v1799
        %1879 = vmatpush1.msra.mxu0 %v1798
        %1880 = vmatprep.subr.mxu0 %v1803
        %1881 = vmatpush1.msra.mxu0 %v1802
        %1882 = vmatprep.subr.mxu0 %v1807
        %1883 = vmatpush1.msra.mxu0 %v1806
        %1884 = vmatprep.subr.mxu0 %v1811
        %1885 = vmatpush1.msra.mxu0 %v1810
        %1886 = vmatprep.subr.mxu0 %v1815
        %1887 = vmatpush1.msra.mxu0 %v1814
        %1888 = vmatprep.subr.mxu0 %v1819
        %1889 = vmatpush1.msra.mxu0 %v1818
        %1890 = vmatprep.subr.mxu0 %v1823
        %1891 = vmatpush1.msra.mxu0 %v1822
        %1892 = vmatprep.subr.mxu0 %v1827
        %1893 = vmatpush1.msra.mxu0 %v1826
        %1894 = vmatprep.mubr.f32.mxu0 %v1694
        %1895 = vmatmul.mubr.f32.gmra.mrb[0].mxu0 %v1692
        %v1896 = vpop.f32.mrb[0].mxu0
        %v1897 = vadd.f32 0.0, %v1896
        %v1898 = vpop.f32.mrb[0].mxu0
        %v1899 = vadd.f32 0.0, %v1898
        %1900 = vmatprep.mubr.f32.mxu0 %v1700
        %1901 = vmatmul.mubr.f32.gmra.mrb[0].mxu0 %v1698
        %v1902 = vpop.f32.mrb[0].mxu0
        %v1903 = vadd.f32 0.0, %v1902
        %v1904 = vpop.f32.mrb[0].mxu0
        %v1905 = vadd.f32 0.0, %v1904
        %1906 = vdwg.mxu0
        %1907 = vmatprep.subr.mxu0 %v1705
        %1908 = vmatpush1.msra.mxu0 %v1704
        %1909 = vmatprep.subr.mxu0 %v1709
        %1910 = vmatpush1.msra.mxu0 %v1708
        %1911 = vmatprep.subr.mxu0 %v1713
        %1912 = vmatpush1.msra.mxu0 %v1712
        %1913 = vmatprep.subr.mxu0 %v1717
        %1914 = vmatpush1.msra.mxu0 %v1716
        %1915 = vmatprep.subr.mxu0 %v1721
        %1916 = vmatpush1.msra.mxu0 %v1720
        %1917 = vmatprep.subr.mxu0 %v1725
        %1918 = vmatpush1.msra.mxu0 %v1724
        %1919 = vmatprep.subr.mxu0 %v1729
        %1920 = vmatpush1.msra.mxu0 %v1728
        %1921 = vmatprep.subr.mxu0 %v1733
        %1922 = vmatpush1.msra.mxu0 %v1732
        %1923 = vmatprep.subr.mxu0 %v1737
        %1924 = vmatpush1.msra.mxu0 %v1736
        %1925 = vmatprep.subr.mxu0 %v1741
        %1926 = vmatpush1.msra.mxu0 %v1740
        %1927 = vmatprep.subr.mxu0 %v1745
        %1928 = vmatpush1.msra.mxu0 %v1744
        %1929 = vmatprep.subr.mxu0 %v1749
        %1930 = vmatpush1.msra.mxu0 %v1748
        %1931 = vmatprep.subr.mxu0 %v1753
        %1932 = vmatpush1.msra.mxu0 %v1752
        %1933 = vmatprep.subr.mxu0 %v1757
        %1934 = vmatpush1.msra.mxu0 %v1756
        %1935 = vmatprep.subr.mxu0 %v1761
        %1936 = vmatpush1.msra.mxu0 %v1760
        %1937 = vmatprep.subr.mxu0 %v1765
        %1938 = vmatpush1.msra.mxu0 %v1764
        %1939 = vmatprep.subr.mxu0 %v1769
        %1940 = vmatpush1.msra.mxu0 %v1768
        %1941 = vmatprep.subr.mxu0 %v1773
        %1942 = vmatpush1.msra.mxu0 %v1772
        %1943 = vmatprep.subr.mxu0 %v1777
        %1944 = vmatpush1.msra.mxu0 %v1776
        %1945 = vmatprep.subr.mxu0 %v1781
        %1946 = vmatpush1.msra.mxu0 %v1780
        %1947 = vmatprep.subr.mxu0 %v1785
        %1948 = vmatpush1.msra.mxu0 %v1784
        %1949 = vmatprep.subr.mxu0 %v1789
        %1950 = vmatpush1.msra.mxu0 %v1788
        %1951 = vmatprep.subr.mxu0 %v1793
        %1952 = vmatpush1.msra.mxu0 %v1792
        %1953 = vmatprep.subr.mxu0 %v1797
        %1954 = vmatpush1.msra.mxu0 %v1796
        %1955 = vmatprep.subr.mxu0 %v1801
        %1956 = vmatpush1.msra.mxu0 %v1800
        %1957 = vmatprep.subr.mxu0 %v1805
        %1958 = vmatpush1.msra.mxu0 %v1804
        %1959 = vmatprep.subr.mxu0 %v1809
        %1960 = vmatpush1.msra.mxu0 %v1808
        %1961 = vmatprep.subr.mxu0 %v1813
        %1962 = vmatpush1.msra.mxu0 %v1812
        %1963 = vmatprep.subr.mxu0 %v1817
        %1964 = vmatpush1.msra.mxu0 %v1816
        %1965 = vmatprep.subr.mxu0 %v1821
        %1966 = vmatpush1.msra.mxu0 %v1820
        %1967 = vmatprep.subr.mxu0 %v1825
        %1968 = vmatpush1.msra.mxu0 %v1824
        %1969 = vmatprep.subr.mxu0 %v1829
        %1970 = vmatpush1.msra.mxu0 %v1828
        %1971 = vmatprep.mubr.f32.mxu0 %v1694
        %1972 = vmatmul.mubr.f32.gmra.mrb[0].mxu0 %v1692
        %v1973 = vpop.f32.mrb[0].mxu0
        %v1974 = vadd.f32 0.0, %v1973
        %v1975 = vpop.f32.mrb[0].mxu0
        %v1976 = vadd.f32 0.0, %v1975
        %1977 = vmatprep.mubr.f32.mxu0 %v1700
        %1978 = vmatmul.mubr.f32.gmra.mrb[0].mxu0 %v1698
        %v1979 = vpop.f32.mrb[0].mxu0
        %v1980 = vadd.f32 0.0, %v1979
        %v1981 = vpop.f32.mrb[0].mxu0
        %v1982 = vadd.f32 0.0, %v1981
        %1983 = vdwg.mxu0
        %v1984 = vld [vmem:[%s952] sm:$0xff]
        %v1985 = vld [vmem:[%s952 + $0x8] sm:$0xff]
        %v1986 = vld [vmem:[%s952 + $0x10] sm:$0xff]
        %v1987 = vld [vmem:[%s952 + $0x18] sm:$0xff]
        %v1988 = vld [vmem:[%s786] sm:$0xff]
        %v1989 = vld [vmem:[%s786 + $0x8] sm:$0xff]
        %v1990 = vld [vmem:[%s786 + $0x10] sm:$0xff]
        %v1991 = vld [vmem:[%s786 + $0x18] sm:$0xff]
        %v1992 = vmul.f32 %v1897, %v1984
        %v1993 = vmul.f32 %v1899, %v1985
        %v1994 = vmul.f32 %v1903, %v1986
        %v1995 = vmul.f32 %v1905, %v1987
        %v1996 = vmul.f32 %v1974, %v1988
        %v1997 = vmul.f32 %v1976, %v1989
        %v1998 = vmul.f32 %v1980, %v1990
        %v1999 = vmul.f32 %v1982, %v1991
        %v2000 = vsub.f32 %v1992, %v1996
        %v2001 = vsub.f32 %v1993, %v1997
        %v2002 = vsub.f32 %v1994, %v1998
        %v2003 = vsub.f32 %v1995, %v1999
        %v2004 = vmul.f32 %v1897, %v1988
        %v2005 = vmul.f32 %v1899, %v1989
        %v2006 = vmul.f32 %v1903, %v1990
        %v2007 = vmul.f32 %v1905, %v1991
        %v2008 = vmul.f32 %v1974, %v1984
        %v2009 = vmul.f32 %v1976, %v1985
        %v2010 = vmul.f32 %v1980, %v1986
        %v2011 = vmul.f32 %v1982, %v1987
        %v2012 = vadd.f32 %v2004, %v2008
        %v2013 = vadd.f32 %v2005, %v2009
        %v2014 = vadd.f32 %v2006, %v2010
        %v2015 = vadd.f32 %v2007, %v2011
        %v2016 = vld [vmem:[%s14] sm:$0xff]
        %v2017 = vld [vmem:[%s14 + $0x8] sm:$0xff]
        %v2018 = vld [vmem:[%s14 + $0x10] sm:$0xff]
        %v2019 = vld [vmem:[%s14 + $0x18] sm:$0xff]
        %v2020 = vld [vmem:[%s14 + $0x20] sm:$0xff]
        %v2021 = vld [vmem:[%s14 + $0x28] sm:$0xff]
        %v2022 = vld [vmem:[%s14 + $0x30] sm:$0xff]
        %v2023 = vld [vmem:[%s14 + $0x38] sm:$0xff]
        %v2024 = vld [vmem:[%s14 + $0x40] sm:$0xff]
        %v2025 = vld [vmem:[%s14 + $0x48] sm:$0xff]
        %v2026 = vld [vmem:[%s14 + $0x50] sm:$0xff]
        %v2027 = vld [vmem:[%s14 + $0x58] sm:$0xff]
        %v2028 = vld [vmem:[%s14 + $0x60] sm:$0xff]
        %v2029 = vld [vmem:[%s14 + $0x68] sm:$0xff]
        %v2030 = vld [vmem:[%s14 + $0x70] sm:$0xff]
        %v2031 = vld [vmem:[%s14 + $0x78] sm:$0xff]
        %v2032 = vld [vmem:[%s14 + $0x80] sm:$0xff]
        %v2033 = vld [vmem:[%s14 + $0x88] sm:$0xff]
        %v2034 = vld [vmem:[%s14 + $0x90] sm:$0xff]
        %v2035 = vld [vmem:[%s14 + $0x98] sm:$0xff]
        %v2036 = vld [vmem:[%s14 + $0xa0] sm:$0xff]
        %v2037 = vld [vmem:[%s14 + $0xa8] sm:$0xff]
        %v2038 = vld [vmem:[%s14 + $0xb0] sm:$0xff]
        %v2039 = vld [vmem:[%s14 + $0xb8] sm:$0xff]
        %v2040 = vld [vmem:[%s14 + $0xc0] sm:$0xff]
        %v2041 = vld [vmem:[%s14 + $0xc8] sm:$0xff]
        %v2042 = vld [vmem:[%s14 + $0xd0] sm:$0xff]
        %v2043 = vld [vmem:[%s14 + $0xd8] sm:$0xff]
        %v2044 = vld [vmem:[%s14 + $0xe0] sm:$0xff]
        %v2045 = vld [vmem:[%s14 + $0xe8] sm:$0xff]
        %v2046 = vld [vmem:[%s14 + $0xf0] sm:$0xff]
        %v2047 = vld [vmem:[%s14 + $0xf8] sm:$0xff]
        %v2048 = vld [vmem:[%s14 + $0x100] sm:$0xff]
        %v2049 = vld [vmem:[%s14 + $0x108] sm:$0xff]
        %v2050 = vld [vmem:[%s14 + $0x110] sm:$0xff]
        %v2051 = vld [vmem:[%s14 + $0x118] sm:$0xff]
        %v2052 = vld [vmem:[%s14 + $0x120] sm:$0xff]
        %v2053 = vld [vmem:[%s14 + $0x128] sm:$0xff]
        %v2054 = vld [vmem:[%s14 + $0x130] sm:$0xff]
        %v2055 = vld [vmem:[%s14 + $0x138] sm:$0xff]
        %v2056 = vld [vmem:[%s14 + $0x140] sm:$0xff]
        %v2057 = vld [vmem:[%s14 + $0x148] sm:$0xff]
        %v2058 = vld [vmem:[%s14 + $0x150] sm:$0xff]
        %v2059 = vld [vmem:[%s14 + $0x158] sm:$0xff]
        %v2060 = vld [vmem:[%s14 + $0x160] sm:$0xff]
        %v2061 = vld [vmem:[%s14 + $0x168] sm:$0xff]
        %v2062 = vld [vmem:[%s14 + $0x170] sm:$0xff]
        %v2063 = vld [vmem:[%s14 + $0x178] sm:$0xff]
        %v2064 = vld [vmem:[%s14 + $0x180] sm:$0xff]
        %v2065 = vld [vmem:[%s14 + $0x188] sm:$0xff]
        %v2066 = vld [vmem:[%s14 + $0x190] sm:$0xff]
        %v2067 = vld [vmem:[%s14 + $0x198] sm:$0xff]
        %v2068 = vld [vmem:[%s14 + $0x1a0] sm:$0xff]
        %v2069 = vld [vmem:[%s14 + $0x1a8] sm:$0xff]
        %v2070 = vld [vmem:[%s14 + $0x1b0] sm:$0xff]
        %v2071 = vld [vmem:[%s14 + $0x1b8] sm:$0xff]
        %v2072 = vld [vmem:[%s14 + $0x1c0] sm:$0xff]
        %v2073 = vld [vmem:[%s14 + $0x1c8] sm:$0xff]
        %v2074 = vld [vmem:[%s14 + $0x1d0] sm:$0xff]
        %v2075 = vld [vmem:[%s14 + $0x1d8] sm:$0xff]
        %v2076 = vld [vmem:[%s14 + $0x1e0] sm:$0xff]
        %v2077 = vld [vmem:[%s14 + $0x1e8] sm:$0xff]
        %v2078 = vld [vmem:[%s14 + $0x1f0] sm:$0xff]
        %v2079 = vld [vmem:[%s14 + $0x1f8] sm:$0xff]
        %v2080 = vld [vmem:[%s14 + $0x200] sm:$0xff]
        %v2081 = vld [vmem:[%s14 + $0x208] sm:$0xff]
        %v2082 = vld [vmem:[%s14 + $0x210] sm:$0xff]
        %v2083 = vld [vmem:[%s14 + $0x218] sm:$0xff]
        %v2084 = vld [vmem:[%s14 + $0x220] sm:$0xff]
        %v2085 = vld [vmem:[%s14 + $0x228] sm:$0xff]
        %v2086 = vld [vmem:[%s14 + $0x230] sm:$0xff]
        %v2087 = vld [vmem:[%s14 + $0x238] sm:$0xff]
        %v2088 = vld [vmem:[%s14 + $0x240] sm:$0xff]
        %v2089 = vld [vmem:[%s14 + $0x248] sm:$0xff]
        %v2090 = vld [vmem:[%s14 + $0x250] sm:$0xff]
        %v2091 = vld [vmem:[%s14 + $0x258] sm:$0xff]
        %v2092 = vld [vmem:[%s14 + $0x260] sm:$0xff]
        %v2093 = vld [vmem:[%s14 + $0x268] sm:$0xff]
        %v2094 = vld [vmem:[%s14 + $0x270] sm:$0xff]
        %v2095 = vld [vmem:[%s14 + $0x278] sm:$0xff]
        %v2096 = vld [vmem:[%s14 + $0x280] sm:$0xff]
        %v2097 = vld [vmem:[%s14 + $0x288] sm:$0xff]
        %v2098 = vld [vmem:[%s14 + $0x290] sm:$0xff]
        %v2099 = vld [vmem:[%s14 + $0x298] sm:$0xff]
        %v2100 = vld [vmem:[%s14 + $0x2a0] sm:$0xff]
        %v2101 = vld [vmem:[%s14 + $0x2a8] sm:$0xff]
        %v2102 = vld [vmem:[%s14 + $0x2b0] sm:$0xff]
        %v2103 = vld [vmem:[%s14 + $0x2b8] sm:$0xff]
        %v2104 = vld [vmem:[%s14 + $0x2c0] sm:$0xff]
        %v2105 = vld [vmem:[%s14 + $0x2c8] sm:$0xff]
        %v2106 = vld [vmem:[%s14 + $0x2d0] sm:$0xff]
        %v2107 = vld [vmem:[%s14 + $0x2d8] sm:$0xff]
        %v2108 = vld [vmem:[%s14 + $0x2e0] sm:$0xff]
        %v2109 = vld [vmem:[%s14 + $0x2e8] sm:$0xff]
        %v2110 = vld [vmem:[%s14 + $0x2f0] sm:$0xff]
        %v2111 = vld [vmem:[%s14 + $0x2f8] sm:$0xff]
        %v2112 = vld [vmem:[%s14 + $0x300] sm:$0xff]
        %v2113 = vld [vmem:[%s14 + $0x308] sm:$0xff]
        %v2114 = vld [vmem:[%s14 + $0x310] sm:$0xff]
        %v2115 = vld [vmem:[%s14 + $0x318] sm:$0xff]
        %v2116 = vld [vmem:[%s14 + $0x320] sm:$0xff]
        %v2117 = vld [vmem:[%s14 + $0x328] sm:$0xff]
        %v2118 = vld [vmem:[%s14 + $0x330] sm:$0xff]
        %v2119 = vld [vmem:[%s14 + $0x338] sm:$0xff]
        %v2120 = vld [vmem:[%s14 + $0x340] sm:$0xff]
        %v2121 = vld [vmem:[%s14 + $0x348] sm:$0xff]
        %v2122 = vld [vmem:[%s14 + $0x350] sm:$0xff]
        %v2123 = vld [vmem:[%s14 + $0x358] sm:$0xff]
        %v2124 = vld [vmem:[%s14 + $0x360] sm:$0xff]
        %v2125 = vld [vmem:[%s14 + $0x368] sm:$0xff]
        %v2126 = vld [vmem:[%s14 + $0x370] sm:$0xff]
        %v2127 = vld [vmem:[%s14 + $0x378] sm:$0xff]
        %v2128 = vld [vmem:[%s14 + $0x380] sm:$0xff]
        %v2129 = vld [vmem:[%s14 + $0x388] sm:$0xff]
        %v2130 = vld [vmem:[%s14 + $0x390] sm:$0xff]
        %v2131 = vld [vmem:[%s14 + $0x398] sm:$0xff]
        %v2132 = vld [vmem:[%s14 + $0x3a0] sm:$0xff]
        %v2133 = vld [vmem:[%s14 + $0x3a8] sm:$0xff]
        %v2134 = vld [vmem:[%s14 + $0x3b0] sm:$0xff]
        %v2135 = vld [vmem:[%s14 + $0x3b8] sm:$0xff]
        %v2136 = vld [vmem:[%s14 + $0x3c0] sm:$0xff]
        %v2137 = vld [vmem:[%s14 + $0x3c8] sm:$0xff]
        %v2138 = vld [vmem:[%s14 + $0x3d0] sm:$0xff]
        %v2139 = vld [vmem:[%s14 + $0x3d8] sm:$0xff]
        %v2140 = vld [vmem:[%s14 + $0x3e0] sm:$0xff]
        %v2141 = vld [vmem:[%s14 + $0x3e8] sm:$0xff]
        %v2142 = vld [vmem:[%s14 + $0x3f0] sm:$0xff]
        %v2143 = vld [vmem:[%s14 + $0x3f8] sm:$0xff]
        %2144 = vmatprep.subr.mxu0 %v2017
        %2145 = vmatpush1.msra.mxu0 %v2016
        %2146 = vmatprep.subr.mxu0 %v2021
        %2147 = vmatpush1.msra.mxu0 %v2020
        %2148 = vmatprep.subr.mxu0 %v2025
        %2149 = vmatpush1.msra.mxu0 %v2024
        %2150 = vmatprep.subr.mxu0 %v2029
        %2151 = vmatpush1.msra.mxu0 %v2028
        %2152 = vmatprep.subr.mxu0 %v2033
        %2153 = vmatpush1.msra.mxu0 %v2032
        %2154 = vmatprep.subr.mxu0 %v2037
        %2155 = vmatpush1.msra.mxu0 %v2036
        %2156 = vmatprep.subr.mxu0 %v2041
        %2157 = vmatpush1.msra.mxu0 %v2040
        %2158 = vmatprep.subr.mxu0 %v2045
        %2159 = vmatpush1.msra.mxu0 %v2044
        %2160 = vmatprep.subr.mxu0 %v2049
        %2161 = vmatpush1.msra.mxu0 %v2048
        %2162 = vmatprep.subr.mxu0 %v2053
        %2163 = vmatpush1.msra.mxu0 %v2052
        %2164 = vmatprep.subr.mxu0 %v2057
        %2165 = vmatpush1.msra.mxu0 %v2056
        %2166 = vmatprep.subr.mxu0 %v2061
        %2167 = vmatpush1.msra.mxu0 %v2060
        %2168 = vmatprep.subr.mxu0 %v2065
        %2169 = vmatpush1.msra.mxu0 %v2064
        %2170 = vmatprep.subr.mxu0 %v2069
        %2171 = vmatpush1.msra.mxu0 %v2068
        %2172 = vmatprep.subr.mxu0 %v2073
        %2173 = vmatpush1.msra.mxu0 %v2072
        %2174 = vmatprep.subr.mxu0 %v2077
        %2175 = vmatpush1.msra.mxu0 %v2076
        %2176 = vmatprep.subr.mxu0 %v2081
        %2177 = vmatpush1.msra.mxu0 %v2080
        %2178 = vmatprep.subr.mxu0 %v2085
        %2179 = vmatpush1.msra.mxu0 %v2084
        %2180 = vmatprep.subr.mxu0 %v2089
        %2181 = vmatpush1.msra.mxu0 %v2088
        %2182 = vmatprep.subr.mxu0 %v2093
        %2183 = vmatpush1.msra.mxu0 %v2092
        %2184 = vmatprep.subr.mxu0 %v2097
        %2185 = vmatpush1.msra.mxu0 %v2096
        %2186 = vmatprep.subr.mxu0 %v2101
        %2187 = vmatpush1.msra.mxu0 %v2100
        %2188 = vmatprep.subr.mxu0 %v2105
        %2189 = vmatpush1.msra.mxu0 %v2104
        %2190 = vmatprep.subr.mxu0 %v2109
        %2191 = vmatpush1.msra.mxu0 %v2108
        %2192 = vmatprep.subr.mxu0 %v2113
        %2193 = vmatpush1.msra.mxu0 %v2112
        %2194 = vmatprep.subr.mxu0 %v2117
        %2195 = vmatpush1.msra.mxu0 %v2116
        %2196 = vmatprep.subr.mxu0 %v2121
        %2197 = vmatpush1.msra.mxu0 %v2120
        %2198 = vmatprep.subr.mxu0 %v2125
        %2199 = vmatpush1.msra.mxu0 %v2124
        %2200 = vmatprep.subr.mxu0 %v2129
        %2201 = vmatpush1.msra.mxu0 %v2128
        %2202 = vmatprep.subr.mxu0 %v2133
        %2203 = vmatpush1.msra.mxu0 %v2132
        %2204 = vmatprep.subr.mxu0 %v2137
        %2205 = vmatpush1.msra.mxu0 %v2136
        %2206 = vmatprep.subr.mxu0 %v2141
        %2207 = vmatpush1.msra.mxu0 %v2140
        %2208 = vmatprep.mubr.f32.mxu0 %v2001
        %2209 = vmatmul.mubr.f32.gmra.mrb[0].mxu0 %v2000
        %v2210 = vpop.f32.mrb[0].mxu0
        %v2211 = vadd.f32 0.0, %v2210
        %v2212 = vpop.f32.mrb[0].mxu0
        %v2213 = vadd.f32 0.0, %v2212
        %2214 = vmatprep.mubr.f32.mxu0 %v2003
        %2215 = vmatmul.mubr.f32.gmra.mrb[0].mxu0 %v2002
        %v2216 = vpop.f32.mrb[0].mxu0
        %v2217 = vadd.f32 0.0, %v2216
        %v2218 = vpop.f32.mrb[0].mxu0
        %v2219 = vadd.f32 0.0, %v2218
        %2220 = vmatprep.mubr.f32.mxu0 %v2013
        %2221 = vmatmul.mubr.f32.gmra.mrb[0].mxu0 %v2012
        %v2222 = vpop.f32.mrb[0].mxu0
        %v2223 = vadd.f32 0.0, %v2222
        %v2224 = vpop.f32.mrb[0].mxu0
        %v2225 = vadd.f32 0.0, %v2224
        %2226 = vmatprep.mubr.f32.mxu0 %v2015
        %2227 = vmatmul.mubr.f32.gmra.mrb[0].mxu0 %v2014
        %v2228 = vpop.f32.mrb[0].mxu0
        %v2229 = vadd.f32 0.0, %v2228
        %v2230 = vpop.f32.mrb[0].mxu0
        %v2231 = vadd.f32 0.0, %v2230
        %2232 = vdwg.mxu0
        %2233 = vmatprep.subr.mxu0 %v2019
        %2234 = vmatpush1.msra.mxu0 %v2018
        %2235 = vmatprep.subr.mxu0 %v2023
        %2236 = vmatpush1.msra.mxu0 %v2022
        %2237 = vmatprep.subr.mxu0 %v2027
        %2238 = vmatpush1.msra.mxu0 %v2026
        %2239 = vmatprep.subr.mxu0 %v2031
        %2240 = vmatpush1.msra.mxu0 %v2030
        %2241 = vmatprep.subr.mxu0 %v2035
        %2242 = vmatpush1.msra.mxu0 %v2034
        %2243 = vmatprep.subr.mxu0 %v2039
        %2244 = vmatpush1.msra.mxu0 %v2038
        %2245 = vmatprep.subr.mxu0 %v2043
        %2246 = vmatpush1.msra.mxu0 %v2042
        %2247 = vmatprep.subr.mxu0 %v2047
        %2248 = vmatpush1.msra.mxu0 %v2046
        %2249 = vmatprep.subr.mxu0 %v2051
        %2250 = vmatpush1.msra.mxu0 %v2050
        %2251 = vmatprep.subr.mxu0 %v2055
        %2252 = vmatpush1.msra.mxu0 %v2054
        %2253 = vmatprep.subr.mxu0 %v2059
        %2254 = vmatpush1.msra.mxu0 %v2058
        %2255 = vmatprep.subr.mxu0 %v2063
        %2256 = vmatpush1.msra.mxu0 %v2062
        %2257 = vmatprep.subr.mxu0 %v2067
        %2258 = vmatpush1.msra.mxu0 %v2066
        %2259 = vmatprep.subr.mxu0 %v2071
        %2260 = vmatpush1.msra.mxu0 %v2070
        %2261 = vmatprep.subr.mxu0 %v2075
        %2262 = vmatpush1.msra.mxu0 %v2074
        %2263 = vmatprep.subr.mxu0 %v2079
        %2264 = vmatpush1.msra.mxu0 %v2078
        %2265 = vmatprep.subr.mxu0 %v2083
        %2266 = vmatpush1.msra.mxu0 %v2082
        %2267 = vmatprep.subr.mxu0 %v2087
        %2268 = vmatpush1.msra.mxu0 %v2086
        %2269 = vmatprep.subr.mxu0 %v2091
        %2270 = vmatpush1.msra.mxu0 %v2090
        %2271 = vmatprep.subr.mxu0 %v2095
        %2272 = vmatpush1.msra.mxu0 %v2094
        %2273 = vmatprep.subr.mxu0 %v2099
        %2274 = vmatpush1.msra.mxu0 %v2098
        %2275 = vmatprep.subr.mxu0 %v2103
        %2276 = vmatpush1.msra.mxu0 %v2102
        %2277 = vmatprep.subr.mxu0 %v2107
        %2278 = vmatpush1.msra.mxu0 %v2106
        %2279 = vmatprep.subr.mxu0 %v2111
        %2280 = vmatpush1.msra.mxu0 %v2110
        %2281 = vmatprep.subr.mxu0 %v2115
        %2282 = vmatpush1.msra.mxu0 %v2114
        %2283 = vmatprep.subr.mxu0 %v2119
        %2284 = vmatpush1.msra.mxu0 %v2118
        %2285 = vmatprep.subr.mxu0 %v2123
        %2286 = vmatpush1.msra.mxu0 %v2122
        %2287 = vmatprep.subr.mxu0 %v2127
        %2288 = vmatpush1.msra.mxu0 %v2126
        %2289 = vmatprep.subr.mxu0 %v2131
        %2290 = vmatpush1.msra.mxu0 %v2130
        %2291 = vmatprep.subr.mxu0 %v2135
        %2292 = vmatpush1.msra.mxu0 %v2134
        %2293 = vmatprep.subr.mxu0 %v2139
        %2294 = vmatpush1.msra.mxu0 %v2138
        %2295 = vmatprep.subr.mxu0 %v2143
        %2296 = vmatpush1.msra.mxu0 %v2142
        %2297 = vmatprep.mubr.f32.mxu0 %v2001
        %2298 = vmatmul.mubr.f32.gmra.mrb[0].mxu0 %v2000
        %v2299 = vpop.f32.mrb[0].mxu0
        %v2300 = vadd.f32 0.0, %v2299
        %v2301 = vpop.f32.mrb[0].mxu0
        %v2302 = vadd.f32 0.0, %v2301
        %2303 = vmatprep.mubr.f32.mxu0 %v2003
        %2304 = vmatmul.mubr.f32.gmra.mrb[0].mxu0 %v2002
        %v2305 = vpop.f32.mrb[0].mxu0
        %v2306 = vadd.f32 0.0, %v2305
        %v2307 = vpop.f32.mrb[0].mxu0
        %v2308 = vadd.f32 0.0, %v2307
        %2309 = vmatprep.mubr.f32.mxu0 %v2013
        %2310 = vmatmul.mubr.f32.gmra.mrb[0].mxu0 %v2012
        %v2311 = vpop.f32.mrb[0].mxu0
        %v2312 = vadd.f32 0.0, %v2311
        %v2313 = vpop.f32.mrb[0].mxu0
        %v2314 = vadd.f32 0.0, %v2313
        %2315 = vmatprep.mubr.f32.mxu0 %v2015
        %2316 = vmatmul.mubr.f32.gmra.mrb[0].mxu0 %v2014
        %v2317 = vpop.f32.mrb[0].mxu0
        %v2318 = vadd.f32 0.0, %v2317
        %v2319 = vpop.f32.mrb[0].mxu0
        %v2320 = vadd.f32 0.0, %v2319
        %2321 = vdwg.mxu0
        %v2322 = vsub.f32 %v2211, %v2312
        %v2323 = vsub.f32 %v2213, %v2314
        %v2324 = vsub.f32 %v2217, %v2318
        %v2325 = vsub.f32 %v2219, %v2320
        %v2326 = vadd.f32 %v2300, %v2223
        %v2327 = vadd.f32 %v2302, %v2225
        %v2328 = vadd.f32 %v2306, %v2229
        %v2329 = vadd.f32 %v2308, %v2231
        %v2330 = vmul.f32 %v2322, %v2322
        %v2331 = vmul.f32 %v2323, %v2323
        %v2332 = vmul.f32 %v2324, %v2324
        %v2333 = vmul.f32 %v2325, %v2325
        %v2334 = vmul.f32 %v2326, %v2326
        %v2335 = vmul.f32 %v2327, %v2327
        %v2336 = vmul.f32 %v2328, %v2328
        %v2337 = vmul.f32 %v2329, %v2329
        %v2338 = vadd.f32 %v2330, %v2334
        %v2339 = vadd.f32 %v2331, %v2335
        %v2340 = vadd.f32 %v2332, %v2336
        %v2341 = vadd.f32 %v2333, %v2337
        %v2342 = vrsqrt.pop %v2338
        %v2343 = vmul.f32 %v2338, %v2342
        %vm2344 = vcmp.eq.f32.partialorder %v2338, inf
        %v2345 = vsel %vm2344, %v2338, %v2343
        %vm2346 = vcmp.eq.f32.partialorder %v2338, 0.0
        %v2347 = vand.u32 %v2338, 2147483648
        %v2348 = vsel %vm2346, %v2347, %v2345
        %v2349 = vrsqrt.pop %v2339
        %v2350 = vmul.f32 %v2339, %v2349
        %vm2351 = vcmp.eq.f32.partialorder %v2339, inf
        %v2352 = vsel %vm2351, %v2339, %v2350
        %vm2353 = vcmp.eq.f32.partialorder %v2339, 0.0
        %v2354 = vand.u32 %v2339, 2147483648
        %v2355 = vsel %vm2353, %v2354, %v2352
        %v2356 = vrsqrt.pop %v2340
        %v2357 = vmul.f32 %v2340, %v2356
        %vm2358 = vcmp.eq.f32.partialorder %v2340, inf
        %v2359 = vsel %vm2358, %v2340, %v2357
        %vm2360 = vcmp.eq.f32.partialorder %v2340, 0.0
        %v2361 = vand.u32 %v2340, 2147483648
        %v2362 = vsel %vm2360, %v2361, %v2359
        %v2363 = vrsqrt.pop %v2341
        %v2364 = vmul.f32 %v2341, %v2363
        %vm2365 = vcmp.eq.f32.partialorder %v2341, inf
        %v2366 = vsel %vm2365, %v2341, %v2364
        %vm2367 = vcmp.eq.f32.partialorder %v2341, 0.0
        %v2368 = vand.u32 %v2341, 2147483648
        %v2369 = vsel %vm2367, %v2368, %v2366
        %v2370 = vld [vmem:[%s15] sm:$0xff]
        %v2371 = vld [vmem:[%s15 + $0x8] sm:$0xff]
        %v2372 = vld [vmem:[%s15 + $0x10] sm:$0xff]
        %v2373 = vld [vmem:[%s15 + $0x18] sm:$0xff]
        %v2374 = vld [vmem:[%s15 + $0x20] sm:$0xff]
        %v2375 = vld [vmem:[%s15 + $0x28] sm:$0xff]
        %v2376 = vld [vmem:[%s15 + $0x30] sm:$0xff]
        %v2377 = vld [vmem:[%s15 + $0x38] sm:$0xff]
        %v2378 = vld [vmem:[%s15 + $0x40] sm:$0xff]
        %v2379 = vld [vmem:[%s15 + $0x48] sm:$0xff]
        %v2380 = vld [vmem:[%s15 + $0x50] sm:$0xff]
        %v2381 = vld [vmem:[%s15 + $0x58] sm:$0xff]
        %v2382 = vld [vmem:[%s15 + $0x60] sm:$0xff]
        %v2383 = vld [vmem:[%s15 + $0x68] sm:$0xff]
        %v2384 = vld [vmem:[%s15 + $0x70] sm:$0xff]
        %v2385 = vld [vmem:[%s15 + $0x78] sm:$0xff]
        %v2386 = vld [vmem:[%s15 + $0x80] sm:$0xff]
        %v2387 = vld [vmem:[%s15 + $0x88] sm:$0xff]
        %v2388 = vld [vmem:[%s15 + $0x90] sm:$0xff]
        %v2389 = vld [vmem:[%s15 + $0x98] sm:$0xff]
        %v2390 = vld [vmem:[%s15 + $0xa0] sm:$0xff]
        %v2391 = vld [vmem:[%s15 + $0xa8] sm:$0xff]
        %v2392 = vld [vmem:[%s15 + $0xb0] sm:$0xff]
        %v2393 = vld [vmem:[%s15 + $0xb8] sm:$0xff]
        %v2394 = vld [vmem:[%s15 + $0xc0] sm:$0xff]
        %v2395 = vld [vmem:[%s15 + $0xc8] sm:$0xff]
        %v2396 = vld [vmem:[%s15 + $0xd0] sm:$0xff]
        %v2397 = vld [vmem:[%s15 + $0xd8] sm:$0xff]
        %v2398 = vld [vmem:[%s15 + $0xe0] sm:$0xff]
        %v2399 = vld [vmem:[%s15 + $0xe8] sm:$0xff]
        %v2400 = vld [vmem:[%s15 + $0xf0] sm:$0xff]
        %v2401 = vld [vmem:[%s15 + $0xf8] sm:$0xff]
        %v2402 = vld [vmem:[%s15 + $0x100] sm:$0xff]
        %v2403 = vld [vmem:[%s15 + $0x108] sm:$0xff]
        %v2404 = vld [vmem:[%s15 + $0x110] sm:$0xff]
        %v2405 = vld [vmem:[%s15 + $0x118] sm:$0xff]
        %v2406 = vld [vmem:[%s15 + $0x120] sm:$0xff]
        %v2407 = vld [vmem:[%s15 + $0x128] sm:$0xff]
        %v2408 = vld [vmem:[%s15 + $0x130] sm:$0xff]
        %v2409 = vld [vmem:[%s15 + $0x138] sm:$0xff]
        %v2410 = vld [vmem:[%s15 + $0x140] sm:$0xff]
        %v2411 = vld [vmem:[%s15 + $0x148] sm:$0xff]
        %v2412 = vld [vmem:[%s15 + $0x150] sm:$0xff]
        %v2413 = vld [vmem:[%s15 + $0x158] sm:$0xff]
        %v2414 = vld [vmem:[%s15 + $0x160] sm:$0xff]
        %v2415 = vld [vmem:[%s15 + $0x168] sm:$0xff]
        %v2416 = vld [vmem:[%s15 + $0x170] sm:$0xff]
        %v2417 = vld [vmem:[%s15 + $0x178] sm:$0xff]
        %v2418 = vld [vmem:[%s15 + $0x180] sm:$0xff]
        %v2419 = vld [vmem:[%s15 + $0x188] sm:$0xff]
        %v2420 = vld [vmem:[%s15 + $0x190] sm:$0xff]
        %v2421 = vld [vmem:[%s15 + $0x198] sm:$0xff]
        %v2422 = vld [vmem:[%s15 + $0x1a0] sm:$0xff]
        %v2423 = vld [vmem:[%s15 + $0x1a8] sm:$0xff]
        %v2424 = vld [vmem:[%s15 + $0x1b0] sm:$0xff]
        %v2425 = vld [vmem:[%s15 + $0x1b8] sm:$0xff]
        %v2426 = vld [vmem:[%s15 + $0x1c0] sm:$0xff]
        %v2427 = vld [vmem:[%s15 + $0x1c8] sm:$0xff]
        %v2428 = vld [vmem:[%s15 + $0x1d0] sm:$0xff]
        %v2429 = vld [vmem:[%s15 + $0x1d8] sm:$0xff]
        %v2430 = vld [vmem:[%s15 + $0x1e0] sm:$0xff]
        %v2431 = vld [vmem:[%s15 + $0x1e8] sm:$0xff]
        %v2432 = vld [vmem:[%s15 + $0x1f0] sm:$0xff]
        %v2433 = vld [vmem:[%s15 + $0x1f8] sm:$0xff]
        %v2434 = vld [vmem:[%s15 + $0x200] sm:$0xff]
        %v2435 = vld [vmem:[%s15 + $0x208] sm:$0xff]
        %v2436 = vld [vmem:[%s15 + $0x210] sm:$0xff]
        %v2437 = vld [vmem:[%s15 + $0x218] sm:$0xff]
        %v2438 = vld [vmem:[%s15 + $0x220] sm:$0xff]
        %v2439 = vld [vmem:[%s15 + $0x228] sm:$0xff]
        %v2440 = vld [vmem:[%s15 + $0x230] sm:$0xff]
        %v2441 = vld [vmem:[%s15 + $0x238] sm:$0xff]
        %v2442 = vld [vmem:[%s15 + $0x240] sm:$0xff]
        %v2443 = vld [vmem:[%s15 + $0x248] sm:$0xff]
        %v2444 = vld [vmem:[%s15 + $0x250] sm:$0xff]
        %v2445 = vld [vmem:[%s15 + $0x258] sm:$0xff]
        %v2446 = vld [vmem:[%s15 + $0x260] sm:$0xff]
        %v2447 = vld [vmem:[%s15 + $0x268] sm:$0xff]
        %v2448 = vld [vmem:[%s15 + $0x270] sm:$0xff]
        %v2449 = vld [vmem:[%s15 + $0x278] sm:$0xff]
        %v2450 = vld [vmem:[%s15 + $0x280] sm:$0xff]
        %v2451 = vld [vmem:[%s15 + $0x288] sm:$0xff]
        %v2452 = vld [vmem:[%s15 + $0x290] sm:$0xff]
        %v2453 = vld [vmem:[%s15 + $0x298] sm:$0xff]
        %v2454 = vld [vmem:[%s15 + $0x2a0] sm:$0xff]
        %v2455 = vld [vmem:[%s15 + $0x2a8] sm:$0xff]
        %v2456 = vld [vmem:[%s15 + $0x2b0] sm:$0xff]
        %v2457 = vld [vmem:[%s15 + $0x2b8] sm:$0xff]
        %v2458 = vld [vmem:[%s15 + $0x2c0] sm:$0xff]
        %v2459 = vld [vmem:[%s15 + $0x2c8] sm:$0xff]
        %v2460 = vld [vmem:[%s15 + $0x2d0] sm:$0xff]
        %v2461 = vld [vmem:[%s15 + $0x2d8] sm:$0xff]
        %v2462 = vld [vmem:[%s15 + $0x2e0] sm:$0xff]
        %v2463 = vld [vmem:[%s15 + $0x2e8] sm:$0xff]
        %v2464 = vld [vmem:[%s15 + $0x2f0] sm:$0xff]
        %v2465 = vld [vmem:[%s15 + $0x2f8] sm:$0xff]
        %v2466 = vld [vmem:[%s15 + $0x300] sm:$0xff]
        %v2467 = vld [vmem:[%s15 + $0x308] sm:$0xff]
        %v2468 = vld [vmem:[%s15 + $0x310] sm:$0xff]
        %v2469 = vld [vmem:[%s15 + $0x318] sm:$0xff]
        %v2470 = vld [vmem:[%s15 + $0x320] sm:$0xff]
        %v2471 = vld [vmem:[%s15 + $0x328] sm:$0xff]
        %v2472 = vld [vmem:[%s15 + $0x330] sm:$0xff]
        %v2473 = vld [vmem:[%s15 + $0x338] sm:$0xff]
        %v2474 = vld [vmem:[%s15 + $0x340] sm:$0xff]
        %v2475 = vld [vmem:[%s15 + $0x348] sm:$0xff]
        %v2476 = vld [vmem:[%s15 + $0x350] sm:$0xff]
        %v2477 = vld [vmem:[%s15 + $0x358] sm:$0xff]
        %v2478 = vld [vmem:[%s15 + $0x360] sm:$0xff]
        %v2479 = vld [vmem:[%s15 + $0x368] sm:$0xff]
        %v2480 = vld [vmem:[%s15 + $0x370] sm:$0xff]
        %v2481 = vld [vmem:[%s15 + $0x378] sm:$0xff]
        %v2482 = vld [vmem:[%s15 + $0x380] sm:$0xff]
        %v2483 = vld [vmem:[%s15 + $0x388] sm:$0xff]
        %v2484 = vld [vmem:[%s15 + $0x390] sm:$0xff]
        %v2485 = vld [vmem:[%s15 + $0x398] sm:$0xff]
        %v2486 = vld [vmem:[%s15 + $0x3a0] sm:$0xff]
        %v2487 = vld [vmem:[%s15 + $0x3a8] sm:$0xff]
        %v2488 = vld [vmem:[%s15 + $0x3b0] sm:$0xff]
        %v2489 = vld [vmem:[%s15 + $0x3b8] sm:$0xff]
        %v2490 = vld [vmem:[%s15 + $0x3c0] sm:$0xff]
        %v2491 = vld [vmem:[%s15 + $0x3c8] sm:$0xff]
        %v2492 = vld [vmem:[%s15 + $0x3d0] sm:$0xff]
        %v2493 = vld [vmem:[%s15 + $0x3d8] sm:$0xff]
        %v2494 = vld [vmem:[%s15 + $0x3e0] sm:$0xff]
        %v2495 = vld [vmem:[%s15 + $0x3e8] sm:$0xff]
        %v2496 = vld [vmem:[%s15 + $0x3f0] sm:$0xff]
        %v2497 = vld [vmem:[%s15 + $0x3f8] sm:$0xff]
        %2498 = vmatprep.subr.mxu0 %v2371
        %2499 = vmatpush1.msra.mxu0 %v2370
        %2500 = vmatprep.subr.mxu0 %v2375
        %2501 = vmatpush1.msra.mxu0 %v2374
        %2502 = vmatprep.subr.mxu0 %v2379
        %2503 = vmatpush1.msra.mxu0 %v2378
        %2504 = vmatprep.subr.mxu0 %v2383
        %2505 = vmatpush1.msra.mxu0 %v2382
        %2506 = vmatprep.subr.mxu0 %v2387
        %2507 = vmatpush1.msra.mxu0 %v2386
        %2508 = vmatprep.subr.mxu0 %v2391
        %2509 = vmatpush1.msra.mxu0 %v2390
        %2510 = vmatprep.subr.mxu0 %v2395
        %2511 = vmatpush1.msra.mxu0 %v2394
        %2512 = vmatprep.subr.mxu0 %v2399
        %2513 = vmatpush1.msra.mxu0 %v2398
        %2514 = vmatprep.subr.mxu0 %v2403
        %2515 = vmatpush1.msra.mxu0 %v2402
        %2516 = vmatprep.subr.mxu0 %v2407
        %2517 = vmatpush1.msra.mxu0 %v2406
        %2518 = vmatprep.subr.mxu0 %v2411
        %2519 = vmatpush1.msra.mxu0 %v2410
        %2520 = vmatprep.subr.mxu0 %v2415
        %2521 = vmatpush1.msra.mxu0 %v2414
        %2522 = vmatprep.subr.mxu0 %v2419
        %2523 = vmatpush1.msra.mxu0 %v2418
        %2524 = vmatprep.subr.mxu0 %v2423
        %2525 = vmatpush1.msra.mxu0 %v2422
        %2526 = vmatprep.subr.mxu0 %v2427
        %2527 = vmatpush1.msra.mxu0 %v2426
        %2528 = vmatprep.subr.mxu0 %v2431
        %2529 = vmatpush1.msra.mxu0 %v2430
        %2530 = vmatprep.subr.mxu0 %v2435
        %2531 = vmatpush1.msra.mxu0 %v2434
        %2532 = vmatprep.subr.mxu0 %v2439
        %2533 = vmatpush1.msra.mxu0 %v2438
        %2534 = vmatprep.subr.mxu0 %v2443
        %2535 = vmatpush1.msra.mxu0 %v2442
        %2536 = vmatprep.subr.mxu0 %v2447
        %2537 = vmatpush1.msra.mxu0 %v2446
        %2538 = vmatprep.subr.mxu0 %v2451
        %2539 = vmatpush1.msra.mxu0 %v2450
        %2540 = vmatprep.subr.mxu0 %v2455
        %2541 = vmatpush1.msra.mxu0 %v2454
        %2542 = vmatprep.subr.mxu0 %v2459
        %2543 = vmatpush1.msra.mxu0 %v2458
        %2544 = vmatprep.subr.mxu0 %v2463
        %2545 = vmatpush1.msra.mxu0 %v2462
        %2546 = vmatprep.subr.mxu0 %v2467
        %2547 = vmatpush1.msra.mxu0 %v2466
        %2548 = vmatprep.subr.mxu0 %v2471
        %2549 = vmatpush1.msra.mxu0 %v2470
        %2550 = vmatprep.subr.mxu0 %v2475
        %2551 = vmatpush1.msra.mxu0 %v2474
        %2552 = vmatprep.subr.mxu0 %v2479
        %2553 = vmatpush1.msra.mxu0 %v2478
        %2554 = vmatprep.subr.mxu0 %v2483
        %2555 = vmatpush1.msra.mxu0 %v2482
        %2556 = vmatprep.subr.mxu0 %v2487
        %2557 = vmatpush1.msra.mxu0 %v2486
        %2558 = vmatprep.subr.mxu0 %v2491
        %2559 = vmatpush1.msra.mxu0 %v2490
        %2560 = vmatprep.subr.mxu0 %v2495
        %2561 = vmatpush1.msra.mxu0 %v2494
        %2562 = vmatprep.mubr.f32.mxu0 %v997
        %2563 = vmatmul.mubr.f32.gmra.mrb[0].mxu0 %v996
        %v2564 = vpop.f32.mrb[0].mxu0
        %v2565 = vadd.f32 0.0, %v2564
        %v2566 = vpop.f32.mrb[0].mxu0
        %v2567 = vadd.f32 0.0, %v2566
        %2568 = vmatprep.mubr.f32.mxu0 %v999
        %2569 = vmatmul.mubr.f32.gmra.mrb[0].mxu0 %v998
        %v2570 = vpop.f32.mrb[0].mxu0
        %v2571 = vadd.f32 0.0, %v2570
        %v2572 = vpop.f32.mrb[0].mxu0
        %v2573 = vadd.f32 0.0, %v2572
        %2574 = vdwg.mxu0
        %2575 = vmatprep.subr.mxu0 %v2373
        %2576 = vmatpush1.msra.mxu0 %v2372
        %2577 = vmatprep.subr.mxu0 %v2377
        %2578 = vmatpush1.msra.mxu0 %v2376
        %2579 = vmatprep.subr.mxu0 %v2381
        %2580 = vmatpush1.msra.mxu0 %v2380
        %2581 = vmatprep.subr.mxu0 %v2385
        %2582 = vmatpush1.msra.mxu0 %v2384
        %2583 = vmatprep.subr.mxu0 %v2389
        %2584 = vmatpush1.msra.mxu0 %v2388
        %2585 = vmatprep.subr.mxu0 %v2393
        %2586 = vmatpush1.msra.mxu0 %v2392
        %2587 = vmatprep.subr.mxu0 %v2397
        %2588 = vmatpush1.msra.mxu0 %v2396
        %2589 = vmatprep.subr.mxu0 %v2401
        %2590 = vmatpush1.msra.mxu0 %v2400
        %2591 = vmatprep.subr.mxu0 %v2405
        %2592 = vmatpush1.msra.mxu0 %v2404
        %2593 = vmatprep.subr.mxu0 %v2409
        %2594 = vmatpush1.msra.mxu0 %v2408
        %2595 = vmatprep.subr.mxu0 %v2413
        %2596 = vmatpush1.msra.mxu0 %v2412
        %2597 = vmatprep.subr.mxu0 %v2417
        %2598 = vmatpush1.msra.mxu0 %v2416
        %2599 = vmatprep.subr.mxu0 %v2421
        %2600 = vmatpush1.msra.mxu0 %v2420
        %2601 = vmatprep.subr.mxu0 %v2425
        %2602 = vmatpush1.msra.mxu0 %v2424
        %2603 = vmatprep.subr.mxu0 %v2429
        %2604 = vmatpush1.msra.mxu0 %v2428
        %2605 = vmatprep.subr.mxu0 %v2433
        %2606 = vmatpush1.msra.mxu0 %v2432
        %2607 = vmatprep.subr.mxu0 %v2437
        %2608 = vmatpush1.msra.mxu0 %v2436
        %2609 = vmatprep.subr.mxu0 %v2441
        %2610 = vmatpush1.msra.mxu0 %v2440
        %2611 = vmatprep.subr.mxu0 %v2445
        %2612 = vmatpush1.msra.mxu0 %v2444
        %2613 = vmatprep.subr.mxu0 %v2449
        %2614 = vmatpush1.msra.mxu0 %v2448
        %2615 = vmatprep.subr.mxu0 %v2453
        %2616 = vmatpush1.msra.mxu0 %v2452
        %2617 = vmatprep.subr.mxu0 %v2457
        %2618 = vmatpush1.msra.mxu0 %v2456
        %2619 = vmatprep.subr.mxu0 %v2461
        %2620 = vmatpush1.msra.mxu0 %v2460
        %2621 = vmatprep.subr.mxu0 %v2465
        %2622 = vmatpush1.msra.mxu0 %v2464
        %2623 = vmatprep.subr.mxu0 %v2469
        %2624 = vmatpush1.msra.mxu0 %v2468
        %2625 = vmatprep.subr.mxu0 %v2473
        %2626 = vmatpush1.msra.mxu0 %v2472
        %2627 = vmatprep.subr.mxu0 %v2477
        %2628 = vmatpush1.msra.mxu0 %v2476
        %2629 = vmatprep.subr.mxu0 %v2481
        %2630 = vmatpush1.msra.mxu0 %v2480
        %2631 = vmatprep.subr.mxu0 %v2485
        %2632 = vmatpush1.msra.mxu0 %v2484
        %2633 = vmatprep.subr.mxu0 %v2489
        %2634 = vmatpush1.msra.mxu0 %v2488
        %2635 = vmatprep.subr.mxu0 %v2493
        %2636 = vmatpush1.msra.mxu0 %v2492
        %2637 = vmatprep.subr.mxu0 %v2497
        %2638 = vmatpush1.msra.mxu0 %v2496
        %2639 = vmatprep.mubr.f32.mxu0 %v997
        %2640 = vmatmul.mubr.f32.gmra.mrb[0].mxu0 %v996
        %v2641 = vpop.f32.mrb[0].mxu0
        %v2642 = vadd.f32 0.0, %v2641
        %v2643 = vpop.f32.mrb[0].mxu0
        %v2644 = vadd.f32 0.0, %v2643
        %2645 = vmatprep.mubr.f32.mxu0 %v999
        %2646 = vmatmul.mubr.f32.gmra.mrb[0].mxu0 %v998
        %v2647 = vpop.f32.mrb[0].mxu0
        %v2648 = vadd.f32 0.0, %v2647
        %v2649 = vpop.f32.mrb[0].mxu0
        %v2650 = vadd.f32 0.0, %v2649
        %2651 = vdwg.mxu0
        %v2652 = vmul.f32 %v2565, %v2565
        %v2653 = vmul.f32 %v2567, %v2567
        %v2654 = vmul.f32 %v2571, %v2571
        %v2655 = vmul.f32 %v2573, %v2573
        %v2656 = vmul.f32 %v2642, %v2642
        %v2657 = vmul.f32 %v2644, %v2644
        %v2658 = vmul.f32 %v2648, %v2648
        %v2659 = vmul.f32 %v2650, %v2650
        %v2660 = vadd.f32 %v2652, %v2656
        %v2661 = vadd.f32 %v2653, %v2657
        %v2662 = vadd.f32 %v2654, %v2658
        %v2663 = vadd.f32 %v2655, %v2659
        %v2664 = vrsqrt.pop %v2660
        %v2665 = vmul.f32 %v2660, %v2664
        %vm2666 = vcmp.eq.f32.partialorder %v2660, inf
        %v2667 = vsel %vm2666, %v2660, %v2665
        %vm2668 = vcmp.eq.f32.partialorder %v2660, 0.0
        %v2669 = vand.u32 %v2660, 2147483648
        %v2670 = vsel %vm2668, %v2669, %v2667
        %v2671 = vrsqrt.pop %v2661
        %v2672 = vmul.f32 %v2661, %v2671
        %vm2673 = vcmp.eq.f32.partialorder %v2661, inf
        %v2674 = vsel %vm2673, %v2661, %v2672
        %vm2675 = vcmp.eq.f32.partialorder %v2661, 0.0
        %v2676 = vand.u32 %v2661, 2147483648
        %v2677 = vsel %vm2675, %v2676, %v2674
        %v2678 = vrsqrt.pop %v2662
        %v2679 = vmul.f32 %v2662, %v2678
        %vm2680 = vcmp.eq.f32.partialorder %v2662, inf
        %v2681 = vsel %vm2680, %v2662, %v2679
        %vm2682 = vcmp.eq.f32.partialorder %v2662, 0.0
        %v2683 = vand.u32 %v2662, 2147483648
        %v2684 = vsel %vm2682, %v2683, %v2681
        %v2685 = vrsqrt.pop %v2663
        %v2686 = vmul.f32 %v2663, %v2685
        %vm2687 = vcmp.eq.f32.partialorder %v2663, inf
        %v2688 = vsel %vm2687, %v2663, %v2686
        %vm2689 = vcmp.eq.f32.partialorder %v2663, 0.0
        %v2690 = vand.u32 %v2663, 2147483648
        %v2691 = vsel %vm2689, %v2690, %v2688
        %v2692 = vand.u32 2147483647, %v2565
        %v2693 = vand.u32 2147483647, %v2567
        %v2694 = vand.u32 2147483647, %v2571
        %v2695 = vand.u32 2147483647, %v2573
        %v2696 = vand.u32 2147483647, %v2642
        %v2697 = vand.u32 2147483647, %v2644
        %v2698 = vand.u32 2147483647, %v2648
        %v2699 = vand.u32 2147483647, %v2650
        %v2700 = vmax.f32 %v2692, %v2696
        %v2701 = vmax.f32 %v2693, %v2697
        %v2702 = vmax.f32 %v2694, %v2698
        %v2703 = vmax.f32 %v2695, %v2699
        %v2704 = vmin.f32 %v2692, %v2696
        %v2705 = vmin.f32 %v2693, %v2697
        %v2706 = vmin.f32 %v2694, %v2698
        %v2707 = vmin.f32 %v2695, %v2699
        %vm2708 = vcmp.eq.f32.partialorder %v2700, 0.0
        %vm2709 = vcmp.eq.f32.partialorder %v2701, 0.0
        %vm2710 = vcmp.eq.f32.partialorder %v2702, 0.0
        %vm2711 = vcmp.eq.f32.partialorder %v2703, 0.0
        %v2712 = vsel %vm2708, 1.0, %v2700
        %v2713 = vsel %vm2709, 1.0, %v2701
        %v2714 = vsel %vm2710, 1.0, %v2702
        %v2715 = vsel %vm2711, 1.0, %v2703
        %v2716 = vrcp.pop %v2712
        %v2717 = vmul.f32 %v2704, %v2716
        %v2718 = vrcp.pop %v2713
        %v2719 = vmul.f32 %v2705, %v2718
        %v2720 = vrcp.pop %v2714
        %v2721 = vmul.f32 %v2706, %v2720
        %v2722 = vrcp.pop %v2715
        %v2723 = vmul.f32 %v2707, %v2722
        %v2724 = vmul.f32 %v2717, %v2717
        %v2725 = vmul.f32 %v2719, %v2719
        %v2726 = vmul.f32 %v2721, %v2721
        %v2727 = vmul.f32 %v2723, %v2723
        %v2728 = vmul.f32 %v2724, -0.0117212
        %v2729 = vmul.f32 %v2725, -0.0117212
        %v2730 = vmul.f32 %v2726, -0.0117212
        %v2731 = vmul.f32 %v2727, -0.0117212
        %v2732 = vadd.f32 %v2728, 0.05265332
        %v2733 = vadd.f32 %v2729, 0.05265332
        %v2734 = vadd.f32 %v2730, 0.05265332
        %v2735 = vadd.f32 %v2731, 0.05265332
        %v2736 = vmul.f32 %v2732, %v2724
        %v2737 = vmul.f32 %v2733, %v2725
        %v2738 = vmul.f32 %v2734, %v2726
        %v2739 = vmul.f32 %v2735, %v2727
        %v2740 = vadd.f32 %v2736, -0.11643287
        %v2741 = vadd.f32 %v2737, -0.11643287
        %v2742 = vadd.f32 %v2738, -0.11643287
        %v2743 = vadd.f32 %v2739, -0.11643287
        %v2744 = vmul.f32 %v2740, %v2724
        %v2745 = vmul.f32 %v2741, %v2725
        %v2746 = vmul.f32 %v2742, %v2726
        %v2747 = vmul.f32 %v2743, %v2727
        %v2748 = vadd.f32 %v2744, 0.19354346
        %v2749 = vadd.f32 %v2745, 0.19354346
        %v2750 = vadd.f32 %v2746, 0.19354346
        %v2751 = vadd.f32 %v2747, 0.19354346
        %v2752 = vmul.f32 %v2748, %v2724
        %v2753 = vmul.f32 %v2749, %v2725
        %v2754 = vmul.f32 %v2750, %v2726
        %v2755 = vmul.f32 %v2751, %v2727
        %v2756 = vadd.f32 %v2752, -0.33262348
        %v2757 = vadd.f32 %v2753, -0.33262348
        %v2758 = vadd.f32 %v2754, -0.33262348
        %v2759 = vadd.f32 %v2755, -0.33262348
        %v2760 = vmul.f32 %v2756, %v2724
        %v2761 = vmul.f32 %v2757, %v2725
        %v2762 = vmul.f32 %v2758, %v2726
        %v2763 = vmul.f32 %v2759, %v2727
        %v2764 = vadd.f32 %v2760, 0.99997723
        %v2765 = vadd.f32 %v2761, 0.99997723
        %v2766 = vadd.f32 %v2762, 0.99997723
        %v2767 = vadd.f32 %v2763, 0.99997723
        %v2768 = vmul.f32 %v2764, %v2717
        %v2769 = vmul.f32 %v2765, %v2719
        %v2770 = vmul.f32 %v2766, %v2721
        %v2771 = vmul.f32 %v2767, %v2723
        %vm2772 = vcmp.gt.f32.partialorder %v2696, %v2692
        %vm2773 = vcmp.gt.f32.partialorder %v2697, %v2693
        %vm2774 = vcmp.gt.f32.partialorder %v2698, %v2694
        %vm2775 = vcmp.gt.f32.partialorder %v2699, %v2695
        %v2776 = vsub.f32 1.5707964, %v2768
        %v2777 = vsub.f32 1.5707964, %v2769
        %v2778 = vsub.f32 1.5707964, %v2770
        %v2779 = vsub.f32 1.5707964, %v2771
        %v2780 = vsel %vm2772, %v2776, %v2768
        %v2781 = vsel %vm2773, %v2777, %v2769
        %v2782 = vsel %vm2774, %v2778, %v2770
        %v2783 = vsel %vm2775, %v2779, %v2771
        %vm2784 = vcmp.lt.f32.partialorder %v2565, 0.0
        %vm2785 = vcmp.lt.f32.partialorder %v2567, 0.0
        %vm2786 = vcmp.lt.f32.partialorder %v2571, 0.0
        %vm2787 = vcmp.lt.f32.partialorder %v2573, 0.0
        %v2788 = vsub.f32 3.1415927, %v2780
        %v2789 = vsub.f32 3.1415927, %v2781
        %v2790 = vsub.f32 3.1415927, %v2782
        %v2791 = vsub.f32 3.1415927, %v2783
        %v2792 = vsel %vm2784, %v2788, %v2780
        %v2793 = vsel %vm2785, %v2789, %v2781
        %v2794 = vsel %vm2786, %v2790, %v2782
        %v2795 = vsel %vm2787, %v2791, %v2783
        %vm2796 = vcmp.lt.f32.partialorder %v2642, 0.0
        %vm2797 = vcmp.lt.f32.partialorder %v2644, 0.0
        %vm2798 = vcmp.lt.f32.partialorder %v2648, 0.0
        %vm2799 = vcmp.lt.f32.partialorder %v2650, 0.0
        %v2800 = vsub.f32 0.0, %v2792
        %v2801 = vsub.f32 0.0, %v2793
        %v2802 = vsub.f32 0.0, %v2794
        %v2803 = vsub.f32 0.0, %v2795
        %v2804 = vsel %vm2796, %v2800, %v2792
        %v2805 = vsel %vm2797, %v2801, %v2793
        %v2806 = vsel %vm2798, %v2802, %v2794
        %v2807 = vsel %vm2799, %v2803, %v2795
        %v2808 = vld [vmem:[%s943] sm:$0xff]
        %v2809 = vld [vmem:[%s943 + $0x8] sm:$0xff]
        %v2811 = vsel %vm1216, %v2808, 0
        %v2814 = vsel %vm1216, %v2809, 0
        %2816 = vmatprep.subr.mxu0 %v2677
        %2817 = vmatpush1.msra.mxu0 %v2670
        %2818 = vmatprep.subr.mxu0 %v2691
        %2819 = vmatpush1.msra.mxu0 %v2684
        %2820 = vmatprep.subr.mxu0 0.0
        %2821 = vmatpush1.msra.mxu0 0.0
        %2822 = vmatprep.subr.mxu0 0.0
        %2823 = vmatpush1.msra.mxu0 0.0
        %2824 = vmatprep.subr.mxu0 0.0
        %2825 = vmatpush1.msra.mxu0 0.0
        %2826 = vmatprep.subr.mxu0 0.0
        %2827 = vmatpush1.msra.mxu0 0.0
        %2828 = vmatprep.subr.mxu0 0.0
        %2829 = vmatpush1.msra.mxu0 0.0
        %2830 = vmatprep.subr.mxu0 0.0
        %2831 = vmatpush1.msra.mxu0 0.0
        %2832 = vmatprep.subr.mxu0 0.0
        %2833 = vmatpush1.msra.mxu0 0.0
        %2834 = vmatprep.subr.mxu0 0.0
        %2835 = vmatpush1.msra.mxu0 0.0
        %2836 = vmatprep.subr.mxu0 0.0
        %2837 = vmatpush1.msra.mxu0 0.0
        %2838 = vmatprep.subr.mxu0 0.0
        %2839 = vmatpush1.msra.mxu0 0.0
        %2840 = vmatprep.subr.mxu0 0.0
        %2841 = vmatpush1.msra.mxu0 0.0
        %2842 = vmatprep.subr.mxu0 0.0
        %2843 = vmatpush1.msra.mxu0 0.0
        %2844 = vmatprep.subr.mxu0 0.0
        %2845 = vmatpush1.msra.mxu0 0.0
        %2846 = vmatprep.subr.mxu0 0.0
        %2847 = vmatpush1.msra.mxu0 0.0
        %2848 = vmatprep.subr.mxu0 0.0
        %2849 = vmatpush1.msra.mxu0 0.0
        %2850 = vmatprep.subr.mxu0 0.0
        %2851 = vmatpush1.msra.mxu0 0.0
        %2852 = vmatprep.subr.mxu0 0.0
        %2853 = vmatpush1.msra.mxu0 0.0
        %2854 = vmatprep.subr.mxu0 0.0
        %2855 = vmatpush1.msra.mxu0 0.0
        %2856 = vmatprep.subr.mxu0 0.0
        %2857 = vmatpush1.msra.mxu0 0.0
        %2858 = vmatprep.subr.mxu0 0.0
        %2859 = vmatpush1.msra.mxu0 0.0
        %2860 = vmatprep.subr.mxu0 0.0
        %2861 = vmatpush1.msra.mxu0 0.0
        %2862 = vmatprep.subr.mxu0 0.0
        %2863 = vmatpush1.msra.mxu0 0.0
        %2864 = vmatprep.subr.mxu0 0.0
        %2865 = vmatpush1.msra.mxu0 0.0
        %2866 = vmatprep.subr.mxu0 0.0
        %2867 = vmatpush1.msra.mxu0 0.0
        %2868 = vmatprep.subr.mxu0 0.0
        %2869 = vmatpush1.msra.mxu0 0.0
        %2870 = vmatprep.subr.mxu0 0.0
        %2871 = vmatpush1.msra.mxu0 0.0
        %2872 = vmatprep.subr.mxu0 0.0
        %2873 = vmatpush1.msra.mxu0 0.0
        %2874 = vmatprep.subr.mxu0 0.0
        %2875 = vmatpush1.msra.mxu0 0.0
        %2876 = vmatprep.subr.mxu0 0.0
        %2877 = vmatpush1.msra.mxu0 0.0
        %2878 = vmatprep.subr.mxu0 0.0
        %2879 = vmatpush1.msra.mxu0 0.0
        %2880 = vmatprep.mubr.f32.mxu0 0.0
        %2881 = vmatmul.mubr.f32.gmra.mrb[0].mxu0 %v2811
        %v2882 = vpop.f32.mrb[0].mxu0
        %v2883 = vadd.f32 0.0, %v2882
        %v2884 = vpop.f32.mrb[0].mxu0
        %v2885 = vadd.f32 0.0, %v2884
        %2886 = vmatprep.mubr.f32.mxu0 0.0
        %2887 = vmatmul.mubr.f32.gmra.mrb[0].mxu0 %v2814
        %v2888 = vpop.f32.mrb[0].mxu0
        %v2889 = vadd.f32 0.0, %v2888
        %v2890 = vpop.f32.mrb[0].mxu0
        %v2891 = vadd.f32 0.0, %v2890
        %2892 = vdwg.mxu0
        %2893 = vmatprep.subr.mxu0 %v2805
        %2894 = vmatpush1.msra.mxu0 %v2804
        %2895 = vmatprep.subr.mxu0 %v2807
        %2896 = vmatpush1.msra.mxu0 %v2806
        %2897 = vmatprep.subr.mxu0 0.0
        %2898 = vmatpush1.msra.mxu0 0.0
        %2899 = vmatprep.subr.mxu0 0.0
        %2900 = vmatpush1.msra.mxu0 0.0
        %2901 = vmatprep.subr.mxu0 0.0
        %2902 = vmatpush1.msra.mxu0 0.0
        %2903 = vmatprep.subr.mxu0 0.0
        %2904 = vmatpush1.msra.mxu0 0.0
        %2905 = vmatprep.subr.mxu0 0.0
        %2906 = vmatpush1.msra.mxu0 0.0
        %2907 = vmatprep.subr.mxu0 0.0
        %2908 = vmatpush1.msra.mxu0 0.0
        %2909 = vmatprep.subr.mxu0 0.0
        %2910 = vmatpush1.msra.mxu0 0.0
        %2911 = vmatprep.subr.mxu0 0.0
        %2912 = vmatpush1.msra.mxu0 0.0
        %2913 = vmatprep.subr.mxu0 0.0
        %2914 = vmatpush1.msra.mxu0 0.0
        %2915 = vmatprep.subr.mxu0 0.0
        %2916 = vmatpush1.msra.mxu0 0.0
        %2917 = vmatprep.subr.mxu0 0.0
        %2918 = vmatpush1.msra.mxu0 0.0
        %2919 = vmatprep.subr.mxu0 0.0
        %2920 = vmatpush1.msra.mxu0 0.0
        %2921 = vmatprep.subr.mxu0 0.0
        %2922 = vmatpush1.msra.mxu0 0.0
        %2923 = vmatprep.subr.mxu0 0.0
        %2924 = vmatpush1.msra.mxu0 0.0
        %2925 = vmatprep.subr.mxu0 0.0
        %2926 = vmatpush1.msra.mxu0 0.0
        %2927 = vmatprep.subr.mxu0 0.0
        %2928 = vmatpush1.msra.mxu0 0.0
        %2929 = vmatprep.subr.mxu0 0.0
        %2930 = vmatpush1.msra.mxu0 0.0
        %2931 = vmatprep.subr.mxu0 0.0
        %2932 = vmatpush1.msra.mxu0 0.0
        %2933 = vmatprep.subr.mxu0 0.0
        %2934 = vmatpush1.msra.mxu0 0.0
        %2935 = vmatprep.subr.mxu0 0.0
        %2936 = vmatpush1.msra.mxu0 0.0
        %2937 = vmatprep.subr.mxu0 0.0
        %2938 = vmatpush1.msra.mxu0 0.0
        %2939 = vmatprep.subr.mxu0 0.0
        %2940 = vmatpush1.msra.mxu0 0.0
        %2941 = vmatprep.subr.mxu0 0.0
        %2942 = vmatpush1.msra.mxu0 0.0
        %2943 = vmatprep.subr.mxu0 0.0
        %2944 = vmatpush1.msra.mxu0 0.0
        %2945 = vmatprep.subr.mxu0 0.0
        %2946 = vmatpush1.msra.mxu0 0.0
        %2947 = vmatprep.subr.mxu0 0.0
        %2948 = vmatpush1.msra.mxu0 0.0
        %2949 = vmatprep.subr.mxu0 0.0
        %2950 = vmatpush1.msra.mxu0 0.0
        %2951 = vmatprep.subr.mxu0 0.0
        %2952 = vmatpush1.msra.mxu0 0.0
        %2953 = vmatprep.subr.mxu0 0.0
        %2954 = vmatpush1.msra.mxu0 0.0
        %2955 = vmatprep.subr.mxu0 0.0
        %2956 = vmatpush1.msra.mxu0 0.0
        %2957 = vmatprep.mubr.f32.mxu0 0.0
        %2958 = vmatmul.mubr.f32.gmra.mrb[0].mxu0 %v2811
        %v2959 = vpop.f32.mrb[0].mxu0
        %v2960 = vadd.f32 0.0, %v2959
        %v2961 = vpop.f32.mrb[0].mxu0
        %v2962 = vadd.f32 0.0, %v2961
        %2963 = vmatprep.mubr.f32.mxu0 0.0
        %2964 = vmatmul.mubr.f32.gmra.mrb[0].mxu0 %v2814
        %v2965 = vpop.f32.mrb[0].mxu0
        %v2966 = vadd.f32 0.0, %v2965
        %v2967 = vpop.f32.mrb[0].mxu0
        %v2968 = vadd.f32 0.0, %v2967
        %2969 = vdwg.mxu0
        %v2970 = vrcp.pop 6.2831855
        %v2971 = vmul.f32 %v2960, %v2970
        %v2972 = vmul.f32 %v2962, %v2970
        %v2973 = vmul.f32 %v2966, %v2970
        %v2974 = vmul.f32 %v2968, %v2970
        %v2975 = vadd.f32 %v2971, 0.5
        %v2976 = vadd.f32 %v2972, 0.5
        %v2977 = vadd.f32 %v2973, 0.5
        %v2978 = vadd.f32 %v2974, 0.5
        %v2979 = vfloor.f32 %v2975
        %v2980 = vfloor.f32 %v2976
        %v2981 = vfloor.f32 %v2977
        %v2982 = vfloor.f32 %v2978
        %v2983 = vmul.f32 %v2979, 6.2831855
        %v2984 = vmul.f32 %v2980, 6.2831855
        %v2985 = vmul.f32 %v2981, 6.2831855
        %v2986 = vmul.f32 %v2982, 6.2831855
        %v2987 = vsub.f32 %v2960, %v2983
        %v2988 = vsub.f32 %v2962, %v2984
        %v2989 = vsub.f32 %v2966, %v2985
        %v2990 = vsub.f32 %v2968, %v2986
        %v2991 = vand.u32 2147483647, %v2987
        %v2992 = vand.u32 2147483647, %v2988
        %v2993 = vand.u32 2147483647, %v2989
        %v2994 = vand.u32 2147483647, %v2990
        %vm2995 = vcmp.gt.f32.partialorder %v2991, 1.5707964
        %vm2996 = vcmp.gt.f32.partialorder %v2992, 1.5707964
        %vm2997 = vcmp.gt.f32.partialorder %v2993, 1.5707964
        %vm2998 = vcmp.gt.f32.partialorder %v2994, 1.5707964
        %vm2999 = vcmp.gt.f32.partialorder %v2987, 1.5707964
        %vm3000 = vcmp.gt.f32.partialorder %v2988, 1.5707964
        %vm3001 = vcmp.gt.f32.partialorder %v2989, 1.5707964
        %vm3002 = vcmp.gt.f32.partialorder %v2990, 1.5707964
        %v3003 = vsub.f32 3.1415927, %v2987
        %v3004 = vsub.f32 3.1415927, %v2988
        %v3005 = vsub.f32 3.1415927, %v2989
        %v3006 = vsub.f32 3.1415927, %v2990
        %vm3007 = vcmp.lt.f32.partialorder %v2987, -1.5707964
        %vm3008 = vcmp.lt.f32.partialorder %v2988, -1.5707964
        %vm3009 = vcmp.lt.f32.partialorder %v2989, -1.5707964
        %vm3010 = vcmp.lt.f32.partialorder %v2990, -1.5707964
        %v3011 = vsub.f32 -3.1415927, %v2987
        %v3012 = vsub.f32 -3.1415927, %v2988
        %v3013 = vsub.f32 -3.1415927, %v2989
        %v3014 = vsub.f32 -3.1415927, %v2990
        %v3015 = vsel %vm3007, %v3011, %v2987
        %v3016 = vsel %vm3008, %v3012, %v2988
        %v3017 = vsel %vm3009, %v3013, %v2989
        %v3018 = vsel %vm3010, %v3014, %v2990
        %v3019 = vsel %vm2999, %v3003, %v3015
        %v3020 = vsel %vm3000, %v3004, %v3016
        %v3021 = vsel %vm3001, %v3005, %v3017
        %v3022 = vsel %vm3002, %v3006, %v3018
        %v3023 = vmul.f32 %v3019, %v3019
        %v3024 = vmul.f32 %v3020, %v3020
        %v3025 = vmul.f32 %v3021, %v3021
        %v3026 = vmul.f32 %v3022, %v3022
        %v3027 = vmul.f32 %v3023, -2.5052108e-08
        %v3028 = vmul.f32 %v3024, -2.5052108e-08
        %v3029 = vmul.f32 %v3025, -2.5052108e-08
        %v3030 = vmul.f32 %v3026, -2.5052108e-08
        %v3031 = vadd.f32 %v3027, 2.7557319e-06
        %v3032 = vadd.f32 %v3028, 2.7557319e-06
        %v3033 = vadd.f32 %v3029, 2.7557319e-06
        %v3034 = vadd.f32 %v3030, 2.7557319e-06
        %v3035 = vmul.f32 %v3031, %v3023
        %v3036 = vmul.f32 %v3032, %v3024
        %v3037 = vmul.f32 %v3033, %v3025
        %v3038 = vmul.f32 %v3034, %v3026
        %v3039 = vadd.f32 %v3035, -0.0001984127
        %v3040 = vadd.f32 %v3036, -0.0001984127
        %v3041 = vadd.f32 %v3037, -0.0001984127
        %v3042 = vadd.f32 %v3038, -0.0001984127
        %v3043 = vmul.f32 %v3039, %v3023
        %v3044 = vmul.f32 %v3040, %v3024
        %v3045 = vmul.f32 %v3041, %v3025
        %v3046 = vmul.f32 %v3042, %v3026
        %v3047 = vadd.f32 %v3043, 0.008333333
        %v3048 = vadd.f32 %v3044, 0.008333333
        %v3049 = vadd.f32 %v3045, 0.008333333
        %v3050 = vadd.f32 %v3046, 0.008333333
        %v3051 = vmul.f32 %v3047, %v3023
        %v3052 = vmul.f32 %v3048, %v3024
        %v3053 = vmul.f32 %v3049, %v3025
        %v3054 = vmul.f32 %v3050, %v3026
        %v3055 = vadd.f32 %v3051, -0.16666667
        %v3056 = vadd.f32 %v3052, -0.16666667
        %v3057 = vadd.f32 %v3053, -0.16666667
        %v3058 = vadd.f32 %v3054, -0.16666667
        %v3059 = vmul.f32 %v3019, %v3023
        %v3060 = vmul.f32 %v3020, %v3024
        %v3061 = vmul.f32 %v3021, %v3025
        %v3062 = vmul.f32 %v3022, %v3026
        %v3063 = vmul.f32 %v3059, %v3055
        %v3064 = vmul.f32 %v3060, %v3056
        %v3065 = vmul.f32 %v3061, %v3057
        %v3066 = vmul.f32 %v3062, %v3058
        %v3067 = vadd.f32 %v3019, %v3063
        %v3068 = vadd.f32 %v3020, %v3064
        %v3069 = vadd.f32 %v3021, %v3065
        %v3070 = vadd.f32 %v3022, %v3066
        %v3071 = vmul.f32 %v3067, %v3067
        %v3072 = vmul.f32 %v3068, %v3068
        %v3073 = vmul.f32 %v3069, %v3069
        %v3074 = vmul.f32 %v3070, %v3070
        %v3075 = vsub.f32 1.0, %v3071
        %v3076 = vsub.f32 1.0, %v3072
        %v3077 = vsub.f32 1.0, %v3073
        %v3078 = vsub.f32 1.0, %v3074
        %v3079 = vmax.f32 %v3075, 0.0
        %v3080 = vmax.f32 %v3076, 0.0
        %v3081 = vmax.f32 %v3077, 0.0
        %v3082 = vmax.f32 %v3078, 0.0
        %v3083 = vrsqrt.pop %v3079
        %v3084 = vmul.f32 %v3079, %v3083
        %vm3085 = vcmp.eq.f32.partialorder %v3079, inf
        %v3086 = vsel %vm3085, %v3079, %v3084
        %vm3087 = vcmp.eq.f32.partialorder %v3079, 0.0
        %v3088 = vand.u32 %v3079, 2147483648
        %v3089 = vsel %vm3087, %v3088, %v3086
        %v3090 = vrsqrt.pop %v3080
        %v3091 = vmul.f32 %v3080, %v3090
        %vm3092 = vcmp.eq.f32.partialorder %v3080, inf
        %v3093 = vsel %vm3092, %v3080, %v3091
        %vm3094 = vcmp.eq.f32.partialorder %v3080, 0.0
        %v3095 = vand.u32 %v3080, 2147483648
        %v3096 = vsel %vm3094, %v3095, %v3093
        %v3097 = vrsqrt.pop %v3081
        %v3098 = vmul.f32 %v3081, %v3097
        %vm3099 = vcmp.eq.f32.partialorder %v3081, inf
        %v3100 = vsel %vm3099, %v3081, %v3098
        %vm3101 = vcmp.eq.f32.partialorder %v3081, 0.0
        %v3102 = vand.u32 %v3081, 2147483648
        %v3103 = vsel %vm3101, %v3102, %v3100
        %v3104 = vrsqrt.pop %v3082
        %v3105 = vmul.f32 %v3082, %v3104
        %vm3106 = vcmp.eq.f32.partialorder %v3082, inf
        %v3107 = vsel %vm3106, %v3082, %v3105
        %vm3108 = vcmp.eq.f32.partialorder %v3082, 0.0
        %v3109 = vand.u32 %v3082, 2147483648
        %v3110 = vsel %vm3108, %v3109, %v3107
        %v3111 = vsub.f32 0.0, %v3089
        %v3112 = vsub.f32 0.0, %v3096
        %v3113 = vsub.f32 0.0, %v3103
        %v3114 = vsub.f32 0.0, %v3110
        %v3115 = vsel %vm2995, %v3111, %v3089
        %v3116 = vsel %vm2996, %v3112, %v3096
        %v3117 = vsel %vm2997, %v3113, %v3103
        %v3118 = vsel %vm2998, %v3114, %v3110
        %v3119 = vmul.f32 %v2883, %v3115
        %v3120 = vmul.f32 %v2885, %v3116
        %v3121 = vmul.f32 %v2889, %v3117
        %v3122 = vmul.f32 %v2891, %v3118
        %v3123 = vmul.f32 %v2883, %v3067
        %v3124 = vmul.f32 %v2885, %v3068
        %v3125 = vmul.f32 %v2889, %v3069
        %v3126 = vmul.f32 %v2891, %v3070
        %v3127 = vld [vmem:[%s16] sm:$0xff]
        %v3128 = vld [vmem:[%s16 + $0x8] sm:$0xff]
        %v3129 = vld [vmem:[%s16 + $0x10] sm:$0xff]
        %v3130 = vld [vmem:[%s16 + $0x18] sm:$0xff]
        %v3131 = vld [vmem:[%s16 + $0x20] sm:$0xff]
        %v3132 = vld [vmem:[%s16 + $0x28] sm:$0xff]
        %v3133 = vld [vmem:[%s16 + $0x30] sm:$0xff]
        %v3134 = vld [vmem:[%s16 + $0x38] sm:$0xff]
        %v3135 = vld [vmem:[%s16 + $0x40] sm:$0xff]
        %v3136 = vld [vmem:[%s16 + $0x48] sm:$0xff]
        %v3137 = vld [vmem:[%s16 + $0x50] sm:$0xff]
        %v3138 = vld [vmem:[%s16 + $0x58] sm:$0xff]
        %v3139 = vld [vmem:[%s16 + $0x60] sm:$0xff]
        %v3140 = vld [vmem:[%s16 + $0x68] sm:$0xff]
        %v3141 = vld [vmem:[%s16 + $0x70] sm:$0xff]
        %v3142 = vld [vmem:[%s16 + $0x78] sm:$0xff]
        %v3143 = vld [vmem:[%s16 + $0x80] sm:$0xff]
        %v3144 = vld [vmem:[%s16 + $0x88] sm:$0xff]
        %v3145 = vld [vmem:[%s16 + $0x90] sm:$0xff]
        %v3146 = vld [vmem:[%s16 + $0x98] sm:$0xff]
        %v3147 = vld [vmem:[%s16 + $0xa0] sm:$0xff]
        %v3148 = vld [vmem:[%s16 + $0xa8] sm:$0xff]
        %v3149 = vld [vmem:[%s16 + $0xb0] sm:$0xff]
        %v3150 = vld [vmem:[%s16 + $0xb8] sm:$0xff]
        %v3151 = vld [vmem:[%s16 + $0xc0] sm:$0xff]
        %v3152 = vld [vmem:[%s16 + $0xc8] sm:$0xff]
        %v3153 = vld [vmem:[%s16 + $0xd0] sm:$0xff]
        %v3154 = vld [vmem:[%s16 + $0xd8] sm:$0xff]
        %v3155 = vld [vmem:[%s16 + $0xe0] sm:$0xff]
        %v3156 = vld [vmem:[%s16 + $0xe8] sm:$0xff]
        %v3157 = vld [vmem:[%s16 + $0xf0] sm:$0xff]
        %v3158 = vld [vmem:[%s16 + $0xf8] sm:$0xff]
        %v3159 = vld [vmem:[%s16 + $0x100] sm:$0xff]
        %v3160 = vld [vmem:[%s16 + $0x108] sm:$0xff]
        %v3161 = vld [vmem:[%s16 + $0x110] sm:$0xff]
        %v3162 = vld [vmem:[%s16 + $0x118] sm:$0xff]
        %v3163 = vld [vmem:[%s16 + $0x120] sm:$0xff]
        %v3164 = vld [vmem:[%s16 + $0x128] sm:$0xff]
        %v3165 = vld [vmem:[%s16 + $0x130] sm:$0xff]
        %v3166 = vld [vmem:[%s16 + $0x138] sm:$0xff]
        %v3167 = vld [vmem:[%s16 + $0x140] sm:$0xff]
        %v3168 = vld [vmem:[%s16 + $0x148] sm:$0xff]
        %v3169 = vld [vmem:[%s16 + $0x150] sm:$0xff]
        %v3170 = vld [vmem:[%s16 + $0x158] sm:$0xff]
        %v3171 = vld [vmem:[%s16 + $0x160] sm:$0xff]
        %v3172 = vld [vmem:[%s16 + $0x168] sm:$0xff]
        %v3173 = vld [vmem:[%s16 + $0x170] sm:$0xff]
        %v3174 = vld [vmem:[%s16 + $0x178] sm:$0xff]
        %v3175 = vld [vmem:[%s16 + $0x180] sm:$0xff]
        %v3176 = vld [vmem:[%s16 + $0x188] sm:$0xff]
        %v3177 = vld [vmem:[%s16 + $0x190] sm:$0xff]
        %v3178 = vld [vmem:[%s16 + $0x198] sm:$0xff]
        %v3179 = vld [vmem:[%s16 + $0x1a0] sm:$0xff]
        %v3180 = vld [vmem:[%s16 + $0x1a8] sm:$0xff]
        %v3181 = vld [vmem:[%s16 + $0x1b0] sm:$0xff]
        %v3182 = vld [vmem:[%s16 + $0x1b8] sm:$0xff]
        %v3183 = vld [vmem:[%s16 + $0x1c0] sm:$0xff]
        %v3184 = vld [vmem:[%s16 + $0x1c8] sm:$0xff]
        %v3185 = vld [vmem:[%s16 + $0x1d0] sm:$0xff]
        %v3186 = vld [vmem:[%s16 + $0x1d8] sm:$0xff]
        %v3187 = vld [vmem:[%s16 + $0x1e0] sm:$0xff]
        %v3188 = vld [vmem:[%s16 + $0x1e8] sm:$0xff]
        %v3189 = vld [vmem:[%s16 + $0x1f0] sm:$0xff]
        %v3190 = vld [vmem:[%s16 + $0x1f8] sm:$0xff]
        %v3191 = vld [vmem:[%s16 + $0x200] sm:$0xff]
        %v3192 = vld [vmem:[%s16 + $0x208] sm:$0xff]
        %v3193 = vld [vmem:[%s16 + $0x210] sm:$0xff]
        %v3194 = vld [vmem:[%s16 + $0x218] sm:$0xff]
        %v3195 = vld [vmem:[%s16 + $0x220] sm:$0xff]
        %v3196 = vld [vmem:[%s16 + $0x228] sm:$0xff]
        %v3197 = vld [vmem:[%s16 + $0x230] sm:$0xff]
        %v3198 = vld [vmem:[%s16 + $0x238] sm:$0xff]
        %v3199 = vld [vmem:[%s16 + $0x240] sm:$0xff]
        %v3200 = vld [vmem:[%s16 + $0x248] sm:$0xff]
        %v3201 = vld [vmem:[%s16 + $0x250] sm:$0xff]
        %v3202 = vld [vmem:[%s16 + $0x258] sm:$0xff]
        %v3203 = vld [vmem:[%s16 + $0x260] sm:$0xff]
        %v3204 = vld [vmem:[%s16 + $0x268] sm:$0xff]
        %v3205 = vld [vmem:[%s16 + $0x270] sm:$0xff]
        %v3206 = vld [vmem:[%s16 + $0x278] sm:$0xff]
        %v3207 = vld [vmem:[%s16 + $0x280] sm:$0xff]
        %v3208 = vld [vmem:[%s16 + $0x288] sm:$0xff]
        %v3209 = vld [vmem:[%s16 + $0x290] sm:$0xff]
        %v3210 = vld [vmem:[%s16 + $0x298] sm:$0xff]
        %v3211 = vld [vmem:[%s16 + $0x2a0] sm:$0xff]
        %v3212 = vld [vmem:[%s16 + $0x2a8] sm:$0xff]
        %v3213 = vld [vmem:[%s16 + $0x2b0] sm:$0xff]
        %v3214 = vld [vmem:[%s16 + $0x2b8] sm:$0xff]
        %v3215 = vld [vmem:[%s16 + $0x2c0] sm:$0xff]
        %v3216 = vld [vmem:[%s16 + $0x2c8] sm:$0xff]
        %v3217 = vld [vmem:[%s16 + $0x2d0] sm:$0xff]
        %v3218 = vld [vmem:[%s16 + $0x2d8] sm:$0xff]
        %v3219 = vld [vmem:[%s16 + $0x2e0] sm:$0xff]
        %v3220 = vld [vmem:[%s16 + $0x2e8] sm:$0xff]
        %v3221 = vld [vmem:[%s16 + $0x2f0] sm:$0xff]
        %v3222 = vld [vmem:[%s16 + $0x2f8] sm:$0xff]
        %v3223 = vld [vmem:[%s16 + $0x300] sm:$0xff]
        %v3224 = vld [vmem:[%s16 + $0x308] sm:$0xff]
        %v3225 = vld [vmem:[%s16 + $0x310] sm:$0xff]
        %v3226 = vld [vmem:[%s16 + $0x318] sm:$0xff]
        %v3227 = vld [vmem:[%s16 + $0x320] sm:$0xff]
        %v3228 = vld [vmem:[%s16 + $0x328] sm:$0xff]
        %v3229 = vld [vmem:[%s16 + $0x330] sm:$0xff]
        %v3230 = vld [vmem:[%s16 + $0x338] sm:$0xff]
        %v3231 = vld [vmem:[%s16 + $0x340] sm:$0xff]
        %v3232 = vld [vmem:[%s16 + $0x348] sm:$0xff]
        %v3233 = vld [vmem:[%s16 + $0x350] sm:$0xff]
        %v3234 = vld [vmem:[%s16 + $0x358] sm:$0xff]
        %v3235 = vld [vmem:[%s16 + $0x360] sm:$0xff]
        %v3236 = vld [vmem:[%s16 + $0x368] sm:$0xff]
        %v3237 = vld [vmem:[%s16 + $0x370] sm:$0xff]
        %v3238 = vld [vmem:[%s16 + $0x378] sm:$0xff]
        %v3239 = vld [vmem:[%s16 + $0x380] sm:$0xff]
        %v3240 = vld [vmem:[%s16 + $0x388] sm:$0xff]
        %v3241 = vld [vmem:[%s16 + $0x390] sm:$0xff]
        %v3242 = vld [vmem:[%s16 + $0x398] sm:$0xff]
        %v3243 = vld [vmem:[%s16 + $0x3a0] sm:$0xff]
        %v3244 = vld [vmem:[%s16 + $0x3a8] sm:$0xff]
        %v3245 = vld [vmem:[%s16 + $0x3b0] sm:$0xff]
        %v3246 = vld [vmem:[%s16 + $0x3b8] sm:$0xff]
        %v3247 = vld [vmem:[%s16 + $0x3c0] sm:$0xff]
        %v3248 = vld [vmem:[%s16 + $0x3c8] sm:$0xff]
        %v3249 = vld [vmem:[%s16 + $0x3d0] sm:$0xff]
        %v3250 = vld [vmem:[%s16 + $0x3d8] sm:$0xff]
        %v3251 = vld [vmem:[%s16 + $0x3e0] sm:$0xff]
        %v3252 = vld [vmem:[%s16 + $0x3e8] sm:$0xff]
        %v3253 = vld [vmem:[%s16 + $0x3f0] sm:$0xff]
        %v3254 = vld [vmem:[%s16 + $0x3f8] sm:$0xff]
        %3255 = vmatprep.subr.mxu0 %v3128
        %3256 = vmatpush1.msra.mxu0 %v3127
        %3257 = vmatprep.subr.mxu0 %v3132
        %3258 = vmatpush1.msra.mxu0 %v3131
        %3259 = vmatprep.subr.mxu0 %v3136
        %3260 = vmatpush1.msra.mxu0 %v3135
        %3261 = vmatprep.subr.mxu0 %v3140
        %3262 = vmatpush1.msra.mxu0 %v3139
        %3263 = vmatprep.subr.mxu0 %v3144
        %3264 = vmatpush1.msra.mxu0 %v3143
        %3265 = vmatprep.subr.mxu0 %v3148
        %3266 = vmatpush1.msra.mxu0 %v3147
        %3267 = vmatprep.subr.mxu0 %v3152
        %3268 = vmatpush1.msra.mxu0 %v3151
        %3269 = vmatprep.subr.mxu0 %v3156
        %3270 = vmatpush1.msra.mxu0 %v3155
        %3271 = vmatprep.subr.mxu0 %v3160
        %3272 = vmatpush1.msra.mxu0 %v3159
        %3273 = vmatprep.subr.mxu0 %v3164
        %3274 = vmatpush1.msra.mxu0 %v3163
        %3275 = vmatprep.subr.mxu0 %v3168
        %3276 = vmatpush1.msra.mxu0 %v3167
        %3277 = vmatprep.subr.mxu0 %v3172
        %3278 = vmatpush1.msra.mxu0 %v3171
        %3279 = vmatprep.subr.mxu0 %v3176
        %3280 = vmatpush1.msra.mxu0 %v3175
        %3281 = vmatprep.subr.mxu0 %v3180
        %3282 = vmatpush1.msra.mxu0 %v3179
        %3283 = vmatprep.subr.mxu0 %v3184
        %3284 = vmatpush1.msra.mxu0 %v3183
        %3285 = vmatprep.subr.mxu0 %v3188
        %3286 = vmatpush1.msra.mxu0 %v3187
        %3287 = vmatprep.subr.mxu0 %v3192
        %3288 = vmatpush1.msra.mxu0 %v3191
        %3289 = vmatprep.subr.mxu0 %v3196
        %3290 = vmatpush1.msra.mxu0 %v3195
        %3291 = vmatprep.subr.mxu0 %v3200
        %3292 = vmatpush1.msra.mxu0 %v3199
        %3293 = vmatprep.subr.mxu0 %v3204
        %3294 = vmatpush1.msra.mxu0 %v3203
        %3295 = vmatprep.subr.mxu0 %v3208
        %3296 = vmatpush1.msra.mxu0 %v3207
        %3297 = vmatprep.subr.mxu0 %v3212
        %3298 = vmatpush1.msra.mxu0 %v3211
        %3299 = vmatprep.subr.mxu0 %v3216
        %3300 = vmatpush1.msra.mxu0 %v3215
        %3301 = vmatprep.subr.mxu0 %v3220
        %3302 = vmatpush1.msra.mxu0 %v3219
        %3303 = vmatprep.subr.mxu0 %v3224
        %3304 = vmatpush1.msra.mxu0 %v3223
        %3305 = vmatprep.subr.mxu0 %v3228
        %3306 = vmatpush1.msra.mxu0 %v3227
        %3307 = vmatprep.subr.mxu0 %v3232
        %3308 = vmatpush1.msra.mxu0 %v3231
        %3309 = vmatprep.subr.mxu0 %v3236
        %3310 = vmatpush1.msra.mxu0 %v3235
        %3311 = vmatprep.subr.mxu0 %v3240
        %3312 = vmatpush1.msra.mxu0 %v3239
        %3313 = vmatprep.subr.mxu0 %v3244
        %3314 = vmatpush1.msra.mxu0 %v3243
        %3315 = vmatprep.subr.mxu0 %v3248
        %3316 = vmatpush1.msra.mxu0 %v3247
        %3317 = vmatprep.subr.mxu0 %v3252
        %3318 = vmatpush1.msra.mxu0 %v3251
        %3319 = vmatprep.mubr.f32.mxu0 %v3120
        %3320 = vmatmul.mubr.f32.gmra.mrb[0].mxu0 %v3119
        %v3321 = vpop.f32.mrb[0].mxu0
        %v3322 = vadd.f32 0.0, %v3321
        %v3323 = vpop.f32.mrb[0].mxu0
        %v3324 = vadd.f32 0.0, %v3323
        %3325 = vmatprep.mubr.f32.mxu0 %v3122
        %3326 = vmatmul.mubr.f32.gmra.mrb[0].mxu0 %v3121
        %v3327 = vpop.f32.mrb[0].mxu0
        %v3328 = vadd.f32 0.0, %v3327
        %v3329 = vpop.f32.mrb[0].mxu0
        %v3330 = vadd.f32 0.0, %v3329
        %3331 = vmatprep.mubr.f32.mxu0 %v3124
        %3332 = vmatmul.mubr.f32.gmra.mrb[0].mxu0 %v3123
        %v3333 = vpop.f32.mrb[0].mxu0
        %v3334 = vadd.f32 0.0, %v3333
        %v3335 = vpop.f32.mrb[0].mxu0
        %v3336 = vadd.f32 0.0, %v3335
        %3337 = vmatprep.mubr.f32.mxu0 %v3126
        %3338 = vmatmul.mubr.f32.gmra.mrb[0].mxu0 %v3125
        %v3339 = vpop.f32.mrb[0].mxu0
        %v3340 = vadd.f32 0.0, %v3339
        %v3341 = vpop.f32.mrb[0].mxu0
        %v3342 = vadd.f32 0.0, %v3341
        %3343 = vdwg.mxu0
        %3344 = vmatprep.subr.mxu0 %v3130
        %3345 = vmatpush1.msra.mxu0 %v3129
        %3346 = vmatprep.subr.mxu0 %v3134
        %3347 = vmatpush1.msra.mxu0 %v3133
        %3348 = vmatprep.subr.mxu0 %v3138
        %3349 = vmatpush1.msra.mxu0 %v3137
        %3350 = vmatprep.subr.mxu0 %v3142
        %3351 = vmatpush1.msra.mxu0 %v3141
        %3352 = vmatprep.subr.mxu0 %v3146
        %3353 = vmatpush1.msra.mxu0 %v3145
        %3354 = vmatprep.subr.mxu0 %v3150
        %3355 = vmatpush1.msra.mxu0 %v3149
        %3356 = vmatprep.subr.mxu0 %v3154
        %3357 = vmatpush1.msra.mxu0 %v3153
        %3358 = vmatprep.subr.mxu0 %v3158
        %3359 = vmatpush1.msra.mxu0 %v3157
        %3360 = vmatprep.subr.mxu0 %v3162
        %3361 = vmatpush1.msra.mxu0 %v3161
        %3362 = vmatprep.subr.mxu0 %v3166
        %3363 = vmatpush1.msra.mxu0 %v3165
        %3364 = vmatprep.subr.mxu0 %v3170
        %3365 = vmatpush1.msra.mxu0 %v3169
        %3366 = vmatprep.subr.mxu0 %v3174
        %3367 = vmatpush1.msra.mxu0 %v3173
        %3368 = vmatprep.subr.mxu0 %v3178
        %3369 = vmatpush1.msra.mxu0 %v3177
        %3370 = vmatprep.subr.mxu0 %v3182
        %3371 = vmatpush1.msra.mxu0 %v3181
        %3372 = vmatprep.subr.mxu0 %v3186
        %3373 = vmatpush1.msra.mxu0 %v3185
        %3374 = vmatprep.subr.mxu0 %v3190
        %3375 = vmatpush1.msra.mxu0 %v3189
        %3376 = vmatprep.subr.mxu0 %v3194
        %3377 = vmatpush1.msra.mxu0 %v3193
        %3378 = vmatprep.subr.mxu0 %v3198
        %3379 = vmatpush1.msra.mxu0 %v3197
        %3380 = vmatprep.subr.mxu0 %v3202
        %3381 = vmatpush1.msra.mxu0 %v3201
        %3382 = vmatprep.subr.mxu0 %v3206
        %3383 = vmatpush1.msra.mxu0 %v3205
        %3384 = vmatprep.subr.mxu0 %v3210
        %3385 = vmatpush1.msra.mxu0 %v3209
        %3386 = vmatprep.subr.mxu0 %v3214
        %3387 = vmatpush1.msra.mxu0 %v3213
        %3388 = vmatprep.subr.mxu0 %v3218
        %3389 = vmatpush1.msra.mxu0 %v3217
        %3390 = vmatprep.subr.mxu0 %v3222
        %3391 = vmatpush1.msra.mxu0 %v3221
        %3392 = vmatprep.subr.mxu0 %v3226
        %3393 = vmatpush1.msra.mxu0 %v3225
        %3394 = vmatprep.subr.mxu0 %v3230
        %3395 = vmatpush1.msra.mxu0 %v3229
        %3396 = vmatprep.subr.mxu0 %v3234
        %3397 = vmatpush1.msra.mxu0 %v3233
        %3398 = vmatprep.subr.mxu0 %v3238
        %3399 = vmatpush1.msra.mxu0 %v3237
        %3400 = vmatprep.subr.mxu0 %v3242
        %3401 = vmatpush1.msra.mxu0 %v3241
        %3402 = vmatprep.subr.mxu0 %v3246
        %3403 = vmatpush1.msra.mxu0 %v3245
        %3404 = vmatprep.subr.mxu0 %v3250
        %3405 = vmatpush1.msra.mxu0 %v3249
        %3406 = vmatprep.subr.mxu0 %v3254
        %3407 = vmatpush1.msra.mxu0 %v3253
        %3408 = vmatprep.mubr.f32.mxu0 %v3120
        %3409 = vmatmul.mubr.f32.gmra.mrb[0].mxu0 %v3119
        %v3410 = vpop.f32.mrb[0].mxu0
        %v3411 = vadd.f32 0.0, %v3410
        %v3412 = vpop.f32.mrb[0].mxu0
        %v3413 = vadd.f32 0.0, %v3412
        %3414 = vmatprep.mubr.f32.mxu0 %v3122
        %3415 = vmatmul.mubr.f32.gmra.mrb[0].mxu0 %v3121
        %v3416 = vpop.f32.mrb[0].mxu0
        %v3417 = vadd.f32 0.0, %v3416
        %v3418 = vpop.f32.mrb[0].mxu0
        %v3419 = vadd.f32 0.0, %v3418
        %3420 = vmatprep.mubr.f32.mxu0 %v3124
        %3421 = vmatmul.mubr.f32.gmra.mrb[0].mxu0 %v3123
        %v3422 = vpop.f32.mrb[0].mxu0
        %v3423 = vadd.f32 0.0, %v3422
        %v3424 = vpop.f32.mrb[0].mxu0
        %v3425 = vadd.f32 0.0, %v3424
        %3426 = vmatprep.mubr.f32.mxu0 %v3126
        %3427 = vmatmul.mubr.f32.gmra.mrb[0].mxu0 %v3125
        %v3428 = vpop.f32.mrb[0].mxu0
        %v3429 = vadd.f32 0.0, %v3428
        %v3430 = vpop.f32.mrb[0].mxu0
        %v3431 = vadd.f32 0.0, %v3430
        %3432 = vdwg.mxu0
        %v3433 = vsub.f32 %v3322, %v3423
        %v3434 = vsub.f32 %v3324, %v3425
        %v3435 = vsub.f32 %v3328, %v3429
        %v3436 = vsub.f32 %v3330, %v3431
        %v3437 = vadd.f32 %v3411, %v3334
        %v3438 = vadd.f32 %v3413, %v3336
        %v3439 = vadd.f32 %v3417, %v3340
        %v3440 = vadd.f32 %v3419, %v3342
        %v3441 = vmul.f32 %v3433, %v3433
        %v3442 = vmul.f32 %v3434, %v3434
        %v3443 = vmul.f32 %v3435, %v3435
        %v3444 = vmul.f32 %v3436, %v3436
        %v3445 = vmul.f32 %v3437, %v3437
        %v3446 = vmul.f32 %v3438, %v3438
        %v3447 = vmul.f32 %v3439, %v3439
        %v3448 = vmul.f32 %v3440, %v3440
        %v3449 = vadd.f32 %v3441, %v3445
        %v3450 = vadd.f32 %v3442, %v3446
        %v3451 = vadd.f32 %v3443, %v3447
        %v3452 = vadd.f32 %v3444, %v3448
        %v3453 = vrsqrt.pop %v3449
        %v3454 = vmul.f32 %v3449, %v3453
        %vm3455 = vcmp.eq.f32.partialorder %v3449, inf
        %v3456 = vsel %vm3455, %v3449, %v3454
        %vm3457 = vcmp.eq.f32.partialorder %v3449, 0.0
        %v3458 = vand.u32 %v3449, 2147483648
        %v3459 = vsel %vm3457, %v3458, %v3456
        %v3460 = vrsqrt.pop %v3450
        %v3461 = vmul.f32 %v3450, %v3460
        %vm3462 = vcmp.eq.f32.partialorder %v3450, inf
        %v3463 = vsel %vm3462, %v3450, %v3461
        %vm3464 = vcmp.eq.f32.partialorder %v3450, 0.0
        %v3465 = vand.u32 %v3450, 2147483648
        %v3466 = vsel %vm3464, %v3465, %v3463
        %v3467 = vrsqrt.pop %v3451
        %v3468 = vmul.f32 %v3451, %v3467
        %vm3469 = vcmp.eq.f32.partialorder %v3451, inf
        %v3470 = vsel %vm3469, %v3451, %v3468
        %vm3471 = vcmp.eq.f32.partialorder %v3451, 0.0
        %v3472 = vand.u32 %v3451, 2147483648
        %v3473 = vsel %vm3471, %v3472, %v3470
        %v3474 = vrsqrt.pop %v3452
        %v3475 = vmul.f32 %v3452, %v3474
        %vm3476 = vcmp.eq.f32.partialorder %v3452, inf
        %v3477 = vsel %vm3476, %v3452, %v3475
        %vm3478 = vcmp.eq.f32.partialorder %v3452, 0.0
        %v3479 = vand.u32 %v3452, 2147483648
        %v3480 = vsel %vm3478, %v3479, %v3477
        %v3481 = vld [vmem:[%s934] sm:$0xff]
        %v3482 = vld [vmem:[%s934 + $0x8] sm:$0xff]
        %v3483 = vld [vmem:[%s934 + $0x10] sm:$0xff]
        %v3484 = vld [vmem:[%s934 + $0x18] sm:$0xff]
        %3485 = vrot.lane.b32.xlu0 %v3459, 17
        %v3486 = vpop.permute.xlu0 %3485
        %3487 = vrot.lane.b32.xlu0 %v3473, 17
        %v3488 = vpop.permute.xlu0 %3487
        %3489 = vrot.lane.b32.xlu0 %v3466, 17
        %v3490 = vpop.permute.xlu0 %3489
        %3491 = vrot.lane.b32.xlu0 %v3480, 17
        %v3492 = vpop.permute.xlu0 %3491
        %v3493 = vsel %vm1010, %v3486, %v3490
        %v3494 = vsel %vm1010, %v3488, %v3492
        %v3495 = vsel %vm1010, %v3490, %v3486
        %v3496 = vsel %vm1010, %v3492, %v3488
        %v3497 = vmul.f32 %v3495, %v1018
        %v3498 = vmul.f32 %v3493, %v1022
        %v3499 = vmul.f32 %v3496, %v1018
        %v3500 = vmul.f32 %v3494, %v1022
        %3501 = vrot.lane.b32.xlu0 %v3459, 16
        %v3502 = vpop.permute.xlu0 %3501
        %3503 = vrot.lane.b32.xlu0 %v3473, 16
        %v3504 = vpop.permute.xlu0 %3503
        %3505 = vrot.lane.b32.xlu0 %v3466, 16
        %v3506 = vpop.permute.xlu0 %3505
        %3507 = vrot.lane.b32.xlu0 %v3480, 16
        %v3508 = vpop.permute.xlu0 %3507
        %v3509 = vsel %vm1035, %v3502, %v3506
        %v3510 = vsel %vm1035, %v3504, %v3508
        %v3511 = vsel %vm1035, %v3506, %v3502
        %v3512 = vsel %vm1035, %v3508, %v3504
        %v3513 = vmul.f32 %v3511, %v1043
        %v3514 = vmul.f32 %v3509, %v1047
        %v3515 = vmul.f32 %v3512, %v1043
        %v3516 = vmul.f32 %v3510, %v1047
        %3517 = vrot.lane.b32.xlu0 %v3459, 15
        %v3518 = vpop.permute.xlu0 %3517
        %3519 = vrot.lane.b32.xlu0 %v3473, 15
        %v3520 = vpop.permute.xlu0 %3519
        %3521 = vrot.lane.b32.xlu0 %v3466, 15
        %v3522 = vpop.permute.xlu0 %3521
        %3523 = vrot.lane.b32.xlu0 %v3480, 15
        %v3524 = vpop.permute.xlu0 %3523
        %v3525 = vsel %vm1060, %v3518, %v3522
        %v3526 = vsel %vm1060, %v3520, %v3524
        %v3527 = vsel %vm1060, %v3522, %v3518
        %v3528 = vsel %vm1060, %v3524, %v3520
        %v3529 = vmul.f32 %v3527, %v1068
        %v3530 = vmul.f32 %v3525, %v1072
        %v3531 = vmul.f32 %v3528, %v1068
        %v3532 = vmul.f32 %v3526, %v1072
        %3533 = vrot.lane.b32.xlu0 %v3459, 1
        %v3534 = vpop.permute.xlu0 %3533
        %3535 = vrot.lane.b32.xlu0 %v3473, 1
        %v3536 = vpop.permute.xlu0 %3535
        %3537 = vrot.lane.b32.xlu0 %v3466, 1
        %v3538 = vpop.permute.xlu0 %3537
        %3539 = vrot.lane.b32.xlu0 %v3480, 1
        %v3540 = vpop.permute.xlu0 %3539
        %v3541 = vsel %vm1085, %v3534, %v3538
        %v3542 = vsel %vm1085, %v3536, %v3540
        %v3543 = vsel %vm1085, %v3538, %v3534
        %v3544 = vsel %vm1085, %v3540, %v3536
        %v3545 = vmul.f32 %v3543, %v1093
        %v3546 = vmul.f32 %v3541, %v1097
        %v3547 = vmul.f32 %v3544, %v1093
        %v3548 = vmul.f32 %v3542, %v1097
        %v3549 = vmul.f32 %v3459, %v1105
        %v3550 = vmul.f32 %v3466, %v1109
        %v3551 = vmul.f32 %v3473, %v1105
        %v3552 = vmul.f32 %v3480, %v1109
        %3553 = vrot.lane.b32.xlu0 %v3459, 127
        %v3554 = vpop.permute.xlu0 %3553
        %3555 = vrot.lane.b32.xlu0 %v3473, 127
        %v3556 = vpop.permute.xlu0 %3555
        %3557 = vrot.lane.b32.xlu0 %v3466, 127
        %v3558 = vpop.permute.xlu0 %3557
        %3559 = vrot.lane.b32.xlu0 %v3480, 127
        %v3560 = vpop.permute.xlu0 %3559
        %v3561 = vsel %vm1122, %v3554, %v3558
        %v3562 = vsel %vm1122, %v3556, %v3560
        %v3563 = vsel %vm1122, %v3558, %v3554
        %v3564 = vsel %vm1122, %v3560, %v3556
        %v3565 = vmul.f32 %v3561, %v1130
        %v3566 = vmul.f32 %v3563, %v1134
        %v3567 = vmul.f32 %v3562, %v1130
        %v3568 = vmul.f32 %v3564, %v1134
        %3569 = vrot.lane.b32.xlu0 %v3459, 113
        %v3570 = vpop.permute.xlu0 %3569
        %3571 = vrot.lane.b32.xlu0 %v3473, 113
        %v3572 = vpop.permute.xlu0 %3571
        %3573 = vrot.lane.b32.xlu0 %v3466, 113
        %v3574 = vpop.permute.xlu0 %3573
        %3575 = vrot.lane.b32.xlu0 %v3480, 113
        %v3576 = vpop.permute.xlu0 %3575
        %v3577 = vsel %vm1147, %v3570, %v3574
        %v3578 = vsel %vm1147, %v3572, %v3576
        %v3579 = vsel %vm1147, %v3574, %v3570
        %v3580 = vsel %vm1147, %v3576, %v3572
        %v3581 = vmul.f32 %v3577, %v1155
        %v3582 = vmul.f32 %v3579, %v1159
        %v3583 = vmul.f32 %v3578, %v1155
        %v3584 = vmul.f32 %v3580, %v1159
        %3585 = vrot.lane.b32.xlu0 %v3459, 112
        %v3586 = vpop.permute.xlu0 %3585
        %3587 = vrot.lane.b32.xlu0 %v3473, 112
        %v3588 = vpop.permute.xlu0 %3587
        %3589 = vrot.lane.b32.xlu0 %v3466, 112
        %v3590 = vpop.permute.xlu0 %3589
        %3591 = vrot.lane.b32.xlu0 %v3480, 112
        %v3592 = vpop.permute.xlu0 %3591
        %v3593 = vsel %vm1172, %v3586, %v3590
        %v3594 = vsel %vm1172, %v3588, %v3592
        %v3595 = vsel %vm1172, %v3590, %v3586
        %v3596 = vsel %vm1172, %v3592, %v3588
        %v3597 = vmul.f32 %v3593, %v1180
        %v3598 = vmul.f32 %v3595, %v1184
        %v3599 = vmul.f32 %v3594, %v1180
        %v3600 = vmul.f32 %v3596, %v1184
        %3601 = vrot.lane.b32.xlu0 %v3459, 111
        %v3602 = vpop.permute.xlu0 %3601
        %3603 = vrot.lane.b32.xlu0 %v3473, 111
        %v3604 = vpop.permute.xlu0 %3603
        %3605 = vrot.lane.b32.xlu0 %v3466, 111
        %v3606 = vpop.permute.xlu0 %3605
        %3607 = vrot.lane.b32.xlu0 %v3480, 111
        %v3608 = vpop.permute.xlu0 %3607
        %v3609 = vsel %vm1197, %v3602, %v3606
        %v3610 = vsel %vm1197, %v3604, %v3608
        %v3611 = vsel %vm1197, %v3606, %v3602
        %v3612 = vsel %vm1197, %v3608, %v3604
        %v3613 = vmul.f32 %v3609, %v1205
        %v3614 = vmul.f32 %v3611, %v1209
        %v3615 = vmul.f32 %v3610, %v1205
        %v3616 = vmul.f32 %v3612, %v1209
        %v3618 = vsel %vm1216, %v3482, 0
        %v3621 = vsel %vm1216, %v3484, 0
        %3623 = vmatprep.subr.mxu0 %v3498
        %3624 = vmatpush1.msra.mxu0 %v3497
        %3625 = vmatprep.subr.mxu0 %v3500
        %3626 = vmatpush1.msra.mxu0 %v3499
        %3627 = vmatprep.subr.mxu0 %v3514
        %3628 = vmatpush1.msra.mxu0 %v3513
        %3629 = vmatprep.subr.mxu0 %v3516
        %3630 = vmatpush1.msra.mxu0 %v3515
        %3631 = vmatprep.subr.mxu0 %v3530
        %3632 = vmatpush1.msra.mxu0 %v3529
        %3633 = vmatprep.subr.mxu0 %v3532
        %3634 = vmatpush1.msra.mxu0 %v3531
        %3635 = vmatprep.subr.mxu0 %v3546
        %3636 = vmatpush1.msra.mxu0 %v3545
        %3637 = vmatprep.subr.mxu0 %v3548
        %3638 = vmatpush1.msra.mxu0 %v3547
        %3639 = vmatprep.subr.mxu0 %v3550
        %3640 = vmatpush1.msra.mxu0 %v3549
        %3641 = vmatprep.subr.mxu0 %v3552
        %3642 = vmatpush1.msra.mxu0 %v3551
        %3643 = vmatprep.subr.mxu0 %v3566
        %3644 = vmatpush1.msra.mxu0 %v3565
        %3645 = vmatprep.subr.mxu0 %v3568
        %3646 = vmatpush1.msra.mxu0 %v3567
        %3647 = vmatprep.subr.mxu0 %v3582
        %3648 = vmatpush1.msra.mxu0 %v3581
        %3649 = vmatprep.subr.mxu0 %v3584
        %3650 = vmatpush1.msra.mxu0 %v3583
        %3651 = vmatprep.subr.mxu0 %v3598
        %3652 = vmatpush1.msra.mxu0 %v3597
        %3653 = vmatprep.subr.mxu0 %v3600
        %3654 = vmatpush1.msra.mxu0 %v3599
        %3655 = vmatprep.subr.mxu0 %v3614
        %3656 = vmatpush1.msra.mxu0 %v3613
        %3657 = vmatprep.subr.mxu0 %v3616
        %3658 = vmatpush1.msra.mxu0 %v3615
        %3659 = vmatprep.subr.mxu0 0.0
        %3660 = vmatpush1.msra.mxu0 0.0
        %3661 = vmatprep.subr.mxu0 0.0
        %3662 = vmatpush1.msra.mxu0 0.0
        %3663 = vmatprep.subr.mxu0 0.0
        %3664 = vmatpush1.msra.mxu0 0.0
        %3665 = vmatprep.subr.mxu0 0.0
        %3666 = vmatpush1.msra.mxu0 0.0
        %3667 = vmatprep.subr.mxu0 0.0
        %3668 = vmatpush1.msra.mxu0 0.0
        %3669 = vmatprep.subr.mxu0 0.0
        %3670 = vmatpush1.msra.mxu0 0.0
        %3671 = vmatprep.subr.mxu0 0.0
        %3672 = vmatpush1.msra.mxu0 0.0
        %3673 = vmatprep.subr.mxu0 0.0
        %3674 = vmatpush1.msra.mxu0 0.0
        %3675 = vmatprep.subr.mxu0 0.0
        %3676 = vmatpush1.msra.mxu0 0.0
        %3677 = vmatprep.subr.mxu0 0.0
        %3678 = vmatpush1.msra.mxu0 0.0
        %3679 = vmatprep.subr.mxu0 0.0
        %3680 = vmatpush1.msra.mxu0 0.0
        %3681 = vmatprep.subr.mxu0 0.0
        %3682 = vmatpush1.msra.mxu0 0.0
        %3683 = vmatprep.subr.mxu0 0.0
        %3684 = vmatpush1.msra.mxu0 0.0
        %3685 = vmatprep.subr.mxu0 0.0
        %3686 = vmatpush1.msra.mxu0 0.0
        %3687 = vmatprep.mubr.f32.mxu0 %v3618
        %3688 = vmatmul.mubr.f32.gmra.mrb[0].mxu0 %v3481
        %v3689 = vpop.f32.mrb[0].mxu0
        %v3690 = vadd.f32 0.0, %v3689
        %v3691 = vpop.f32.mrb[0].mxu0
        %v3692 = vadd.f32 0.0, %v3691
        %3693 = vmatprep.mubr.f32.mxu0 %v3621
        %3694 = vmatmul.mubr.f32.gmra.mrb[0].mxu0 %v3483
        %v3695 = vpop.f32.mrb[0].mxu0
        %v3696 = vadd.f32 0.0, %v3695
        %v3697 = vpop.f32.mrb[0].mxu0
        %v3698 = vadd.f32 0.0, %v3697
        %3699 = vdwg.mxu0
        %v3700 = vadd.f32 %v2348, %v3690
        %v3701 = vadd.f32 %v2355, %v3692
        %v3702 = vadd.f32 %v2362, %v3696
        %v3703 = vadd.f32 %v2369, %v3698
        %v3704 = vld [vmem:[#allocation10] sm:$0xff]
        %v3705 = vld [vmem:[#allocation10 + $0x8] sm:$0xff]
        %v3707 = vsel %vm1216, %v3704, 0
        %v3710 = vsel %vm1216, %v3705, 0
        %3712 = vmatprep.subr.mxu0 %v3701
        %3713 = vmatpush1.msra.mxu0 %v3700
        %3714 = vmatprep.subr.mxu0 %v3703
        %3715 = vmatpush1.msra.mxu0 %v3702
        %3716 = vmatprep.subr.mxu0 0.0
        %3717 = vmatpush1.msra.mxu0 0.0
        %3718 = vmatprep.subr.mxu0 0.0
        %3719 = vmatpush1.msra.mxu0 0.0
        %3720 = vmatprep.subr.mxu0 0.0
        %3721 = vmatpush1.msra.mxu0 0.0
        %3722 = vmatprep.subr.mxu0 0.0
        %3723 = vmatpush1.msra.mxu0 0.0
        %3724 = vmatprep.subr.mxu0 0.0
        %3725 = vmatpush1.msra.mxu0 0.0
        %3726 = vmatprep.subr.mxu0 0.0
        %3727 = vmatpush1.msra.mxu0 0.0
        %3728 = vmatprep.subr.mxu0 0.0
        %3729 = vmatpush1.msra.mxu0 0.0
        %3730 = vmatprep.subr.mxu0 0.0
        %3731 = vmatpush1.msra.mxu0 0.0
        %3732 = vmatprep.subr.mxu0 0.0
        %3733 = vmatpush1.msra.mxu0 0.0
        %3734 = vmatprep.subr.mxu0 0.0
        %3735 = vmatpush1.msra.mxu0 0.0
        %3736 = vmatprep.subr.mxu0 0.0
        %3737 = vmatpush1.msra.mxu0 0.0
        %3738 = vmatprep.subr.mxu0 0.0
        %3739 = vmatpush1.msra.mxu0 0.0
        %3740 = vmatprep.subr.mxu0 0.0
        %3741 = vmatpush1.msra.mxu0 0.0
        %3742 = vmatprep.subr.mxu0 0.0
        %3743 = vmatpush1.msra.mxu0 0.0
        %3744 = vmatprep.subr.mxu0 0.0
        %3745 = vmatpush1.msra.mxu0 0.0
        %3746 = vmatprep.subr.mxu0 0.0
        %3747 = vmatpush1.msra.mxu0 0.0
        %3748 = vmatprep.subr.mxu0 0.0
        %3749 = vmatpush1.msra.mxu0 0.0
        %3750 = vmatprep.subr.mxu0 0.0
        %3751 = vmatpush1.msra.mxu0 0.0
        %3752 = vmatprep.subr.mxu0 0.0
        %3753 = vmatpush1.msra.mxu0 0.0
        %3754 = vmatprep.subr.mxu0 0.0
        %3755 = vmatpush1.msra.mxu0 0.0
        %3756 = vmatprep.subr.mxu0 0.0
        %3757 = vmatpush1.msra.mxu0 0.0
        %3758 = vmatprep.subr.mxu0 0.0
        %3759 = vmatpush1.msra.mxu0 0.0
        %3760 = vmatprep.subr.mxu0 0.0
        %3761 = vmatpush1.msra.mxu0 0.0
        %3762 = vmatprep.subr.mxu0 0.0
        %3763 = vmatpush1.msra.mxu0 0.0
        %3764 = vmatprep.subr.mxu0 0.0
        %3765 = vmatpush1.msra.mxu0 0.0
        %3766 = vmatprep.subr.mxu0 0.0
        %3767 = vmatpush1.msra.mxu0 0.0
        %3768 = vmatprep.subr.mxu0 0.0
        %3769 = vmatpush1.msra.mxu0 0.0
        %3770 = vmatprep.subr.mxu0 0.0
        %3771 = vmatpush1.msra.mxu0 0.0
        %3772 = vmatprep.subr.mxu0 0.0
        %3773 = vmatpush1.msra.mxu0 0.0
        %3774 = vmatprep.subr.mxu0 0.0
        %3775 = vmatpush1.msra.mxu0 0.0
        %3776 = vmatprep.mubr.f32.mxu0 0.0
        %3777 = vmatmul.mubr.f32.gmra.mrb[0].mxu0 %v3707
        %v3778 = vpop.f32.mrb[0].mxu0
        %v3779 = vadd.f32 0.0, %v3778
        %v3780 = vpop.f32.mrb[0].mxu0
        %v3781 = vadd.f32 0.0, %v3780
        %3782 = vmatprep.mubr.f32.mxu0 0.0
        %3783 = vmatmul.mubr.f32.gmra.mrb[0].mxu0 %v3710
        %v3784 = vpop.f32.mrb[0].mxu0
        %v3785 = vadd.f32 0.0, %v3784
        %v3786 = vpop.f32.mrb[0].mxu0
        %v3787 = vadd.f32 0.0, %v3786
        %3788 = vdwg.mxu0
        %v3789 = vadd.f32 %v3779, %v3781
        %3790 = vadd.xlane.f32.xlu0 %v3789
        %v3791 = vpop.xlane.xlu0 %3790
        %v3792 = vadd.f32 %v3785, %v3787
        %3793 = vadd.xlane.f32.xlu0 %v3792
        %v3794 = vpop.xlane.xlu0 %3793
        %v3795 = vmul.f32 %v3700, %v3700
        %v3796 = vmul.f32 %v3701, %v3701
        %v3797 = vmul.f32 %v3702, %v3702
        %v3798 = vmul.f32 %v3703, %v3703
        %3799 = vmatprep.subr.mxu0 %v3796
        %3800 = vmatpush1.msra.mxu0 %v3795
        %3801 = vmatprep.subr.mxu0 %v3798
        %3802 = vmatpush1.msra.mxu0 %v3797
        %3803 = vmatprep.subr.mxu0 0.0
        %3804 = vmatpush1.msra.mxu0 0.0
        %3805 = vmatprep.subr.mxu0 0.0
        %3806 = vmatpush1.msra.mxu0 0.0
        %3807 = vmatprep.subr.mxu0 0.0
        %3808 = vmatpush1.msra.mxu0 0.0
        %3809 = vmatprep.subr.mxu0 0.0
        %3810 = vmatpush1.msra.mxu0 0.0
        %3811 = vmatprep.subr.mxu0 0.0
        %3812 = vmatpush1.msra.mxu0 0.0
        %3813 = vmatprep.subr.mxu0 0.0
        %3814 = vmatpush1.msra.mxu0 0.0
        %3815 = vmatprep.subr.mxu0 0.0
        %3816 = vmatpush1.msra.mxu0 0.0
        %3817 = vmatprep.subr.mxu0 0.0
        %3818 = vmatpush1.msra.mxu0 0.0
        %3819 = vmatprep.subr.mxu0 0.0
        %3820 = vmatpush1.msra.mxu0 0.0
        %3821 = vmatprep.subr.mxu0 0.0
        %3822 = vmatpush1.msra.mxu0 0.0
        %3823 = vmatprep.subr.mxu0 0.0
        %3824 = vmatpush1.msra.mxu0 0.0
        %3825 = vmatprep.subr.mxu0 0.0
        %3826 = vmatpush1.msra.mxu0 0.0
        %3827 = vmatprep.subr.mxu0 0.0
        %3828 = vmatpush1.msra.mxu0 0.0
        %3829 = vmatprep.subr.mxu0 0.0
        %3830 = vmatpush1.msra.mxu0 0.0
        %3831 = vmatprep.subr.mxu0 0.0
        %3832 = vmatpush1.msra.mxu0 0.0
        %3833 = vmatprep.subr.mxu0 0.0
        %3834 = vmatpush1.msra.mxu0 0.0
        %3835 = vmatprep.subr.mxu0 0.0
        %3836 = vmatpush1.msra.mxu0 0.0
        %3837 = vmatprep.subr.mxu0 0.0
        %3838 = vmatpush1.msra.mxu0 0.0
        %3839 = vmatprep.subr.mxu0 0.0
        %3840 = vmatpush1.msra.mxu0 0.0
        %3841 = vmatprep.subr.mxu0 0.0
        %3842 = vmatpush1.msra.mxu0 0.0
        %3843 = vmatprep.subr.mxu0 0.0
        %3844 = vmatpush1.msra.mxu0 0.0
        %3845 = vmatprep.subr.mxu0 0.0
        %3846 = vmatpush1.msra.mxu0 0.0
        %3847 = vmatprep.subr.mxu0 0.0
        %3848 = vmatpush1.msra.mxu0 0.0
        %3849 = vmatprep.subr.mxu0 0.0
        %3850 = vmatpush1.msra.mxu0 0.0
        %3851 = vmatprep.subr.mxu0 0.0
        %3852 = vmatpush1.msra.mxu0 0.0
        %3853 = vmatprep.subr.mxu0 0.0
        %3854 = vmatpush1.msra.mxu0 0.0
        %3855 = vmatprep.subr.mxu0 0.0
        %3856 = vmatpush1.msra.mxu0 0.0
        %3857 = vmatprep.subr.mxu0 0.0
        %3858 = vmatpush1.msra.mxu0 0.0
        %3859 = vmatprep.subr.mxu0 0.0
        %3860 = vmatpush1.msra.mxu0 0.0
        %3861 = vmatprep.subr.mxu0 0.0
        %3862 = vmatpush1.msra.mxu0 0.0
        %3863 = vmatprep.mubr.f32.mxu0 0.0
        %3864 = vmatmul.mubr.f32.gmra.mrb[0].mxu0 %v3707
        %v3865 = vpop.f32.mrb[0].mxu0
        %v3866 = vadd.f32 0.0, %v3865
        %v3867 = vpop.f32.mrb[0].mxu0
        %v3868 = vadd.f32 0.0, %v3867
        %3869 = vmatprep.mubr.f32.mxu0 0.0
        %3870 = vmatmul.mubr.f32.gmra.mrb[0].mxu0 %v3710
        %v3871 = vpop.f32.mrb[0].mxu0
        %v3872 = vadd.f32 0.0, %v3871
        %v3873 = vpop.f32.mrb[0].mxu0
        %v3874 = vadd.f32 0.0, %v3873
        %3875 = vdwg.mxu0
        %v3876 = vadd.f32 %v3866, %v3868
        %3877 = vadd.xlane.f32.xlu0 %v3876
        %v3878 = vpop.xlane.xlu0 %3877
        %v3879 = vadd.f32 %v3872, %v3874
        %3880 = vadd.xlane.f32.xlu0 %v3879
        %v3881 = vpop.xlane.xlu0 %3880
        %v3882 = vmul.f32 %v3791, %v3791
        %v3883 = vmul.f32 %v3794, %v3794
        %v3884 = vsub.f32 %v3878, %v3882
        %v3885 = vsub.f32 %v3881, %v3883
        %v3886 = vmax.f32 %v3884, 0.0
        %v3887 = vmax.f32 %v3885, 0.0
        %v3888 = vsub.f32 %v3700, %v3791
        %v3889 = vsub.f32 %v3701, %v3791
        %v3890 = vsub.f32 %v3702, %v3794
        %v3891 = vsub.f32 %v3703, %v3794
        %v3892 = vadd.f32 %v3886, 1e-05
        %v3893 = vadd.f32 %v3887, 1e-05
        %v3894 = vrsqrt.pop %v3892
        %v3895 = vrsqrt.pop %v3893
        %v3896 = vmul.f32 %v3888, %v3894
        %v3897 = vmul.f32 %v3889, %v3894
        %v3898 = vmul.f32 %v3890, %v3895
        %v3899 = vmul.f32 %v3891, %v3895
        %v3900 = vld [vmem:[%s957] sm:$0xff]
        %v3901 = vld [vmem:[%s957 + $0x8] sm:$0xff]
        %3903 = vset.pattern.permute.xlu0 0
        %3904 = vperm.xlu0 %3903, %v3900
        %v3905 = vpop.permute.xlu0 %3904
        %3908 = vset.pattern.permute.xlu0 0
        %3909 = vperm.xlu0 %3908, %v3901
        %v3910 = vpop.permute.xlu0 %3909
        %v3912 = vmul.f32 %v3896, %v3905
        %v3913 = vmul.f32 %v3897, %v3905
        %v3914 = vmul.f32 %v3898, %v3910
        %v3915 = vmul.f32 %v3899, %v3910
        %v3916 = vld [vmem:[%s962] sm:$0xff]
        %v3917 = vld [vmem:[%s962 + $0x8] sm:$0xff]
        %3919 = vset.pattern.permute.xlu0 0
        %3920 = vperm.xlu0 %3919, %v3916
        %v3921 = vpop.permute.xlu0 %3920
        %3924 = vset.pattern.permute.xlu0 0
        %3925 = vperm.xlu0 %3924, %v3917
        %v3926 = vpop.permute.xlu0 %3925
        %v3928 = vadd.f32 %v3912, %v3921
        %v3929 = vadd.f32 %v3913, %v3921
        %v3930 = vadd.f32 %v3914, %v3926
        %v3931 = vadd.f32 %v3915, %v3926
        %vm3932 = vcmp.ge.f32.partialorder %v3928, 0.0
        %vm3933 = vcmp.ge.f32.partialorder %v3929, 0.0
        %vm3934 = vcmp.ge.f32.partialorder %v3930, 0.0
        %vm3935 = vcmp.ge.f32.partialorder %v3931, 0.0
        %v3936 = vmul.f32 %v3928, 0.01
        %v3937 = vmul.f32 %v3929, 0.01
        %v3938 = vmul.f32 %v3930, 0.01
        %v3939 = vmul.f32 %v3931, 0.01
        %v3940 = vsel %vm3932, %v3928, %v3936
        %v3941 = vsel %vm3933, %v3929, %v3937
        %v3942 = vsel %vm3934, %v3930, %v3938
        %v3943 = vsel %vm3935, %v3931, %v3939
        %3944 = vst [vmem:[#allocation2] sm:$0xff] %v3940
        %3945 = vst [vmem:[#allocation2 + $0x8] sm:$0xff] %v3941
        %3946 = vst [vmem:[#allocation2 + $0x10] sm:$0xff] %v3942
        %3947 = vst [vmem:[#allocation2 + $0x18] sm:$0xff] %v3943
        %p3948 = scmp.eq.s32.totalorder %s42, 2
        // Predicated region
        $region121: #{ssdgnet_forward.1} parent=95 // pred_check
          %p3949 = pneg %p3948
        $region122: #{ssdgnet_forward.1} parent=95 // pred_check_branch
          %3951 = sbr.rel (%p3949) target = $region124
        $region123: #{ssdgnet_forward.1} parent=95 // pred_region
          %3952 = vrot.lane.b32.xlu0 %v3940, 17
          %v3953 = vpop.permute.xlu0 %3952
          %3954 = vrot.lane.b32.xlu0 %v3942, 17
          %v3955 = vpop.permute.xlu0 %3954
          %3956 = vrot.lane.b32.xlu0 %v3941, 17
          %v3957 = vpop.permute.xlu0 %3956
          %3958 = vrot.lane.b32.xlu0 %v3943, 17
          %v3959 = vpop.permute.xlu0 %3958
          %v3960 = vsel %vm1010, %v3953, %v3957
          %v3961 = vsel %vm1010, %v3955, %v3959
          %v3962 = vsel %vm1010, %v3957, %v3953
          %v3963 = vsel %vm1010, %v3959, %v3955
          %v3964 = vmul.f32 %v3962, %v1018
          %v3965 = vmul.f32 %v3960, %v1022
          %v3966 = vmul.f32 %v3963, %v1018
          %v3967 = vmul.f32 %v3961, %v1022
          %3968 = vrot.lane.b32.xlu0 %v3940, 16
          %v3969 = vpop.permute.xlu0 %3968
          %3970 = vrot.lane.b32.xlu0 %v3942, 16
          %v3971 = vpop.permute.xlu0 %3970
          %3972 = vrot.lane.b32.xlu0 %v3941, 16
          %v3973 = vpop.permute.xlu0 %3972
          %3974 = vrot.lane.b32.xlu0 %v3943, 16
          %v3975 = vpop.permute.xlu0 %3974
          %v3976 = vsel %vm1035, %v3969, %v3973
          %v3977 = vsel %vm1035, %v3971, %v3975
          %v3978 = vsel %vm1035, %v3973, %v3969
          %v3979 = vsel %vm1035, %v3975, %v3971
          %v3980 = vmul.f32 %v3978, %v1043
          %v3981 = vmul.f32 %v3976, %v1047
          %v3982 = vmul.f32 %v3979, %v1043
          %v3983 = vmul.f32 %v3977, %v1047
          %3984 = vrot.lane.b32.xlu0 %v3940, 15
          %v3985 = vpop.permute.xlu0 %3984
          %3986 = vrot.lane.b32.xlu0 %v3942, 15
          %v3987 = vpop.permute.xlu0 %3986
          %3988 = vrot.lane.b32.xlu0 %v3941, 15
          %v3989 = vpop.permute.xlu0 %3988
          %3990 = vrot.lane.b32.xlu0 %v3943, 15
          %v3991 = vpop.permute.xlu0 %3990
          %v3992 = vsel %vm1060, %v3985, %v3989
          %v3993 = vsel %vm1060, %v3987, %v3991
          %v3994 = vsel %vm1060, %v3989, %v3985
          %v3995 = vsel %vm1060, %v3991, %v3987
          %v3996 = vmul.f32 %v3994, %v1068
          %v3997 = vmul.f32 %v3992, %v1072
          %v3998 = vmul.f32 %v3995, %v1068
          %v3999 = vmul.f32 %v3993, %v1072
          %4000 = vrot.lane.b32.xlu0 %v3940, 1
          %v4001 = vpop.permute.xlu0 %4000
          %4002 = vrot.lane.b32.xlu0 %v3942, 1
          %v4003 = vpop.permute.xlu0 %4002
          %4004 = vrot.lane.b32.xlu0 %v3941, 1
          %v4005 = vpop.permute.xlu0 %4004
          %4006 = vrot.lane.b32.xlu0 %v3943, 1
          %v4007 = vpop.permute.xlu0 %4006
          %v4008 = vsel %vm1085, %v4001, %v4005
          %v4009 = vsel %vm1085, %v4003, %v4007
          %v4010 = vsel %vm1085, %v4005, %v4001
          %v4011 = vsel %vm1085, %v4007, %v4003
          %v4012 = vmul.f32 %v4010, %v1093
          %v4013 = vmul.f32 %v4008, %v1097
          %v4014 = vmul.f32 %v4011, %v1093
          %v4015 = vmul.f32 %v4009, %v1097
          %v4016 = vmul.f32 %v3940, %v1105
          %v4017 = vmul.f32 %v3941, %v1109
          %v4018 = vmul.f32 %v3942, %v1105
          %v4019 = vmul.f32 %v3943, %v1109
          %4020 = vrot.lane.b32.xlu0 %v3940, 127
          %v4021 = vpop.permute.xlu0 %4020
          %4022 = vrot.lane.b32.xlu0 %v3942, 127
          %v4023 = vpop.permute.xlu0 %4022
          %4024 = vrot.lane.b32.xlu0 %v3941, 127
          %v4025 = vpop.permute.xlu0 %4024
          %4026 = vrot.lane.b32.xlu0 %v3943, 127
          %v4027 = vpop.permute.xlu0 %4026
          %v4028 = vsel %vm1122, %v4021, %v4025
          %v4029 = vsel %vm1122, %v4023, %v4027
          %v4030 = vsel %vm1122, %v4025, %v4021
          %v4031 = vsel %vm1122, %v4027, %v4023
          %v4032 = vmul.f32 %v4028, %v1130
          %v4033 = vmul.f32 %v4030, %v1134
          %v4034 = vmul.f32 %v4029, %v1130
          %v4035 = vmul.f32 %v4031, %v1134
          %4036 = vrot.lane.b32.xlu0 %v3940, 113
          %v4037 = vpop.permute.xlu0 %4036
          %4038 = vrot.lane.b32.xlu0 %v3942, 113
          %v4039 = vpop.permute.xlu0 %4038
          %4040 = vrot.lane.b32.xlu0 %v3941, 113
          %v4041 = vpop.permute.xlu0 %4040
          %4042 = vrot.lane.b32.xlu0 %v3943, 113
          %v4043 = vpop.permute.xlu0 %4042
          %v4044 = vsel %vm1147, %v4037, %v4041
          %v4045 = vsel %vm1147, %v4039, %v4043
          %v4046 = vsel %vm1147, %v4041, %v4037
          %v4047 = vsel %vm1147, %v4043, %v4039
          %v4048 = vmul.f32 %v4044, %v1155
          %v4049 = vmul.f32 %v4046, %v1159
          %v4050 = vmul.f32 %v4045, %v1155
          %v4051 = vmul.f32 %v4047, %v1159
          %4052 = vrot.lane.b32.xlu0 %v3940, 112
          %v4053 = vpop.permute.xlu0 %4052
          %4054 = vrot.lane.b32.xlu0 %v3942, 112
          %v4055 = vpop.permute.xlu0 %4054
          %4056 = vrot.lane.b32.xlu0 %v3941, 112
          %v4057 = vpop.permute.xlu0 %4056
          %4058 = vrot.lane.b32.xlu0 %v3943, 112
          %v4059 = vpop.permute.xlu0 %4058
          %v4060 = vsel %vm1172, %v4053, %v4057
          %v4061 = vsel %vm1172, %v4055, %v4059
          %v4062 = vsel %vm1172, %v4057, %v4053
          %v4063 = vsel %vm1172, %v4059, %v4055
          %v4064 = vmul.f32 %v4060, %v1180
          %v4065 = vmul.f32 %v4062, %v1184
          %v4066 = vmul.f32 %v4061, %v1180
          %v4067 = vmul.f32 %v4063, %v1184
          %4068 = vrot.lane.b32.xlu0 %v3940, 111
          %v4069 = vpop.permute.xlu0 %4068
          %4070 = vrot.lane.b32.xlu0 %v3942, 111
          %v4071 = vpop.permute.xlu0 %4070
          %4072 = vrot.lane.b32.xlu0 %v3941, 111
          %v4073 = vpop.permute.xlu0 %4072
          %4074 = vrot.lane.b32.xlu0 %v3943, 111
          %v4075 = vpop.permute.xlu0 %4074
          %v4076 = vsel %vm1197, %v4069, %v4073
          %v4077 = vsel %vm1197, %v4071, %v4075
          %v4078 = vsel %vm1197, %v4073, %v4069
          %v4079 = vsel %vm1197, %v4075, %v4071
          %v4080 = vmul.f32 %v4076, %v1205
          %v4081 = vmul.f32 %v4078, %v1209
          %v4082 = vmul.f32 %v4077, %v1205
          %v4083 = vmul.f32 %v4079, %v1209
          %v4084 = vld [vmem:[%s967] sm:$0xff]
          %v4085 = vld [vmem:[%s967 + $0x8] sm:$0xff]
          %v4086 = vld [vmem:[%s971] sm:$0xff]
          %4088 = vset.pattern.permute.xlu0 0
          %4089 = vperm.xlu0 %4088, %v4086
          %v4090 = vpop.permute.xlu0 %4089
          %v4093 = vsel %vm1216, %v4085, 0
          %4095 = vmatprep.subr.mxu0 %v3965
          %4096 = vmatpush1.msra.mxu0 %v3964
          %4097 = vmatprep.subr.mxu0 %v3967
          %4098 = vmatpush1.msra.mxu0 %v3966
          %4099 = vmatprep.subr.mxu0 %v3981
          %4100 = vmatpush1.msra.mxu0 %v3980
          %4101 = vmatprep.subr.mxu0 %v3983
          %4102 = vmatpush1.msra.mxu0 %v3982
          %4103 = vmatprep.subr.mxu0 %v3997
          %4104 = vmatpush1.msra.mxu0 %v3996
          %4105 = vmatprep.subr.mxu0 %v3999
          %4106 = vmatpush1.msra.mxu0 %v3998
          %4107 = vmatprep.subr.mxu0 %v4013
          %4108 = vmatpush1.msra.mxu0 %v4012
          %4109 = vmatprep.subr.mxu0 %v4015
          %4110 = vmatpush1.msra.mxu0 %v4014
          %4111 = vmatprep.subr.mxu0 %v4017
          %4112 = vmatpush1.msra.mxu0 %v4016
          %4113 = vmatprep.subr.mxu0 %v4019
          %4114 = vmatpush1.msra.mxu0 %v4018
          %4115 = vmatprep.subr.mxu0 %v4033
          %4116 = vmatpush1.msra.mxu0 %v4032
          %4117 = vmatprep.subr.mxu0 %v4035
          %4118 = vmatpush1.msra.mxu0 %v4034
          %4119 = vmatprep.subr.mxu0 %v4049
          %4120 = vmatpush1.msra.mxu0 %v4048
          %4121 = vmatprep.subr.mxu0 %v4051
          %4122 = vmatpush1.msra.mxu0 %v4050
          %4123 = vmatprep.subr.mxu0 %v4065
          %4124 = vmatpush1.msra.mxu0 %v4064
          %4125 = vmatprep.subr.mxu0 %v4067
          %4126 = vmatpush1.msra.mxu0 %v4066
          %4127 = vmatprep.subr.mxu0 %v4081
          %4128 = vmatpush1.msra.mxu0 %v4080
          %4129 = vmatprep.subr.mxu0 %v4083
          %4130 = vmatpush1.msra.mxu0 %v4082
          %4131 = vmatprep.subr.mxu0 0.0
          %4132 = vmatpush1.msra.mxu0 0.0
          %4133 = vmatprep.subr.mxu0 0.0
          %4134 = vmatpush1.msra.mxu0 0.0
          %4135 = vmatprep.subr.mxu0 0.0
          %4136 = vmatpush1.msra.mxu0 0.0
          %4137 = vmatprep.subr.mxu0 0.0
          %4138 = vmatpush1.msra.mxu0 0.0
          %4139 = vmatprep.subr.mxu0 0.0
          %4140 = vmatpush1.msra.mxu0 0.0
          %4141 = vmatprep.subr.mxu0 0.0
          %4142 = vmatpush1.msra.mxu0 0.0
          %4143 = vmatprep.subr.mxu0 0.0
          %4144 = vmatpush1.msra.mxu0 0.0
          %4145 = vmatprep.subr.mxu0 0.0
          %4146 = vmatpush1.msra.mxu0 0.0
          %4147 = vmatprep.subr.mxu0 0.0
          %4148 = vmatpush1.msra.mxu0 0.0
          %4149 = vmatprep.subr.mxu0 0.0
          %4150 = vmatpush1.msra.mxu0 0.0
          %4151 = vmatprep.subr.mxu0 0.0
          %4152 = vmatpush1.msra.mxu0 0.0
          %4153 = vmatprep.subr.mxu0 0.0
          %4154 = vmatpush1.msra.mxu0 0.0
          %4155 = vmatprep.subr.mxu0 0.0
          %4156 = vmatpush1.msra.mxu0 0.0
          %4157 = vmatprep.subr.mxu0 0.0
          %4158 = vmatpush1.msra.mxu0 0.0
          %4159 = vmatprep.mubr.f32.mxu0 %v4093
          %4160 = vmatmul.mubr.f32.gmra.mrb[0].mxu0 %v4084
          %v4161 = vpop.f32.mrb[0].mxu0
          %v4162 = vadd.f32 %v4090, %v4161
          %v4163 = vpop.f32.mrb[0].mxu0
          %v4164 = vadd.f32 %v4090, %v4163
          %4165 = vdwg.mxu0
          %v4166 = vld [vmem:[%s974] sm:$0x1]
          %v4167 = vld [vmem:[%s0] sm:$0xff]
          %v4168 = vld [vmem:[%s0 + $0x8] sm:$0xff]
          %v4170 = vlaneseq
          %v4171 = vshrl.u32 %v4170, 7
          %v4172 = vsub.s32 0, %v4171
          %v4173 = vrot.slane %v4166, %v4172
          %4174 = vset.pattern.permute.xlu0 0
          %4175 = vperm.xlu0 %4174, %v4173
          %v4176 = vpop.permute.xlu0 %4175
          %v4178 = vmul.f32 %v4176, %v4167
          %v4179 = vmul.f32 %v4176, %v4168
          %v4180 = vadd.f32 %v4178, %v4162
          %v4181 = vadd.f32 %v4179, %v4164
          %4182 = vst [vmem:[%s979] sm:$0xff] %v4180
          %4183 = vst [vmem:[%s979 + $0x8] sm:$0xff] %v4181
        $region124: #{ssdgnet_forward.1} parent=95 // pred_fallthru
          _
        %p4184 = scmp.lt.s32.totalorder %s41, 1
        %s4185 = scalar_select %p4184, %s41, 1
        %s4186 = smul.addr %s4185, 2
        %s4187 = smul.addr %s4186, 8
        %s4188 = scalar_lea.vmem %s19, %s4187
        // Predicated region
        $region125: #{ssdgnet_forward.1} parent=95 // pred_check
          %p4189 = pneg %p540
        $region126: #{ssdgnet_forward.1} parent=95 // pred_check_branch
          %4191 = sbr.rel (%p4189) target = $region128
        $region127: #{ssdgnet_forward.1} parent=95 // pred_region
          _
        $region128: #{ssdgnet_forward.1} parent=95 // pred_fallthru
          _
      $region96: #{ssdgnet_forward.1} parent=5 // pred_fallthru
        _
      %p4192 = scmp.le.s32.totalorder 2, %s32
      // Predicated region
      $region129: #{ssdgnet_forward.1} parent=5 // pred_check
        %p4193 = pneg %p4192
      $region130: #{ssdgnet_forward.1} parent=5 // pred_check_branch
        %4195 = sbr.rel (%p4193) target = $region132
      $region131: #{ssdgnet_forward.1} parent=5 // pred_region
        %s4196 = ssub.s32 %s32, 2
        // Predicated region
        $region133: #{ssdgnet_forward.1} parent=131 // pred_check
          %p4197 = pneg %p546
        $region134: #{ssdgnet_forward.1} parent=131 // pred_check_branch
          %4199 = sbr.rel (%p4197) target = $region136
        $region135: #{ssdgnet_forward.1} parent=131 // pred_region
          %p4200 = scmp.lt.s32.totalorder %s43, 1
          %s4201 = scalar_select %p4200, %s43, 1
          %s4202 = smul.addr %s4201, 2
          %s4203 = smul.addr %s4202, 8
          %s4204 = scalar_lea.vmem %s19, %s4203
        $region136: #{ssdgnet_forward.1} parent=131 // pred_fallthru
          _
      $region132: #{ssdgnet_forward.1} parent=5 // pred_fallthru
        _
    $region6: #{ssdgnet_forward.1} parent=1 // loop_footer
      %s36 = sadd.s32 1, %s32
    $region7: #{ssdgnet_forward.1} parent=1 // loop_footer_branch
      %31 = sbr.rel target = $region3
    $region8: #{ssdgnet_forward.1} parent=1 // loop_exit
      _
    %4205 = vsyncpa [#allocation4], 1
    %s4206 = scalar_lea.sflag [#allocation4], 1
    %4207 = vsyncpa %s4206, 1
    %4208 = vsyncpa [#allocation6], 1
    %s4209 = scalar_lea.sflag [#allocation6], 1
    %4210 = vsyncpa %s4209, 1
    %4211 = vsyncpa [#allocation9], 1

</llo_original>
